<compile_context>
chip_gen: v7x
topology: tpu7x:2x2x1
jax: 0.10.0
libtpu: 0.0.40
codegen_flags: <defaults>
</compile_context>

<pallas_src>
import functools

import jax
import jax.numpy as jnp
from jax.experimental import pallas as pl
from jax.experimental.pallas import tpu as pltpu


def _vmem_limit_bytes(frac=0.75, cap=96 * 1024 * 1024, default=48 * 1024 * 1024):
    """~48 MiB on v7x (64 MiB physical), ~96 MiB on v5e/v6e (128 MiB physical)."""
    try:
        phys = pltpu.get_tpu_info().vmem_capacity_bytes
        return int(min(cap, frac * phys))
    except Exception:
        return default


# ----------------------------------------------------------------------------
# Fused kernel: Laplacian factors + ChebConv1 + ReLU + ChebConv2 + ReLU.
# One grid step per batch element; everything except A / X / output stays in
# VMEM / vregs.
# ----------------------------------------------------------------------------
def _fused_chebnet_kernel(g_ref, x_ref, w1_ref, b1_ref, w2_ref, b2_ref,
                          o_ref, z1_ref, z2_ref, *, K, matmul_dtype):
    a = g_ref[0]                                       # (N, N) adjacency, f32

    # --- normalized-Laplacian factors, exact torch nan/inf semantics --------
    d = jnp.sum(a, axis=1, keepdims=True)              # (N, 1) row degrees
    dinv = jax.lax.rsqrt(d)                            # inf (d==0) / nan (d<0)
    dinv = jnp.where(jnp.isnan(dinv), 0.0, dinv)       # torch: nan -> 0 in D
    bad = jnp.isinf(dinv)                              # zero-degree nodes
    dinv = jnp.where(bad, 0.0, dinv)                   # keep factors finite
    # torch zeroes the whole row/column (incl. the diagonal 1) of L for a
    # zero-degree node after its nan/inf scrub -> diagonal scale is (1 - bad).
    diag_scale = 1.0 - bad.astype(jnp.float32)         # (N, 1)
    a_mm = a.astype(matmul_dtype)                      # MXU operand (opt. bf16)

    def lap_apply(z):
        # L @ z with L = diag(diag_scale) - dinv * A * dinv^T, never built.
        p = jnp.dot(a_mm, (dinv * z).astype(matmul_dtype),
                    preferred_element_type=jnp.float32)
        return diag_scale * z - dinv * p

    def cheb_layer(x, zbuf_ref, w_flat, bias):
        cin = x.shape[1]
        zbuf_ref[:, 0:cin] = x                          # Z_0 = X  (T_0 = I)
        if K >= 2:
            z_pm2 = x
            z_pm1 = lap_apply(x)                        # Z_1 = L @ X
            zbuf_ref[:, cin:2 * cin] = z_pm1
            for k in range(2, K):                       # static unroll (small K)
                z = 2.0 * lap_apply(z_pm1) - z_pm2      # Z_k = 2 L Z_{k-1} - Z_{k-2}
                zbuf_ref[:, k * cin:(k + 1) * cin] = z
                z_pm2, z_pm1 = z_pm1, z
        # single weight-apply matmul over the stacked (N, K*Cin) features
        out = jnp.dot(zbuf_ref[...], w_flat,
                      preferred_element_type=jnp.float32) + bias
        return jnp.maximum(out, 0.0)                    # fused ReLU

    h1 = cheb_layer(x_ref[0], z1_ref, w1_ref[...], b1_ref[...])
    h2 = cheb_layer(h1, z2_ref, w2_ref[...], b2_ref[...])
    o_ref[0] = h2


def chebnet_conv_stack(graph, x, w1, b1, w2, b2, *, matmul_dtype=jnp.float32):
    B, N, Cin = x.shape
    K, _, Chid = w1.shape
    _, _, Cout = w2.shape
    # Reshape (K, Cin, Cout) -> (K*Cin, Cout) so sum_k Z_k @ W_k is one matmul.
    w1f = w1.reshape(K * Cin, Chid)
    w2f = w2.reshape(K * Chid, Cout)
    return pl.pallas_call(
        functools.partial(_fused_chebnet_kernel, K=K, matmul_dtype=matmul_dtype),
        out_shape=jax.ShapeDtypeStruct((B, N, Cout), jnp.float32),
        grid=(B,),
        in_specs=[
            pl.BlockSpec((1, N, N), lambda b: (b, 0, 0)),
            pl.BlockSpec((1, N, Cin), lambda b: (b, 0, 0)),
            pl.BlockSpec((K * Cin, Chid), lambda b: (0, 0)),
            pl.BlockSpec((1, Chid), lambda b: (0, 0)),
            pl.BlockSpec((K * Chid, Cout), lambda b: (0, 0)),
            pl.BlockSpec((1, Cout), lambda b: (0, 0)),
        ],
        # Output kept in torch (B, N, Cout) layout for exact reshape parity;
        # the activation is tiny, so lane-density of this store is not the
        # bottleneck here.
        out_specs=pl.BlockSpec((1, N, Cout), lambda b: (b, 0, 0)),
        scratch_shapes=[
            pltpu.VMEM((N, K * Cin), jnp.float32),      # stacked Z for conv1
            pltpu.VMEM((N, K * Chid), jnp.float32),     # stacked Z for conv2
        ],
        compiler_params=pltpu.CompilerParams(
            dimension_semantics=("parallel",),
            vmem_limit_bytes=_vmem_limit_bytes(),
        ),
    )(graph, x, w1f, b1, w2f, b2)


# ----------------------------------------------------------------------------
# FC head: Linear(Din,512) -> Linear(512,128) -> Linear(128,1), no activations
# (matches nn.Sequential(Linear, Linear, Linear)).
# Grid = (column-blocks of fc1 output [parallel], reduction blocks of Din
# [arbitrary]).  Each column block j accumulates its slice of x@W1, then pushes
# it through its row-slice of W2 and the full W3, producing a partial (B,1)
# contribution; partials (and the b2/b3 constants) are summed in the wrapper.
# ----------------------------------------------------------------------------
def _fc_head_kernel(x_ref, w1_ref, b1_ref, w2_ref, w3_ref, o_ref, acc_ref):
    k = pl.program_id(1)

    @pl.when(k == 0)
    def _init():
        acc_ref[...] = jnp.zeros_like(acc_ref)

    # astype is a no-op for f32 weights; for bf16-stored weights it upcasts
    # in-kernel so only half the bytes are streamed from HBM.
    acc_ref[...] += jnp.dot(x_ref[...], w1_ref[...].astype(jnp.float32),
                            preferred_element_type=jnp.float32)

    @pl.when(k == pl.num_programs(1) - 1)
    def _finish():
        h = acc_ref[...] + b1_ref[...]
        h2 = jnp.dot(h, w2_ref[...].astype(jnp.float32),
                     preferred_element_type=jnp.float32)
        o_ref[0] = jnp.dot(h2, w3_ref[...].astype(jnp.float32),
                           preferred_element_type=jnp.float32)


def fc_head(x, w1, b1, w2, b2, w3, b3, *, h1_blocks=2):
    B, Din = x.shape
    H1 = w1.shape[1]
    H2 = w2.shape[1]
    vmem_limit = _vmem_limit_bytes()

    # Column split of fc1's output (2-way -> both v7x TCs stream half of w1).
    nj = h1_blocks if (h1_blocks > 1 and H1 % h1_blocks == 0
                       and (H1 // h1_blocks) % 128 == 0) else 1
    hj = H1 // nj

    # Reduction tile: largest power-of-two that divides Din and whose
    # double-buffered w1 block stays well inside the VMEM budget.
    bytes_per = jnp.dtype(w1.dtype).itemsize
    budget = vmem_limit // 3
    tk = None
    for cand in (4096, 2048, 1024, 512, 256, 128):
        if Din % cand == 0 and 2 * cand * hj * bytes_per <= budget:
            tk = cand
            break
    if tk is None:
        # Guard against the latent VMEM blow-up: zero-pad the reduction dim to
        # a safe multiple (zeros do not change the matmul result).
        cand = 512
        while cand > 128 and 2 * cand * hj * bytes_per > budget:
            cand //= 2
        pad = (-Din) % cand
        if pad:
            x = jnp.pad(x, ((0, 0), (0, pad)))
            w1 = jnp.pad(w1, ((0, pad), (0, 0)))
            Din += pad
        tk = cand

    partials = pl.pallas_call(
        _fc_head_kernel,
        out_shape=jax.ShapeDtypeStruct((nj, B, 1), jnp.float32),
        grid=(nj, Din // tk),
        in_specs=[
            pl.BlockSpec((B, tk), lambda j, k: (0, k)),
            pl.BlockSpec((tk, hj), lambda j, k: (k, j)),
            pl.BlockSpec((1, hj), lambda j, k: (0, j)),
            pl.BlockSpec((hj, H2), lambda j, k: (j, 0)),
            pl.BlockSpec((H2, 1), lambda j, k: (0, 0)),
        ],
        out_specs=pl.BlockSpec((1, B, 1), lambda j, k: (j, 0, 0)),
        scratch_shapes=[pltpu.VMEM((B, hj), jnp.float32)],
        compiler_params=pltpu.CompilerParams(
            dimension_semantics=("parallel", "arbitrary"),
            vmem_limit_bytes=vmem_limit,
        ),
    )(x, w1, b1, w2, w3)

    # Constant bias path (b2 @ W3 + b3) and the column-block partial sum.
    return partials.sum(axis=0) + jnp.dot(b2, w3) + b3


# ----------------------------------------------------------------------------
# Full ChebNet forward
# ----------------------------------------------------------------------------
def chebnet_forward(graph, x, params, *, matmul_dtype=jnp.float32):
    B, N, _ = x.shape
    h2 = chebnet_conv_stack(graph, x,
                            params["w_conv1"], params["b_conv1"],
                            params["w_conv2"], params["b_conv2"],
                            matmul_dtype=matmul_dtype)
    Cout = h2.shape[2]
    flat = h2.reshape(B, N * Cout)                      # torch.reshape(output_2, (B, N*F))
    out = fc_head(flat, params["fc_w1"], params["fc_b1"],
                  params["fc_w2"], params["fc_b2"],
                  params["fc_w3"], params["fc_b3"])
    return jnp.squeeze(out)                             # output_2.squeeze()


if __name__ == "__main__":
    B, N = 2, 128
    in_c, hid_c, out_c, K_order = 4, 32, 8, 3
    K = K_order + 1                                     # number of Chebyshev terms (self.K)

    key = jax.random.PRNGKey(0)
    ks = jax.random.split(key, 8)

    graph = jax.random.uniform(ks[0], (B, N, N), jnp.float32)
    graph = 0.5 * (graph + jnp.transpose(graph, (0, 2, 1)))   # symmetric adjacency
    x = jax.random.normal(ks[1], (B, N, in_c), jnp.float32)

    def xavier(k, shape, fan_in, fan_out):
        std = (2.0 / (fan_in + fan_out)) ** 0.5
        return std * jax.random.normal(k, shape, jnp.float32)

    params = {
        # ChebConv weights: torch shape (K+1, 1, in_c, out_c); singleton dim dropped.
        "w_conv1": xavier(ks[2], (K, in_c, hid_c), in_c * hid_c, K * in_c * hid_c),
        "b_conv1": jnp.zeros((1, hid_c), jnp.float32),
        "w_conv2": xavier(ks[3], (K, hid_c, out_c), hid_c * out_c, K * hid_c * out_c),
        "b_conv2": jnp.zeros((1, out_c), jnp.float32),
        # FC head: weights stored as (in, out) so y = x @ W + b.
        # They may also be stored in bf16 to halve the HBM traffic of the
        # bandwidth-bound head (the kernel upcasts in-VMEM); f32 kept here for
        # exact parity with the PyTorch reference.
        # NOTE: the PyTorch module hardcodes in_features = 1024*out_c (assumes N == 1024);
        # here it is built as N*out_c so the small example is consistent.
        "fc_w1": 0.02 * jax.random.normal(ks[4], (N * out_c, 512), jnp.float32),
        "fc_b1": jnp.zeros((1, 512), jnp.float32),
        "fc_w2": 0.02 * jax.random.normal(ks[5], (512, 128), jnp.float32),
        "fc_b2": jnp.zeros((1, 128), jnp.float32),
        "fc_w3": 0.02 * jax.random.normal(ks[6], (128, 1), jnp.float32),
        "fc_b3": jnp.zeros((1, 1), jnp.float32),
    }

    out = jax.jit(chebnet_forward)(graph, x, params)
    jax.block_until_ready(out)
    assert out.shape == (B,)
    print("KERNEL_OK")
</pallas_src>

<mosaic_0001>
module attributes {stable_mosaic.version = 11 : i64} {
  func.func @_fused_chebnet_kernel(%arg0: i32, %arg1: memref<1x128x128xf32, #tpu.memory_space<vmem>>, %arg2: memref<1x128x4xf32, #tpu.memory_space<vmem>>, %arg3: memref<16x32xf32, #tpu.memory_space<vmem>>, %arg4: memref<1x32xf32, #tpu.memory_space<vmem>>, %arg5: memref<128x8xf32, #tpu.memory_space<vmem>>, %arg6: memref<1x8xf32, #tpu.memory_space<vmem>>, %arg7: memref<1x128x8xf32, #tpu.memory_space<vmem>>, %arg8: memref<128x16xf32, #tpu.memory_space<vmem>>, %arg9: memref<128x128xf32, #tpu.memory_space<vmem>>) attributes {dimension_semantics = [#tpu.dimension_semantics<parallel>], iteration_bounds = array<i64: 2>, scalar_prefetch = 0 : i64, scratch_operands = 2 : i64, tpu.core_type = #tpu.core_type<tc>, window_params = [{transform_indices = @transform_0, window_bounds = array<i64: 1, 128, 128>}, {transform_indices = @transform_1, window_bounds = array<i64: 1, 128, 4>}, {pipeline_mode = #tpu.pipeline_mode<synchronous>, transform_indices = @transform_2, window_bounds = array<i64: 16, 32>}, {pipeline_mode = #tpu.pipeline_mode<synchronous>, transform_indices = @transform_3, window_bounds = array<i64: 1, 32>}, {pipeline_mode = #tpu.pipeline_mode<synchronous>, transform_indices = @transform_4, window_bounds = array<i64: 128, 8>}, {pipeline_mode = #tpu.pipeline_mode<synchronous>, transform_indices = @transform_5, window_bounds = array<i64: 1, 8>}, {transform_indices = @transform_6, window_bounds = array<i64: 1, 128, 8>}]} {
    %c0 = arith.constant 0 : index
    %c0_0 = arith.constant 0 : index
    %c0_1 = arith.constant 0 : index
    %0 = vector.load %arg1[%c0, %c0_0, %c0_1] : memref<1x128x128xf32, #tpu.memory_space<vmem>>, vector<1x128x128xf32>
    %1 = vector.shape_cast %0 : vector<1x128x128xf32> to vector<128x128xf32>
    %cst = arith.constant dense<0.000000e+00> : vector<128xf32>
    %2 = vector.multi_reduction <add>, %1, %cst [1] : vector<128x128xf32> to vector<128xf32>
    %3 = vector.shape_cast %2 : vector<128xf32> to vector<128x1xf32>
    %4 = math.rsqrt %3 : vector<128x1xf32>
    %5 = arith.cmpf one, %4, %4 : vector<128x1xf32>
    %cst_2 = arith.constant 0.000000e+00 : f32
    %6 = vector.broadcast %cst_2 : f32 to vector<128x1xf32>
    %7 = arith.select %5, %6, %4 : vector<128x1xi1>, vector<128x1xf32>
    %8 = math.absf %7 : vector<128x1xf32>
    %cst_3 = arith.constant 0x7F800000 : f32
    %9 = vector.broadcast %cst_3 : f32 to vector<128x1xf32>
    %10 = arith.cmpf oeq, %8, %9 : vector<128x1xf32>
    %cst_4 = arith.constant 0.000000e+00 : f32
    %11 = vector.broadcast %cst_4 : f32 to vector<128x1xf32>
    %12 = arith.select %10, %11, %7 : vector<128x1xi1>, vector<128x1xf32>
    %13 = arith.extui %10 : vector<128x1xi1> to vector<128x1xi32>
    %14 = arith.sitofp %13 : vector<128x1xi32> to vector<128x1xf32>
    %cst_5 = arith.constant 1.000000e+00 : f32
    %15 = vector.broadcast %cst_5 : f32 to vector<128x1xf32>
    %16 = arith.subf %15, %14 : vector<128x1xf32>
    %c0_6 = arith.constant 0 : index
    %c0_7 = arith.constant 0 : index
    %c0_8 = arith.constant 0 : index
    %17 = vector.load %arg2[%c0_6, %c0_7, %c0_8] : memref<1x128x4xf32, #tpu.memory_space<vmem>>, vector<1x128x4xf32>
    %18 = vector.shape_cast %17 : vector<1x128x4xf32> to vector<128x4xf32>
    %c0_9 = arith.constant 0 : index
    %c0_10 = arith.constant 0 : index
    %19 = vector.load %arg3[%c0_9, %c0_10] : memref<16x32xf32, #tpu.memory_space<vmem>>, vector<16x32xf32>
    %c0_11 = arith.constant 0 : index
    %c0_12 = arith.constant 0 : index
    %20 = vector.load %arg4[%c0_11, %c0_12] : memref<1x32xf32, #tpu.memory_space<vmem>>, vector<1x32xf32>
    %c0_13 = arith.constant 0 : index
    %c0_14 = arith.constant 0 : index
    %21 = vector.load %arg8[%c0_13, %c0_14] : memref<128x16xf32, #tpu.memory_space<vmem>>, vector<128x4xf32>
    tpu.vector_store %arg8[%c0_13, %c0_14], %18 {strides = array<i32>} : memref<128x16xf32, #tpu.memory_space<vmem>>, vector<128x4xf32>,
    %22 = vector.broadcast %12 : vector<128x1xf32> to vector<128x4xf32>
    %23 = arith.mulf %22, %18 : vector<128x4xf32>
    %cst_15 = arith.constant dense<0.000000e+00> : vector<128x4xf32>
    %24 = tpu.matmul %1, %23, %cst_15 {dimension_numbers = #tpu.dot_dimension_numbers<[1], [0], [0], [1], [0, 0, 1, 1], [], []>} : vector<128x128xf32>, vector<128x4xf32>, vector<128x4xf32> -> vector<128x4xf32>
    %25 = vector.broadcast %16 : vector<128x1xf32> to vector<128x4xf32>
    %26 = arith.mulf %25, %18 : vector<128x4xf32>
    %27 = vector.broadcast %12 : vector<128x1xf32> to vector<128x4xf32>
    %28 = arith.mulf %27, %24 : vector<128x4xf32>
    %29 = arith.subf %26, %28 : vector<128x4xf32>
    %c0_16 = arith.constant 0 : index
    %c4 = arith.constant 4 : index
    %30 = vector.load %arg8[%c0_16, %c4] : memref<128x16xf32, #tpu.memory_space<vmem>>, vector<128x4xf32>
    tpu.vector_store %arg8[%c0_16, %c4], %29 {strides = array<i32>} : memref<128x16xf32, #tpu.memory_space<vmem>>, vector<128x4xf32>,
    %31 = vector.broadcast %12 : vector<128x1xf32> to vector<128x4xf32>
    %32 = arith.mulf %31, %29 : vector<128x4xf32>
    %cst_17 = arith.constant dense<0.000000e+00> : vector<128x4xf32>
    %33 = tpu.matmul %1, %32, %cst_17 {dimension_numbers = #tpu.dot_dimension_numbers<[1], [0], [0], [1], [0, 0, 1, 1], [], []>} : vector<128x128xf32>, vector<128x4xf32>, vector<128x4xf32> -> vector<128x4xf32>
    %34 = vector.broadcast %16 : vector<128x1xf32> to vector<128x4xf32>
    %35 = arith.mulf %34, %29 : vector<128x4xf32>
    %36 = vector.broadcast %12 : vector<128x1xf32> to vector<128x4xf32>
    %37 = arith.mulf %36, %33 : vector<128x4xf32>
    %38 = arith.subf %35, %37 : vector<128x4xf32>
    %cst_18 = arith.constant 2.000000e+00 : f32
    %39 = vector.broadcast %cst_18 : f32 to vector<128x4xf32>
    %40 = arith.mulf %39, %38 : vector<128x4xf32>
    %41 = arith.subf %40, %18 : vector<128x4xf32>
    %c0_19 = arith.constant 0 : index
    %c8 = arith.constant 8 : index
    %42 = vector.load %arg8[%c0_19, %c8] : memref<128x16xf32, #tpu.memory_space<vmem>>, vector<128x4xf32>
    tpu.vector_store %arg8[%c0_19, %c8], %41 {strides = array<i32>} : memref<128x16xf32, #tpu.memory_space<vmem>>, vector<128x4xf32>,
    %43 = vector.broadcast %12 : vector<128x1xf32> to vector<128x4xf32>
    %44 = arith.mulf %43, %41 : vector<128x4xf32>
    %cst_20 = arith.constant dense<0.000000e+00> : vector<128x4xf32>
    %45 = tpu.matmul %1, %44, %cst_20 {dimension_numbers = #tpu.dot_dimension_numbers<[1], [0], [0], [1], [0, 0, 1, 1], [], []>} : vector<128x128xf32>, vector<128x4xf32>, vector<128x4xf32> -> vector<128x4xf32>
    %46 = vector.broadcast %16 : vector<128x1xf32> to vector<128x4xf32>
    %47 = arith.mulf %46, %41 : vector<128x4xf32>
    %48 = vector.broadcast %12 : vector<128x1xf32> to vector<128x4xf32>
    %49 = arith.mulf %48, %45 : vector<128x4xf32>
    %50 = arith.subf %47, %49 : vector<128x4xf32>
    %cst_21 = arith.constant 2.000000e+00 : f32
    %51 = vector.broadcast %cst_21 : f32 to vector<128x4xf32>
    %52 = arith.mulf %51, %50 : vector<128x4xf32>
    %53 = arith.subf %52, %29 : vector<128x4xf32>
    %c0_22 = arith.constant 0 : index
    %c12 = arith.constant 12 : index
    %54 = vector.load %arg8[%c0_22, %c12] : memref<128x16xf32, #tpu.memory_space<vmem>>, vector<128x4xf32>
    tpu.vector_store %arg8[%c0_22, %c12], %53 {strides = array<i32>} : memref<128x16xf32, #tpu.memory_space<vmem>>, vector<128x4xf32>,
    %c0_23 = arith.constant 0 : index
    %c0_24 = arith.constant 0 : index
    %55 = vector.load %arg8[%c0_23, %c0_24] : memref<128x16xf32, #tpu.memory_space<vmem>>, vector<128x16xf32>
    %cst_25 = arith.constant dense<0.000000e+00> : vector<128x32xf32>
    %56 = tpu.matmul %55, %19, %cst_25 {dimension_numbers = #tpu.dot_dimension_numbers<[1], [0], [0], [1], [0, 0, 1, 1], [], []>} : vector<128x16xf32>, vector<16x32xf32>, vector<128x32xf32> -> vector<128x32xf32>
    %57 = vector.broadcast %20 : vector<1x32xf32> to vector<128x32xf32>
    %58 = arith.addf %56, %57 : vector<128x32xf32>
    %cst_26 = arith.constant 0.000000e+00 : f32
    %59 = vector.broadcast %cst_26 : f32 to vector<128x32xf32>
    %60 = arith.maximumf %58, %59 : vector<128x32xf32>
    %c0_27 = arith.constant 0 : index
    %c0_28 = arith.constant 0 : index
    %61 = vector.load %arg5[%c0_27, %c0_28] : memref<128x8xf32, #tpu.memory_space<vmem>>, vector<128x8xf32>
    %c0_29 = arith.constant 0 : index
    %c0_30 = arith.constant 0 : index
    %62 = vector.load %arg6[%c0_29, %c0_30] : memref<1x8xf32, #tpu.memory_space<vmem>>, vector<1x8xf32>
    %c0_31 = arith.constant 0 : index
    %c0_32 = arith.constant 0 : index
    %63 = vector.load %arg9[%c0_31, %c0_32] : memref<128x128xf32, #tpu.memory_space<vmem>>, vector<128x32xf32>
    tpu.vector_store %arg9[%c0_31, %c0_32], %60 {strides = array<i32>} : memref<128x128xf32, #tpu.memory_space<vmem>>, vector<128x32xf32>,
    %64 = vector.broadcast %12 : vector<128x1xf32> to vector<128x32xf32>
    %65 = arith.mulf %64, %60 : vector<128x32xf32>
    %cst_33 = arith.constant dense<0.000000e+00> : vector<128x32xf32>
    %66 = tpu.matmul %1, %65, %cst_33 {dimension_numbers = #tpu.dot_dimension_numbers<[1], [0], [0], [1], [0, 0, 1, 1], [], []>} : vector<128x128xf32>, vector<128x32xf32>, vector<128x32xf32> -> vector<128x32xf32>
    %67 = vector.broadcast %16 : vector<128x1xf32> to vector<128x32xf32>
    %68 = arith.mulf %67, %60 : vector<128x32xf32>
    %69 = vector.broadcast %12 : vector<128x1xf32> to vector<128x32xf32>
    %70 = arith.mulf %69, %66 : vector<128x32xf32>
    %71 = arith.subf %68, %70 : vector<128x32xf32>
    %c0_34 = arith.constant 0 : index
    %c32 = arith.constant 32 : index
    %72 = vector.load %arg9[%c0_34, %c32] : memref<128x128xf32, #tpu.memory_space<vmem>>, vector<128x32xf32>
    tpu.vector_store %arg9[%c0_34, %c32], %71 {strides = array<i32>} : memref<128x128xf32, #tpu.memory_space<vmem>>, vector<128x32xf32>,
    %73 = vector.broadcast %12 : vector<128x1xf32> to vector<128x32xf32>
    %74 = arith.mulf %73, %71 : vector<128x32xf32>
    %cst_35 = arith.constant dense<0.000000e+00> : vector<128x32xf32>
    %75 = tpu.matmul %1, %74, %cst_35 {dimension_numbers = #tpu.dot_dimension_numbers<[1], [0], [0], [1], [0, 0, 1, 1], [], []>} : vector<128x128xf32>, vector<128x32xf32>, vector<128x32xf32> -> vector<128x32xf32>
    %76 = vector.broadcast %16 : vector<128x1xf32> to vector<128x32xf32>
    %77 = arith.mulf %76, %71 : vector<128x32xf32>
    %78 = vector.broadcast %12 : vector<128x1xf32> to vector<128x32xf32>
    %79 = arith.mulf %78, %75 : vector<128x32xf32>
    %80 = arith.subf %77, %79 : vector<128x32xf32>
    %cst_36 = arith.constant 2.000000e+00 : f32
    %81 = vector.broadcast %cst_36 : f32 to vector<128x32xf32>
    %82 = arith.mulf %81, %80 : vector<128x32xf32>
    %83 = arith.subf %82, %60 : vector<128x32xf32>
    %c0_37 = arith.constant 0 : index
    %c64 = arith.constant 64 : index
    %84 = vector.load %arg9[%c0_37, %c64] : memref<128x128xf32, #tpu.memory_space<vmem>>, vector<128x32xf32>
    tpu.vector_store %arg9[%c0_37, %c64], %83 {strides = array<i32>} : memref<128x128xf32, #tpu.memory_space<vmem>>, vector<128x32xf32>,
    %85 = vector.broadcast %12 : vector<128x1xf32> to vector<128x32xf32>
    %86 = arith.mulf %85, %83 : vector<128x32xf32>
    %cst_38 = arith.constant dense<0.000000e+00> : vector<128x32xf32>
    %87 = tpu.matmul %1, %86, %cst_38 {dimension_numbers = #tpu.dot_dimension_numbers<[1], [0], [0], [1], [0, 0, 1, 1], [], []>} : vector<128x128xf32>, vector<128x32xf32>, vector<128x32xf32> -> vector<128x32xf32>
    %88 = vector.broadcast %16 : vector<128x1xf32> to vector<128x32xf32>
    %89 = arith.mulf %88, %83 : vector<128x32xf32>
    %90 = vector.broadcast %12 : vector<128x1xf32> to vector<128x32xf32>
    %91 = arith.mulf %90, %87 : vector<128x32xf32>
    %92 = arith.subf %89, %91 : vector<128x32xf32>
    %cst_39 = arith.constant 2.000000e+00 : f32
    %93 = vector.broadcast %cst_39 : f32 to vector<128x32xf32>
    %94 = arith.mulf %93, %92 : vector<128x32xf32>
    %95 = arith.subf %94, %71 : vector<128x32xf32>
    %c0_40 = arith.constant 0 : index
    %c96 = arith.constant 96 : index
    %96 = vector.load %arg9[%c0_40, %c96] : memref<128x128xf32, #tpu.memory_space<vmem>>, vector<128x32xf32>
    tpu.vector_store %arg9[%c0_40, %c96], %95 {strides = array<i32>} : memref<128x128xf32, #tpu.memory_space<vmem>>, vector<128x32xf32>,
    %c0_41 = arith.constant 0 : index
    %c0_42 = arith.constant 0 : index
    %97 = vector.load %arg9[%c0_41, %c0_42] : memref<128x128xf32, #tpu.memory_space<vmem>>, vector<128x128xf32>
    %cst_43 = arith.constant dense<0.000000e+00> : vector<128x8xf32>
    %98 = tpu.matmul %97, %61, %cst_43 {dimension_numbers = #tpu.dot_dimension_numbers<[1], [0], [0], [1], [0, 0, 1, 1], [], []>} : vector<128x128xf32>, vector<128x8xf32>, vector<128x8xf32> -> vector<128x8xf32>
    %99 = vector.broadcast %62 : vector<1x8xf32> to vector<128x8xf32>
    %100 = arith.addf %98, %99 : vector<128x8xf32>
    %cst_44 = arith.constant 0.000000e+00 : f32
    %101 = vector.broadcast %cst_44 : f32 to vector<128x8xf32>
    %102 = arith.maximumf %100, %101 : vector<128x8xf32>
    %c0_45 = arith.constant 0 : index
    %c0_46 = arith.constant 0 : index
    %c0_47 = arith.constant 0 : index
    %103 = vector.load %arg7[%c0_45, %c0_46, %c0_47] : memref<1x128x8xf32, #tpu.memory_space<vmem>>, vector<1x128x8xf32>
    %104 = vector.shape_cast %103 : vector<1x128x8xf32> to vector<128x8xf32>
    %105 = vector.shape_cast %102 : vector<128x8xf32> to vector<1x128x8xf32>
    tpu.vector_store %arg7[%c0_45, %c0_46, %c0_47], %105 {strides = array<i32>} : memref<1x128x8xf32, #tpu.memory_space<vmem>>, vector<1x128x8xf32>,
    return
  }
  func.func @transform_0(%arg0: i32) -> (i32, i32, i32) {
    %c0_i32 = arith.constant 0 : i32
    %c0_i32_0 = arith.constant 0 : i32
    %c0_i32_1 = arith.constant 0 : i32
    return %arg0, %c0_i32, %c0_i32_0 : i32, i32, i32
  }
  func.func @transform_1(%arg0: i32) -> (i32, i32, i32) {
    %c0_i32 = arith.constant 0 : i32
    %c0_i32_0 = arith.constant 0 : i32
    %c0_i32_1 = arith.constant 0 : i32
    return %arg0, %c0_i32, %c0_i32_0 : i32, i32, i32
  }
  func.func @transform_2(%arg0: i32) -> (i32, i32) {
    %c0_i32 = arith.constant 0 : i32
    %c0_i32_0 = arith.constant 0 : i32
    %c0_i32_1 = arith.constant 0 : i32
    return %c0_i32, %c0_i32_0 : i32, i32
  }
  func.func @transform_3(%arg0: i32) -> (i32, i32) {
    %c0_i32 = arith.constant 0 : i32
    %c0_i32_0 = arith.constant 0 : i32
    %c0_i32_1 = arith.constant 0 : i32
    return %c0_i32, %c0_i32_0 : i32, i32
  }
  func.func @transform_4(%arg0: i32) -> (i32, i32) {
    %c0_i32 = arith.constant 0 : i32
    %c0_i32_0 = arith.constant 0 : i32
    %c0_i32_1 = arith.constant 0 : i32
    return %c0_i32, %c0_i32_0 : i32, i32
  }
  func.func @transform_5(%arg0: i32) -> (i32, i32) {
    %c0_i32 = arith.constant 0 : i32
    %c0_i32_0 = arith.constant 0 : i32
    %c0_i32_1 = arith.constant 0 : i32
    return %c0_i32, %c0_i32_0 : i32, i32
  }
  func.func @transform_6(%arg0: i32) -> (i32, i32, i32) {
    %c0_i32 = arith.constant 0 : i32
    %c0_i32_0 = arith.constant 0 : i32
    %c0_i32_1 = arith.constant 0 : i32
    return %arg0, %c0_i32, %c0_i32_0 : i32, i32, i32
  }
}

module attributes {stable_mosaic.version = 11 : i64} {
  func.func @_fc_head_kernel(%arg0: i32, %arg1: i32, %arg2: memref<2x1024xf32, #tpu.memory_space<vmem>>, %arg3: memref<1024x256xf32, #tpu.memory_space<vmem>>, %arg4: memref<1x256xf32, #tpu.memory_space<vmem>>, %arg5: memref<256x128xf32, #tpu.memory_space<vmem>>, %arg6: memref<128x1xf32, #tpu.memory_space<vmem>>, %arg7: memref<1x2x1xf32, #tpu.memory_space<vmem>>, %arg8: memref<2x256xf32, #tpu.memory_space<vmem>>) attributes {dimension_semantics = [#tpu.dimension_semantics<parallel>, #tpu.dimension_semantics<arbitrary>], iteration_bounds = array<i64: 2, 1>, scalar_prefetch = 0 : i64, scratch_operands = 1 : i64, tpu.core_type = #tpu.core_type<tc>, window_params = [{transform_indices = @transform_0, window_bounds = array<i64: 2, 1024>}, {transform_indices = @transform_1, window_bounds = array<i64: 1024, 256>}, {transform_indices = @transform_2, window_bounds = array<i64: 1, 256>}, {transform_indices = @transform_3, window_bounds = array<i64: 256, 128>}, {pipeline_mode = #tpu.pipeline_mode<synchronous>, transform_indices = @transform_4, window_bounds = array<i64: 128, 1>}, {transform_indices = @transform_5, window_bounds = array<i64: 1, 2, 1>}]} {
    %c0_i32 = arith.constant 0 : i32
    %0 = arith.cmpi eq, %arg1, %c0_i32 : i32
    %1 = arith.extui %0 : i1 to i32
    %c0_i32_0 = arith.constant 0 : i32
    %2 = arith.cmpi ne, %1, %c0_i32_0 : i32
    scf.if %2 {
      %cst_10 = arith.constant 0.000000e+00 : f32
      %12 = vector.broadcast %cst_10 : f32 to vector<2x256xf32>
      %c0_11 = arith.constant 0 : index
      %c0_12 = arith.constant 0 : index
      %13 = vector.load %arg8[%c0_11, %c0_12] : memref<2x256xf32, #tpu.memory_space<vmem>>, vector<2x256xf32>
      tpu.vector_store %arg8[%c0_11, %c0_12], %12 {strides = array<i32>} : memref<2x256xf32, #tpu.memory_space<vmem>>, vector<2x256xf32>,
    } else {
    }
    %c0 = arith.constant 0 : index
    %c0_1 = arith.constant 0 : index
    %3 = vector.load %arg8[%c0, %c0_1] : memref<2x256xf32, #tpu.memory_space<vmem>>, vector<2x256xf32>
    %c0_2 = arith.constant 0 : index
    %c0_3 = arith.constant 0 : index
    %4 = vector.load %arg2[%c0_2, %c0_3] : memref<2x1024xf32, #tpu.memory_space<vmem>>, vector<2x1024xf32>
    %c0_4 = arith.constant 0 : index
    %c0_5 = arith.constant 0 : index
    %5 = vector.load %arg3[%c0_4, %c0_5] : memref<1024x256xf32, #tpu.memory_space<vmem>>, vector<1024x256xf32>
    %cst = arith.constant dense<0.000000e+00> : vector<2x256xf32>
    %6 = tpu.matmul %4, %5, %cst {dimension_numbers = #tpu.dot_dimension_numbers<[1], [0], [0], [1], [0, 0, 1, 1], [], []>} : vector<2x1024xf32>, vector<1024x256xf32>, vector<2x256xf32> -> vector<2x256xf32>
    %7 = arith.addf %3, %6 : vector<2x256xf32>
    %c0_6 = arith.constant 0 : index
    %c0_7 = arith.constant 0 : index
    %8 = vector.load %arg8[%c0_6, %c0_7] : memref<2x256xf32, #tpu.memory_space<vmem>>, vector<2x256xf32>
    tpu.vector_store %arg8[%c0_6, %c0_7], %7 {strides = array<i32>} : memref<2x256xf32, #tpu.memory_space<vmem>>, vector<2x256xf32>,
    %c0_i32_8 = arith.constant 0 : i32
    %9 = arith.cmpi eq, %arg1, %c0_i32_8 : i32
    %10 = arith.extui %9 : i1 to i32
    %c0_i32_9 = arith.constant 0 : i32
    %11 = arith.cmpi ne, %10, %c0_i32_9 : i32
    scf.if %11 {
      %c0_10 = arith.constant 0 : index
      %c0_11 = arith.constant 0 : index
      %12 = vector.load %arg8[%c0_10, %c0_11] : memref<2x256xf32, #tpu.memory_space<vmem>>, vector<2x256xf32>
      %c0_12 = arith.constant 0 : index
      %c0_13 = arith.constant 0 : index
      %13 = vector.load %arg4[%c0_12, %c0_13] : memref<1x256xf32, #tpu.memory_space<vmem>>, vector<1x256xf32>
      %14 = vector.broadcast %13 : vector<1x256xf32> to vector<2x256xf32>
      %15 = arith.addf %12, %14 : vector<2x256xf32>
      %c0_14 = arith.constant 0 : index
      %c0_15 = arith.constant 0 : index
      %16 = vector.load %arg5[%c0_14, %c0_15] : memref<256x128xf32, #tpu.memory_space<vmem>>, vector<256x128xf32>
      %cst_16 = arith.constant dense<0.000000e+00> : vector<2x128xf32>
      %17 = tpu.matmul %15, %16, %cst_16 {dimension_numbers = #tpu.dot_dimension_numbers<[1], [0], [0], [1], [0, 0, 1, 1], [], []>} : vector<2x256xf32>, vector<256x128xf32>, vector<2x128xf32> -> vector<2x128xf32>
      %c0_17 = arith.constant 0 : index
      %c0_18 = arith.constant 0 : index
      %18 = vector.load %arg6[%c0_17, %c0_18] : memref<128x1xf32, #tpu.memory_space<vmem>>, vector<128x1xf32>
      %cst_19 = arith.constant dense<0.000000e+00> : vector<2x1xf32>
      %19 = tpu.matmul %17, %18, %cst_19 {dimension_numbers = #tpu.dot_dimension_numbers<[1], [0], [0], [1], [0, 0, 1, 1], [], []>} : vector<2x128xf32>, vector<128x1xf32>, vector<2x1xf32> -> vector<2x1xf32>
      %c0_20 = arith.constant 0 : index
      %c0_21 = arith.constant 0 : index
      %c0_22 = arith.constant 0 : index
      %20 = vector.load %arg7[%c0_20, %c0_21, %c0_22] : memref<1x2x1xf32, #tpu.memory_space<vmem>>, vector<1x2x1xf32>
      %21 = vector.shape_cast %20 : vector<1x2x1xf32> to vector<2x1xf32>
      %22 = vector.shape_cast %19 : vector<2x1xf32> to vector<1x2x1xf32>
      tpu.vector_store %arg7[%c0_20, %c0_21, %c0_22], %22 {strides = array<i32>} : memref<1x2x1xf32, #tpu.memory_space<vmem>>, vector<1x2x1xf32>,
    } else {
    }
    return
  }
  func.func @transform_0(%arg0: i32, %arg1: i32) -> (i32, i32) {
    %c0_i32 = arith.constant 0 : i32
    %c0_i32_0 = arith.constant 0 : i32
    return %c0_i32, %arg1 : i32, i32
  }
  func.func @transform_1(%arg0: i32, %arg1: i32) -> (i32, i32) {
    %c0_i32 = arith.constant 0 : i32
    return %arg1, %arg0 : i32, i32
  }
  func.func @transform_2(%arg0: i32, %arg1: i32) -> (i32, i32) {
    %c0_i32 = arith.constant 0 : i32
    %c0_i32_0 = arith.constant 0 : i32
    return %c0_i32, %arg0 : i32, i32
  }
  func.func @transform_3(%arg0: i32, %arg1: i32) -> (i32, i32) {
    %c0_i32 = arith.constant 0 : i32
    %c0_i32_0 = arith.constant 0 : i32
    return %arg0, %c0_i32 : i32, i32
  }
  func.func @transform_4(%arg0: i32, %arg1: i32) -> (i32, i32) {
    %c0_i32 = arith.constant 0 : i32
    %c0_i32_0 = arith.constant 0 : i32
    %c0_i32_1 = arith.constant 0 : i32
    return %c0_i32, %c0_i32_0 : i32, i32
  }
  func.func @transform_5(%arg0: i32, %arg1: i32) -> (i32, i32, i32) {
    %c0_i32 = arith.constant 0 : i32
    %c0_i32_0 = arith.constant 0 : i32
    %c0_i32_1 = arith.constant 0 : i32
    return %arg0, %c0_i32, %c0_i32_0 : i32, i32, i32
  }
}

</mosaic_0001>

<llo_original>
// kernel: chebnet_forward.3
$region0: #{chebnet_forward.3}
  #allocation0 [shape = 'u32[]', space=smem, size = 0x4, offset = 0x4, fixed_abs, tag = 'smem constant byte address 0x4 - core index']
  #allocation1 [shape = 'u32[144,128]{1,0:T(1,128)}', space=vmem, size = 0x12000, scoped, tag = 'internal scratch']
  #allocation2 [shape = 'f32[2,256]{1,0:T(2,128)}', space=vmem, size = 0x800, scoped, tag = 'scratch operand']
  %s0 = inlined_call_operand.vmem [shape: f32[2,1024], index: 0, kind: input, shape index: {}]
  %s1 = inlined_call_operand.hbm [shape: f32[1024,512], index: 1, kind: input, shape index: {}]
  %s2 = inlined_call_operand.hbm [shape: f32[1,512], index: 2, kind: input, shape index: {}]
  %s3 = inlined_call_operand.hbm [shape: f32[512,128], index: 3, kind: input, shape index: {}]
  %s4 = inlined_call_operand.vmem [shape: f32[128,1], index: 4, kind: input, shape index: {}]
  %s5 = inlined_call_operand.vmem [shape: f32[2,2,1], index: 5, kind: output, shape index: {}]
  %s6 = sld [smem:[#allocation0]]
  $region73: #{chebnet_forward.3} parent=0
    _
  %s8 = ssub.s32 1, %s6
  %s9 = scalar_select 0, %s8, %s6
  $region1: #{chebnet_forward.3} parent=0
    #allocation3 [shape = 'u8[2097152]{0}', space=vmem, size = 0x200000, scoped, tag = 'input window, operand 1']
    #allocation4 [shape = 's32[2]{0}', space=sflag, size = 0x8, scoped, tag = 'scoped memory for chebnet_forward.3']
    #allocation5 [shape = 'u8[2048]{0}', space=vmem, size = 0x800, scoped, tag = 'input window, operand 2']
    #allocation6 [shape = 's32[2]{0}', space=sflag, size = 0x8, scoped, tag = 'scoped memory for chebnet_forward.3']
    #allocation7 [shape = 'u8[262144]{0}', space=vmem, size = 0x40000, scoped, tag = 'input window, operand 3']
    %10 = vsyncpa [#allocation4], 0
    %s11 = scalar_lea.sflag [#allocation4], 1
    %12 = vsyncpa %s11, 0
    %13 = vsyncpa [#allocation6], 0
    %s14 = scalar_lea.sflag [#allocation6], 1
    %15 = vsyncpa %s14, 0
    loop: start=0, step=1, limit=4
    $region2: #{chebnet_forward.3} parent=1 // loop_pre_header
      _
    $region3: #{chebnet_forward.3} parent=1 // loop_header
      %s17 = sphi 0, %s21
      %p18 = scmp.ge.s32.totalorder %s17, 4
      %s24 = sphi 0, %s36
      %s25 = sphi 0, %s32
      %s26 = sphi 0, %s24
      %s27 = sphi 0, %s25
      %s28 = sphi 0, %s26
      %s29 = sphi 0, %s27
      %s39 = sphi 0, %s41
      %s42 = sphi 0, %s39
      %s43 = sphi 0, %s42
      %s59 = sphi 0, %s43
      %s67 = sphi 0, %s69
      %s70 = sphi 0, %s67
      %s71 = sphi 0, %s70
      %s87 = sphi 0, %s71
      %s93 = sphi 0, %s95
      %s96 = sphi 0, %s93
      %s97 = sphi 0, %s96
      %s113 = sphi 0, %s97
      %s119 = sphi 0, %s121
      %s122 = sphi 0, %s119
      %s123 = sphi 0, %s122
      %s139 = sphi 0, %s123
      %s143 = sphi 0, %s143
      %s145 = sphi 0, %s143
      %s146 = sphi 0, %s145
      %s160 = sphi 0, %s146
      %s166 = sphi 0, %s168
      %s169 = sphi 0, %s166
      %s170 = sphi 0, %s169
      %s186 = sphi 0, %s170
    $region4: #{chebnet_forward.3} parent=1 // loop_header_branch
      %20 = sbr.rel (%p18) target = $region8
    $region5: #{chebnet_forward.3} parent=1 // loop_body
      %s22 = ssub.s32 %s17, 1
      %s23 = ssub.s32 %s17, 2
      %s30 = sadd.s32 1, %s25
      %p31 = scmp.ge.s32.totalorder %s30, 1
      %s32 = scalar_select %p31, 0, %s30
      %s33 = sadd.s32 1, %s24
      %s34 = scalar_select %p31, %s33, %s24
      %p35 = scmp.ge.s32.totalorder %s34, 2
      %s36 = scalar_select %p35, 0, %s34
      %s37 = ssub.s32 %s25, %s32
      %p38 = scmp.eq.s32.totalorder %s37, 0
      %s40 = sadd.s32 %s39, 1
      %s41 = scalar_select %p38, %s39, %s40
      %p44 = pneg %p38
      %p45 = scmp.eq.s32.totalorder %s17, 1
      %p46 = por %p44, %p45
      %p47 = scmp.ne.s32.totalorder %s39, %s42
      %p48 = scmp.eq.s32.totalorder %s17, 0
      %p49 = por %p47, %p48
      %p50 = scmp.ne.s32.totalorder %s39, %s42
      %p51 = scmp.eq.s32.totalorder %s22, 1
      %p52 = por %p50, %p51
      %p53 = scmp.ne.s32.totalorder %s42, %s43
      %p54 = scmp.eq.s32.totalorder %s22, 0
      %p55 = por %p53, %p54
      %p56 = scmp.ne.s32.totalorder %s42, %s43
      %p57 = scmp.eq.s32.totalorder %s23, 1
      %p58 = por %p56, %p57
      %p60 = scmp.ne.s32.totalorder %s43, %s59
      %p61 = scmp.eq.s32.totalorder %s23, 0
      %p62 = por %p60, %p61
      %s63 = ssub.s32 %s25, %s32
      %s64 = ssub.s32 %s24, %s36
      %s65 = sor.u32 %s63, %s64
      %p66 = scmp.eq.s32.totalorder %s65, 0
      %s68 = sadd.s32 %s67, 1
      %s69 = scalar_select %p66, %s67, %s68
      %p72 = pneg %p66
      %p73 = scmp.eq.s32.totalorder %s17, 1
      %p74 = por %p72, %p73
      %p75 = scmp.ne.s32.totalorder %s67, %s70
      %p76 = scmp.eq.s32.totalorder %s17, 0
      %p77 = por %p75, %p76
      %p78 = scmp.ne.s32.totalorder %s67, %s70
      %p79 = scmp.eq.s32.totalorder %s22, 1
      %p80 = por %p78, %p79
      %p81 = scmp.ne.s32.totalorder %s70, %s71
      %p82 = scmp.eq.s32.totalorder %s22, 0
      %p83 = por %p81, %p82
      %p84 = scmp.ne.s32.totalorder %s70, %s71
      %p85 = scmp.eq.s32.totalorder %s23, 1
      %p86 = por %p84, %p85
      %p88 = scmp.ne.s32.totalorder %s71, %s87
      %p89 = scmp.eq.s32.totalorder %s23, 0
      %p90 = por %p88, %p89
      %s91 = ssub.s32 %s24, %s36
      %p92 = scmp.eq.s32.totalorder %s91, 0
      %s94 = sadd.s32 %s93, 1
      %s95 = scalar_select %p92, %s93, %s94
      %p98 = pneg %p92
      %p99 = scmp.eq.s32.totalorder %s17, 1
      %p100 = por %p98, %p99
      %p101 = scmp.ne.s32.totalorder %s93, %s96
      %p102 = scmp.eq.s32.totalorder %s17, 0
      %p103 = por %p101, %p102
      %p104 = scmp.ne.s32.totalorder %s93, %s96
      %p105 = scmp.eq.s32.totalorder %s22, 1
      %p106 = por %p104, %p105
      %p107 = scmp.ne.s32.totalorder %s96, %s97
      %p108 = scmp.eq.s32.totalorder %s22, 0
      %p109 = por %p107, %p108
      %p110 = scmp.ne.s32.totalorder %s96, %s97
      %p111 = scmp.eq.s32.totalorder %s23, 1
      %p112 = por %p110, %p111
      %p114 = scmp.ne.s32.totalorder %s97, %s113
      %p115 = scmp.eq.s32.totalorder %s23, 0
      %p116 = por %p114, %p115
      %s117 = ssub.s32 %s24, %s36
      %p118 = scmp.eq.s32.totalorder %s117, 0
      %s120 = sadd.s32 %s119, 1
      %s121 = scalar_select %p118, %s119, %s120
      %p124 = pneg %p118
      %p125 = scmp.eq.s32.totalorder %s17, 1
      %p126 = por %p124, %p125
      %p127 = scmp.ne.s32.totalorder %s119, %s122
      %p128 = scmp.eq.s32.totalorder %s17, 0
      %p129 = por %p127, %p128
      %p130 = scmp.ne.s32.totalorder %s119, %s122
      %p131 = scmp.eq.s32.totalorder %s22, 1
      %p132 = por %p130, %p131
      %p133 = scmp.ne.s32.totalorder %s122, %s123
      %p134 = scmp.eq.s32.totalorder %s22, 0
      %p135 = por %p133, %p134
      %p136 = scmp.ne.s32.totalorder %s122, %s123
      %p137 = scmp.eq.s32.totalorder %s23, 1
      %p138 = por %p136, %p137
      %p140 = scmp.ne.s32.totalorder %s123, %s139
      %p141 = scmp.eq.s32.totalorder %s23, 0
      %p142 = por %p140, %p141
      %s144 = sadd.s32 %s143, 1
      %p147 = scmp.eq.s32.totalorder %s17, 1
      %p148 = scmp.ne.s32.totalorder %s143, %s145
      %p149 = scmp.eq.s32.totalorder %s17, 0
      %p150 = por %p148, %p149
      %p151 = scmp.ne.s32.totalorder %s143, %s145
      %p152 = scmp.eq.s32.totalorder %s22, 1
      %p153 = por %p151, %p152
      %p154 = scmp.ne.s32.totalorder %s145, %s146
      %p155 = scmp.eq.s32.totalorder %s22, 0
      %p156 = por %p154, %p155
      %p157 = scmp.ne.s32.totalorder %s145, %s146
      %p158 = scmp.eq.s32.totalorder %s23, 1
      %p159 = por %p157, %p158
      %p161 = scmp.ne.s32.totalorder %s146, %s160
      %p162 = scmp.eq.s32.totalorder %s23, 0
      %p163 = por %p161, %p162
      %s164 = ssub.s32 %s24, %s36
      %p165 = scmp.eq.s32.totalorder %s164, 0
      %s167 = sadd.s32 %s166, 1
      %s168 = scalar_select %p165, %s166, %s167
      %p171 = pneg %p165
      %p172 = scmp.eq.s32.totalorder %s17, 1
      %p173 = por %p171, %p172
      %p174 = scmp.ne.s32.totalorder %s166, %s169
      %p175 = scmp.eq.s32.totalorder %s17, 0
      %p176 = por %p174, %p175
      %p177 = scmp.ne.s32.totalorder %s166, %s169
      %p178 = scmp.eq.s32.totalorder %s22, 1
      %p179 = por %p177, %p178
      %p180 = scmp.ne.s32.totalorder %s169, %s170
      %p181 = scmp.eq.s32.totalorder %s22, 0
      %p182 = por %p180, %p181
      %p183 = scmp.ne.s32.totalorder %s169, %s170
      %p184 = scmp.eq.s32.totalorder %s23, 1
      %p185 = por %p183, %p184
      %p187 = scmp.ne.s32.totalorder %s170, %s186
      %p188 = scmp.eq.s32.totalorder %s23, 0
      %p189 = por %p187, %p188
      %p190 = scmp.le.s32.totalorder 1, %s17
      %p191 = scmp.lt.s32.totalorder %s17, 3
      %p192 = pnand %p190, %p191
      %p193 = pneg %p192
      // Predicated region
      $region9: #{chebnet_forward.3} parent=5 // pred_check
        _
      $region10: #{chebnet_forward.3} parent=5 // pred_check_branch
        %195 = sbr.rel (%p192) target = $region12
      $region11: #{chebnet_forward.3} parent=5 // pred_region
        %s196 = ssub.s32 %s17, 1
        // Predicated region
        $region13: #{chebnet_forward.3} parent=11 // pred_check
          %p197 = pneg %p55
        $region14: #{chebnet_forward.3} parent=11 // pred_check_branch
          %199 = sbr.rel (%p197) target = $region16
        $region15: #{chebnet_forward.3} parent=11 // pred_region
          %s200 = smul.u32 8, %s27
          %p201 = scmp.lt.s32.totalorder %s200, 7
          %s202 = scalar_select %p201, %s200, 7
          %s203 = smul.addr %s202, 2
          %s204 = scalar_lea.vmem %s0, %s203
          %s205 = smul.u32 8, %s27
        $region16: #{chebnet_forward.3} parent=11 // pred_fallthru
          _
        // Predicated region
        $region17: #{chebnet_forward.3} parent=11 // pred_check
          %p206 = pneg %p156
        $region18: #{chebnet_forward.3} parent=11 // pred_check_branch
          %208 = sbr.rel (%p206) target = $region20
        $region19: #{chebnet_forward.3} parent=11 // pred_region
          _
        $region20: #{chebnet_forward.3} parent=11 // pred_fallthru
          _
      $region12: #{chebnet_forward.3} parent=5 // pred_fallthru
        _
      %p209 = scmp.lt.s32.totalorder %s17, 2
      // Predicated region
      $region21: #{chebnet_forward.3} parent=5 // pred_check
        %p210 = pneg %p209
      $region22: #{chebnet_forward.3} parent=5 // pred_check_branch
        %212 = sbr.rel (%p210) target = $region24
      $region23: #{chebnet_forward.3} parent=5 // pred_region
        // Predicated region
        $region25: #{chebnet_forward.3} parent=23 // pred_check
          %p213 = pneg %p77
        $region26: #{chebnet_forward.3} parent=23 // pred_check_branch
          %215 = sbr.rel (%p213) target = $region28
        $region27: #{chebnet_forward.3} parent=23 // pred_region
          %s216 = sand.u32 %s67, 1
          %s217 = scalar_lea.sflag [#allocation4], %s216
          %s218 = sand.u32 %s67, 1
          %s219 = smul.addr %s218, 2048
          %s220 = scalar_lea.vmem [#allocation3], %s219
          %s221 = smul.u32 128, %s25
          %s222 = smul.u32 2, %s24
          %s224 = ssub.s32 32768, 32768
          %225 = vsyncadd %s217, %s224
          %s226 = smul.addr %s221, 4
          %s227 = sadd.s32 %s222, %s226
          %s228 = smul.addr %s227, 128
          %s229 = scalar_lea.hbm %s1, %s228
          %s230 = sshll.u32 %s220, 4
          %s231 = int_to_ptr.vmem [resolvable:$true] %s230
          %236 = dma.hbm_to_vmem [thread:$0]  %s229, 32768, %s231, %s217, 512, 256, 16
        $region28: #{chebnet_forward.3} parent=23 // pred_fallthru
          _
        // Predicated region
        $region29: #{chebnet_forward.3} parent=23 // pred_check
          %p237 = pneg %p103
        $region30: #{chebnet_forward.3} parent=23 // pred_check_branch
          %239 = sbr.rel (%p237) target = $region32
        $region31: #{chebnet_forward.3} parent=23 // pred_region
          %s240 = sand.u32 %s17, 1
          %s241 = scalar_lea.sflag [#allocation6], %s240
          %s242 = sand.u32 %s93, 1
          %s243 = smul.addr %s242, 2
          %s244 = scalar_lea.vmem [#allocation5], %s243
          %s245 = smul.u32 2, %s24
          %s247 = ssub.s32 32, 32
          %248 = vsyncadd %s241, %s247
          %s249 = smul.addr %s245, 16
          %s250 = scalar_lea.hbm %s2, %s249
          %s252 = sshll.u32 %s244, 4
          %s253 = int_to_ptr.vmem [resolvable:$true] %s252
          %255 = dma.hbm_to_vmem [thread:$0]  %s250, 32, %s253, %s241
        $region32: #{chebnet_forward.3} parent=23 // pred_fallthru
          _
        // Predicated region
        $region33: #{chebnet_forward.3} parent=23 // pred_check
          %p256 = pneg %p129
        $region34: #{chebnet_forward.3} parent=23 // pred_check_branch
          %258 = sbr.rel (%p256) target = $region36
        $region35: #{chebnet_forward.3} parent=23 // pred_region
          %s259 = sand.u32 %s17, 1
          %s260 = scalar_lea.sflag [#allocation6], %s259
          %s261 = sand.u32 %s119, 1
          %s262 = smul.addr %s261, 256
          %s263 = scalar_lea.vmem [#allocation7], %s262
          %s264 = smul.u32 32, %s24
          %s266 = ssub.s32 4096, 4096
          %267 = vsyncadd %s260, %s266
          %s268 = smul.addr %s264, 128
          %s269 = scalar_lea.hbm %s3, %s268
          %s270 = sshll.u32 %s263, 4
          %s271 = int_to_ptr.vmem [resolvable:$true] %s270
          %276 = dma.hbm_to_vmem [thread:$0]  %s269, 4096, %s271, %s260, 128, 128, 8
        $region36: #{chebnet_forward.3} parent=23 // pred_fallthru
          _
      $region24: #{chebnet_forward.3} parent=5 // pred_fallthru
        _
      %p277 = scmp.le.s32.totalorder 1, %s17
      %p278 = scmp.lt.s32.totalorder %s17, 3
      %p279 = pnand %p277, %p278
      %p280 = pneg %p279
      // Predicated region
      $region37: #{chebnet_forward.3} parent=5 // pred_check
        _
      $region38: #{chebnet_forward.3} parent=5 // pred_check_branch
        %282 = sbr.rel (%p279) target = $region40
      $region39: #{chebnet_forward.3} parent=5 // pred_region
        %s283 = ssub.s32 %s17, 1
        %s284 = sand.u32 %s70, 1
        %s285 = scalar_lea.sflag [#allocation4], %s284
        %s286 = sand.u32 %s70, 1
        %s287 = smul.addr %s286, 2048
        %s288 = scalar_lea.vmem [#allocation3], %s287
        // Predicated region
        $region41: #{chebnet_forward.3} parent=39 // pred_check
          %p289 = pneg %p83
        $region42: #{chebnet_forward.3} parent=39 // pred_check_branch
          %291 = sbr.rel (%p289) target = $region44
        $region43: #{chebnet_forward.3} parent=39 // pred_region
          %292 = dma.done %s285, 32768
        $region44: #{chebnet_forward.3} parent=39 // pred_fallthru
          _
        %s293 = sand.u32 %s22, 1
        %s294 = scalar_lea.sflag [#allocation6], %s293
        %s295 = sand.u32 %s96, 1
        %s296 = smul.addr %s295, 2
        %s297 = scalar_lea.vmem [#allocation5], %s296
        // Predicated region
        $region45: #{chebnet_forward.3} parent=39 // pred_check
          %p298 = pneg %p109
        $region46: #{chebnet_forward.3} parent=39 // pred_check_branch
          %300 = sbr.rel (%p298) target = $region48
        $region47: #{chebnet_forward.3} parent=39 // pred_region
          %301 = dma.done %s294, 32
        $region48: #{chebnet_forward.3} parent=39 // pred_fallthru
          _
        %s302 = sand.u32 %s22, 1
        %s303 = scalar_lea.sflag [#allocation6], %s302
        %s304 = sand.u32 %s122, 1
        %s305 = smul.addr %s304, 256
        %s306 = scalar_lea.vmem [#allocation7], %s305
        // Predicated region
        $region49: #{chebnet_forward.3} parent=39 // pred_check
          %p307 = pneg %p135
        $region50: #{chebnet_forward.3} parent=39 // pred_check_branch
          %309 = sbr.rel (%p307) target = $region52
        $region51: #{chebnet_forward.3} parent=39 // pred_region
          %310 = dma.done %s303, 4096
        $region52: #{chebnet_forward.3} parent=39 // pred_fallthru
          _
        %s311 = smul.u32 8, %s27
        %p312 = scmp.lt.s32.totalorder %s311, 7
        %s313 = scalar_select %p312, %s311, 7
        %s314 = smul.addr %s313, 2
        %s315 = scalar_lea.vmem %s0, %s314
        %p316 = pneg %p55
        %p317 = pneg %p52
        %s318 = sand.u32 %s70, 1
        %s319 = scalar_lea.sflag [#allocation4], %s318
        %s320 = sand.u32 %s70, 1
        %s321 = smul.addr %s320, 2048
        %s322 = scalar_lea.vmem [#allocation3], %s321
        %p323 = pneg %p83
        %p324 = pneg %p80
        %s325 = sand.u32 %s22, 1
        %s326 = scalar_lea.sflag [#allocation6], %s325
        %s327 = sand.u32 %s96, 1
        %s328 = smul.addr %s327, 2
        %s329 = scalar_lea.vmem [#allocation5], %s328
        %p330 = pneg %p109
        %p331 = pneg %p106
        %s332 = sand.u32 %s22, 1
        %s333 = scalar_lea.sflag [#allocation6], %s332
        %s334 = sand.u32 %s122, 1
        %s335 = smul.addr %s334, 256
        %s336 = scalar_lea.vmem [#allocation7], %s335
        %p337 = pneg %p135
        %p338 = pneg %p132
        %p339 = pneg %p156
        %p340 = pneg %p153
        %p341 = pneg %p182
        %p342 = pneg %p179
        %p343 = scmp.lt.s32.totalorder %s26, 1
        %s344 = scalar_select %p343, %s26, 1
        %s345 = smul.addr %s344, 2
        %s346 = scalar_lea.vmem %s5, %s345
        %s347 = smul.u32 8, %s27
        %p348 = scmp.lt.s32.totalorder %s347, 7
        %s349 = scalar_select %p348, %s347, 7
        %s350 = smul.addr %s349, 2
        %s351 = scalar_lea.vmem %s0, %s350
        %s352 = smul.u32 8, %s27
        %s353 = smul.u32 128, %s27
        %s354 = smul.u32 2, %s26
        %s355 = smul.u32 2, %s26
        %s356 = smul.u32 32, %s26
        %p357 = scmp.lt.s32.totalorder %s26, 1
        %s358 = scalar_select %p357, %s26, 1
        %s359 = smul.addr %s358, 2
        %s360 = scalar_lea.vmem %s5, %s359
        %p361 = scmp.eq.s32.totalorder %s27, 0
        // Predicated region
        $region53: #{chebnet_forward.3} parent=39 // pred_check
          %p362 = pneg %p361
        $region54: #{chebnet_forward.3} parent=39 // pred_check_branch
          %364 = sbr.rel (%p362) target = $region56
        $region55: #{chebnet_forward.3} parent=39 // pred_region
          %365 = vst [vmem:[#allocation2] sm:$0xf] 0.0
        $region56: #{chebnet_forward.3} parent=39 // pred_fallthru
          _
        %v366 = vld [vmem:[#allocation2] sm:$0xf]
        %v367 = vld [vmem:[%s351] sm:$0xff]
        %v368 = vld [vmem:[%s351 + $0x8] sm:$0xff]
        %v369 = vld [vmem:[%s288] sm:$0xff]
        %v370 = vld [vmem:[%s288 + $0x8] sm:$0xff]
        %v371 = vld [vmem:[%s288 + $0x10] sm:$0xff]
        %v372 = vld [vmem:[%s288 + $0x18] sm:$0xff]
        %v373 = vld [vmem:[%s288 + $0x20] sm:$0xff]
        %v374 = vld [vmem:[%s288 + $0x28] sm:$0xff]
        %v375 = vld [vmem:[%s288 + $0x30] sm:$0xff]
        %v376 = vld [vmem:[%s288 + $0x38] sm:$0xff]
        %v377 = vld [vmem:[%s288 + $0x40] sm:$0xff]
        %v378 = vld [vmem:[%s288 + $0x48] sm:$0xff]
        %v379 = vld [vmem:[%s288 + $0x50] sm:$0xff]
        %v380 = vld [vmem:[%s288 + $0x58] sm:$0xff]
        %v381 = vld [vmem:[%s288 + $0x60] sm:$0xff]
        %v382 = vld [vmem:[%s288 + $0x68] sm:$0xff]
        %v383 = vld [vmem:[%s288 + $0x70] sm:$0xff]
        %v384 = vld [vmem:[%s288 + $0x78] sm:$0xff]
        %v385 = vld [vmem:[%s288 + $0x80] sm:$0xff]
        %v386 = vld [vmem:[%s288 + $0x88] sm:$0xff]
        %v387 = vld [vmem:[%s288 + $0x90] sm:$0xff]
        %v388 = vld [vmem:[%s288 + $0x98] sm:$0xff]
        %v389 = vld [vmem:[%s288 + $0xa0] sm:$0xff]
        %v390 = vld [vmem:[%s288 + $0xa8] sm:$0xff]
        %v391 = vld [vmem:[%s288 + $0xb0] sm:$0xff]
        %v392 = vld [vmem:[%s288 + $0xb8] sm:$0xff]
        %v393 = vld [vmem:[%s288 + $0xc0] sm:$0xff]
        %v394 = vld [vmem:[%s288 + $0xc8] sm:$0xff]
        %v395 = vld [vmem:[%s288 + $0xd0] sm:$0xff]
        %v396 = vld [vmem:[%s288 + $0xd8] sm:$0xff]
        %v397 = vld [vmem:[%s288 + $0xe0] sm:$0xff]
        %v398 = vld [vmem:[%s288 + $0xe8] sm:$0xff]
        %v399 = vld [vmem:[%s288 + $0xf0] sm:$0xff]
        %v400 = vld [vmem:[%s288 + $0xf8] sm:$0xff]
        %v401 = vld [vmem:[%s288 + $0x100] sm:$0xff]
        %v402 = vld [vmem:[%s288 + $0x108] sm:$0xff]
        %v403 = vld [vmem:[%s288 + $0x110] sm:$0xff]
        %v404 = vld [vmem:[%s288 + $0x118] sm:$0xff]
        %v405 = vld [vmem:[%s288 + $0x120] sm:$0xff]
        %v406 = vld [vmem:[%s288 + $0x128] sm:$0xff]
        %v407 = vld [vmem:[%s288 + $0x130] sm:$0xff]
        %v408 = vld [vmem:[%s288 + $0x138] sm:$0xff]
        %v409 = vld [vmem:[%s288 + $0x140] sm:$0xff]
        %v410 = vld [vmem:[%s288 + $0x148] sm:$0xff]
        %v411 = vld [vmem:[%s288 + $0x150] sm:$0xff]
        %v412 = vld [vmem:[%s288 + $0x158] sm:$0xff]
        %v413 = vld [vmem:[%s288 + $0x160] sm:$0xff]
        %v414 = vld [vmem:[%s288 + $0x168] sm:$0xff]
        %v415 = vld [vmem:[%s288 + $0x170] sm:$0xff]
        %v416 = vld [vmem:[%s288 + $0x178] sm:$0xff]
        %v417 = vld [vmem:[%s288 + $0x180] sm:$0xff]
        %v418 = vld [vmem:[%s288 + $0x188] sm:$0xff]
        %v419 = vld [vmem:[%s288 + $0x190] sm:$0xff]
        %v420 = vld [vmem:[%s288 + $0x198] sm:$0xff]
        %v421 = vld [vmem:[%s288 + $0x1a0] sm:$0xff]
        %v422 = vld [vmem:[%s288 + $0x1a8] sm:$0xff]
        %v423 = vld [vmem:[%s288 + $0x1b0] sm:$0xff]
        %v424 = vld [vmem:[%s288 + $0x1b8] sm:$0xff]
        %v425 = vld [vmem:[%s288 + $0x1c0] sm:$0xff]
        %v426 = vld [vmem:[%s288 + $0x1c8] sm:$0xff]
        %v427 = vld [vmem:[%s288 + $0x1d0] sm:$0xff]
        %v428 = vld [vmem:[%s288 + $0x1d8] sm:$0xff]
        %v429 = vld [vmem:[%s288 + $0x1e0] sm:$0xff]
        %v430 = vld [vmem:[%s288 + $0x1e8] sm:$0xff]
        %v431 = vld [vmem:[%s288 + $0x1f0] sm:$0xff]
        %v432 = vld [vmem:[%s288 + $0x1f8] sm:$0xff]
        %v433 = vld [vmem:[%s288 + $0x200] sm:$0xff]
        %v434 = vld [vmem:[%s288 + $0x208] sm:$0xff]
        %v435 = vld [vmem:[%s288 + $0x210] sm:$0xff]
        %v436 = vld [vmem:[%s288 + $0x218] sm:$0xff]
        %v437 = vld [vmem:[%s288 + $0x220] sm:$0xff]
        %v438 = vld [vmem:[%s288 + $0x228] sm:$0xff]
        %v439 = vld [vmem:[%s288 + $0x230] sm:$0xff]
        %v440 = vld [vmem:[%s288 + $0x238] sm:$0xff]
        %v441 = vld [vmem:[%s288 + $0x240] sm:$0xff]
        %v442 = vld [vmem:[%s288 + $0x248] sm:$0xff]
        %v443 = vld [vmem:[%s288 + $0x250] sm:$0xff]
        %v444 = vld [vmem:[%s288 + $0x258] sm:$0xff]
        %v445 = vld [vmem:[%s288 + $0x260] sm:$0xff]
        %v446 = vld [vmem:[%s288 + $0x268] sm:$0xff]
        %v447 = vld [vmem:[%s288 + $0x270] sm:$0xff]
        %v448 = vld [vmem:[%s288 + $0x278] sm:$0xff]
        %v449 = vld [vmem:[%s288 + $0x280] sm:$0xff]
        %v450 = vld [vmem:[%s288 + $0x288] sm:$0xff]
        %v451 = vld [vmem:[%s288 + $0x290] sm:$0xff]
        %v452 = vld [vmem:[%s288 + $0x298] sm:$0xff]
        %v453 = vld [vmem:[%s288 + $0x2a0] sm:$0xff]
        %v454 = vld [vmem:[%s288 + $0x2a8] sm:$0xff]
        %v455 = vld [vmem:[%s288 + $0x2b0] sm:$0xff]
        %v456 = vld [vmem:[%s288 + $0x2b8] sm:$0xff]
        %v457 = vld [vmem:[%s288 + $0x2c0] sm:$0xff]
        %v458 = vld [vmem:[%s288 + $0x2c8] sm:$0xff]
        %v459 = vld [vmem:[%s288 + $0x2d0] sm:$0xff]
        %v460 = vld [vmem:[%s288 + $0x2d8] sm:$0xff]
        %v461 = vld [vmem:[%s288 + $0x2e0] sm:$0xff]
        %v462 = vld [vmem:[%s288 + $0x2e8] sm:$0xff]
        %v463 = vld [vmem:[%s288 + $0x2f0] sm:$0xff]
        %v464 = vld [vmem:[%s288 + $0x2f8] sm:$0xff]
        %v465 = vld [vmem:[%s288 + $0x300] sm:$0xff]
        %v466 = vld [vmem:[%s288 + $0x308] sm:$0xff]
        %v467 = vld [vmem:[%s288 + $0x310] sm:$0xff]
        %v468 = vld [vmem:[%s288 + $0x318] sm:$0xff]
        %v469 = vld [vmem:[%s288 + $0x320] sm:$0xff]
        %v470 = vld [vmem:[%s288 + $0x328] sm:$0xff]
        %v471 = vld [vmem:[%s288 + $0x330] sm:$0xff]
        %v472 = vld [vmem:[%s288 + $0x338] sm:$0xff]
        %v473 = vld [vmem:[%s288 + $0x340] sm:$0xff]
        %v474 = vld [vmem:[%s288 + $0x348] sm:$0xff]
        %v475 = vld [vmem:[%s288 + $0x350] sm:$0xff]
        %v476 = vld [vmem:[%s288 + $0x358] sm:$0xff]
        %v477 = vld [vmem:[%s288 + $0x360] sm:$0xff]
        %v478 = vld [vmem:[%s288 + $0x368] sm:$0xff]
        %v479 = vld [vmem:[%s288 + $0x370] sm:$0xff]
        %v480 = vld [vmem:[%s288 + $0x378] sm:$0xff]
        %v481 = vld [vmem:[%s288 + $0x380] sm:$0xff]
        %v482 = vld [vmem:[%s288 + $0x388] sm:$0xff]
        %v483 = vld [vmem:[%s288 + $0x390] sm:$0xff]
        %v484 = vld [vmem:[%s288 + $0x398] sm:$0xff]
        %v485 = vld [vmem:[%s288 + $0x3a0] sm:$0xff]
        %v486 = vld [vmem:[%s288 + $0x3a8] sm:$0xff]
        %v487 = vld [vmem:[%s288 + $0x3b0] sm:$0xff]
        %v488 = vld [vmem:[%s288 + $0x3b8] sm:$0xff]
        %v489 = vld [vmem:[%s288 + $0x3c0] sm:$0xff]
        %v490 = vld [vmem:[%s288 + $0x3c8] sm:$0xff]
        %v491 = vld [vmem:[%s288 + $0x3d0] sm:$0xff]
        %v492 = vld [vmem:[%s288 + $0x3d8] sm:$0xff]
        %v493 = vld [vmem:[%s288 + $0x3e0] sm:$0xff]
        %v494 = vld [vmem:[%s288 + $0x3e8] sm:$0xff]
        %v495 = vld [vmem:[%s288 + $0x3f0] sm:$0xff]
        %v496 = vld [vmem:[%s288 + $0x3f8] sm:$0xff]
        %v497 = vld [vmem:[%s288 + $0x400] sm:$0xff]
        %v498 = vld [vmem:[%s288 + $0x408] sm:$0xff]
        %v499 = vld [vmem:[%s288 + $0x410] sm:$0xff]
        %v500 = vld [vmem:[%s288 + $0x418] sm:$0xff]
        %v501 = vld [vmem:[%s288 + $0x420] sm:$0xff]
        %v502 = vld [vmem:[%s288 + $0x428] sm:$0xff]
        %v503 = vld [vmem:[%s288 + $0x430] sm:$0xff]
        %v504 = vld [vmem:[%s288 + $0x438] sm:$0xff]
        %v505 = vld [vmem:[%s288 + $0x440] sm:$0xff]
        %v506 = vld [vmem:[%s288 + $0x448] sm:$0xff]
        %v507 = vld [vmem:[%s288 + $0x450] sm:$0xff]
        %v508 = vld [vmem:[%s288 + $0x458] sm:$0xff]
        %v509 = vld [vmem:[%s288 + $0x460] sm:$0xff]
        %v510 = vld [vmem:[%s288 + $0x468] sm:$0xff]
        %v511 = vld [vmem:[%s288 + $0x470] sm:$0xff]
        %v512 = vld [vmem:[%s288 + $0x478] sm:$0xff]
        %v513 = vld [vmem:[%s288 + $0x480] sm:$0xff]
        %v514 = vld [vmem:[%s288 + $0x488] sm:$0xff]
        %v515 = vld [vmem:[%s288 + $0x490] sm:$0xff]
        %v516 = vld [vmem:[%s288 + $0x498] sm:$0xff]
        %v517 = vld [vmem:[%s288 + $0x4a0] sm:$0xff]
        %v518 = vld [vmem:[%s288 + $0x4a8] sm:$0xff]
        %v519 = vld [vmem:[%s288 + $0x4b0] sm:$0xff]
        %v520 = vld [vmem:[%s288 + $0x4b8] sm:$0xff]
        %v521 = vld [vmem:[%s288 + $0x4c0] sm:$0xff]
        %v522 = vld [vmem:[%s288 + $0x4c8] sm:$0xff]
        %v523 = vld [vmem:[%s288 + $0x4d0] sm:$0xff]
        %v524 = vld [vmem:[%s288 + $0x4d8] sm:$0xff]
        %v525 = vld [vmem:[%s288 + $0x4e0] sm:$0xff]
        %v526 = vld [vmem:[%s288 + $0x4e8] sm:$0xff]
        %v527 = vld [vmem:[%s288 + $0x4f0] sm:$0xff]
        %v528 = vld [vmem:[%s288 + $0x4f8] sm:$0xff]
        %v529 = vld [vmem:[%s288 + $0x500] sm:$0xff]
        %v530 = vld [vmem:[%s288 + $0x508] sm:$0xff]
        %v531 = vld [vmem:[%s288 + $0x510] sm:$0xff]
        %v532 = vld [vmem:[%s288 + $0x518] sm:$0xff]
        %v533 = vld [vmem:[%s288 + $0x520] sm:$0xff]
        %v534 = vld [vmem:[%s288 + $0x528] sm:$0xff]
        %v535 = vld [vmem:[%s288 + $0x530] sm:$0xff]
        %v536 = vld [vmem:[%s288 + $0x538] sm:$0xff]
        %v537 = vld [vmem:[%s288 + $0x540] sm:$0xff]
        %v538 = vld [vmem:[%s288 + $0x548] sm:$0xff]
        %v539 = vld [vmem:[%s288 + $0x550] sm:$0xff]
        %v540 = vld [vmem:[%s288 + $0x558] sm:$0xff]
        %v541 = vld [vmem:[%s288 + $0x560] sm:$0xff]
        %v542 = vld [vmem:[%s288 + $0x568] sm:$0xff]
        %v543 = vld [vmem:[%s288 + $0x570] sm:$0xff]
        %v544 = vld [vmem:[%s288 + $0x578] sm:$0xff]
        %v545 = vld [vmem:[%s288 + $0x580] sm:$0xff]
        %v546 = vld [vmem:[%s288 + $0x588] sm:$0xff]
        %v547 = vld [vmem:[%s288 + $0x590] sm:$0xff]
        %v548 = vld [vmem:[%s288 + $0x598] sm:$0xff]
        %v549 = vld [vmem:[%s288 + $0x5a0] sm:$0xff]
        %v550 = vld [vmem:[%s288 + $0x5a8] sm:$0xff]
        %v551 = vld [vmem:[%s288 + $0x5b0] sm:$0xff]
        %v552 = vld [vmem:[%s288 + $0x5b8] sm:$0xff]
        %v553 = vld [vmem:[%s288 + $0x5c0] sm:$0xff]
        %v554 = vld [vmem:[%s288 + $0x5c8] sm:$0xff]
        %v555 = vld [vmem:[%s288 + $0x5d0] sm:$0xff]
        %v556 = vld [vmem:[%s288 + $0x5d8] sm:$0xff]
        %v557 = vld [vmem:[%s288 + $0x5e0] sm:$0xff]
        %v558 = vld [vmem:[%s288 + $0x5e8] sm:$0xff]
        %v559 = vld [vmem:[%s288 + $0x5f0] sm:$0xff]
        %v560 = vld [vmem:[%s288 + $0x5f8] sm:$0xff]
        %v561 = vld [vmem:[%s288 + $0x600] sm:$0xff]
        %v562 = vld [vmem:[%s288 + $0x608] sm:$0xff]
        %v563 = vld [vmem:[%s288 + $0x610] sm:$0xff]
        %v564 = vld [vmem:[%s288 + $0x618] sm:$0xff]
        %v565 = vld [vmem:[%s288 + $0x620] sm:$0xff]
        %v566 = vld [vmem:[%s288 + $0x628] sm:$0xff]
        %v567 = vld [vmem:[%s288 + $0x630] sm:$0xff]
        %v568 = vld [vmem:[%s288 + $0x638] sm:$0xff]
        %v569 = vld [vmem:[%s288 + $0x640] sm:$0xff]
        %v570 = vld [vmem:[%s288 + $0x648] sm:$0xff]
        %v571 = vld [vmem:[%s288 + $0x650] sm:$0xff]
        %v572 = vld [vmem:[%s288 + $0x658] sm:$0xff]
        %v573 = vld [vmem:[%s288 + $0x660] sm:$0xff]
        %v574 = vld [vmem:[%s288 + $0x668] sm:$0xff]
        %v575 = vld [vmem:[%s288 + $0x670] sm:$0xff]
        %v576 = vld [vmem:[%s288 + $0x678] sm:$0xff]
        %v577 = vld [vmem:[%s288 + $0x680] sm:$0xff]
        %v578 = vld [vmem:[%s288 + $0x688] sm:$0xff]
        %v579 = vld [vmem:[%s288 + $0x690] sm:$0xff]
        %v580 = vld [vmem:[%s288 + $0x698] sm:$0xff]
        %v581 = vld [vmem:[%s288 + $0x6a0] sm:$0xff]
        %v582 = vld [vmem:[%s288 + $0x6a8] sm:$0xff]
        %v583 = vld [vmem:[%s288 + $0x6b0] sm:$0xff]
        %v584 = vld [vmem:[%s288 + $0x6b8] sm:$0xff]
        %v585 = vld [vmem:[%s288 + $0x6c0] sm:$0xff]
        %v586 = vld [vmem:[%s288 + $0x6c8] sm:$0xff]
        %v587 = vld [vmem:[%s288 + $0x6d0] sm:$0xff]
        %v588 = vld [vmem:[%s288 + $0x6d8] sm:$0xff]
        %v589 = vld [vmem:[%s288 + $0x6e0] sm:$0xff]
        %v590 = vld [vmem:[%s288 + $0x6e8] sm:$0xff]
        %v591 = vld [vmem:[%s288 + $0x6f0] sm:$0xff]
        %v592 = vld [vmem:[%s288 + $0x6f8] sm:$0xff]
        %v593 = vld [vmem:[%s288 + $0x700] sm:$0xff]
        %v594 = vld [vmem:[%s288 + $0x708] sm:$0xff]
        %v595 = vld [vmem:[%s288 + $0x710] sm:$0xff]
        %v596 = vld [vmem:[%s288 + $0x718] sm:$0xff]
        %v597 = vld [vmem:[%s288 + $0x720] sm:$0xff]
        %v598 = vld [vmem:[%s288 + $0x728] sm:$0xff]
        %v599 = vld [vmem:[%s288 + $0x730] sm:$0xff]
        %v600 = vld [vmem:[%s288 + $0x738] sm:$0xff]
        %v601 = vld [vmem:[%s288 + $0x740] sm:$0xff]
        %v602 = vld [vmem:[%s288 + $0x748] sm:$0xff]
        %v603 = vld [vmem:[%s288 + $0x750] sm:$0xff]
        %v604 = vld [vmem:[%s288 + $0x758] sm:$0xff]
        %v605 = vld [vmem:[%s288 + $0x760] sm:$0xff]
        %v606 = vld [vmem:[%s288 + $0x768] sm:$0xff]
        %v607 = vld [vmem:[%s288 + $0x770] sm:$0xff]
        %v608 = vld [vmem:[%s288 + $0x778] sm:$0xff]
        %v609 = vld [vmem:[%s288 + $0x780] sm:$0xff]
        %v610 = vld [vmem:[%s288 + $0x788] sm:$0xff]
        %v611 = vld [vmem:[%s288 + $0x790] sm:$0xff]
        %v612 = vld [vmem:[%s288 + $0x798] sm:$0xff]
        %v613 = vld [vmem:[%s288 + $0x7a0] sm:$0xff]
        %v614 = vld [vmem:[%s288 + $0x7a8] sm:$0xff]
        %v615 = vld [vmem:[%s288 + $0x7b0] sm:$0xff]
        %v616 = vld [vmem:[%s288 + $0x7b8] sm:$0xff]
        %v617 = vld [vmem:[%s288 + $0x7c0] sm:$0xff]
        %v618 = vld [vmem:[%s288 + $0x7c8] sm:$0xff]
        %v619 = vld [vmem:[%s288 + $0x7d0] sm:$0xff]
        %v620 = vld [vmem:[%s288 + $0x7d8] sm:$0xff]
        %v621 = vld [vmem:[%s288 + $0x7e0] sm:$0xff]
        %v622 = vld [vmem:[%s288 + $0x7e8] sm:$0xff]
        %v623 = vld [vmem:[%s288 + $0x7f0] sm:$0xff]
        %v624 = vld [vmem:[%s288 + $0x7f8] sm:$0xff]
        %v627 = vcombine.high %v367, %v367
        %v629 = vunpack.c.l.s4 1983009808
        %v630 = vunpack.c.0.s8 %v629
        %v631 = vlaneseq
        %v632 = vshrl.u32 %v631, 7
        %v633 = vsub.s32 %v630, %v632
        %v634 = vrot.slane %v367, %v633
        %v636 = vunpack.c.l.s4 1983009808
        %v637 = vunpack.c.0.s8 %v636
        %v638 = vlaneseq
        %v639 = vshrl.u32 %v638, 7
        %v640 = vsub.s32 %v637, %v639
        %v641 = vrot.slane %v627, %v640
        %v642 = vcombine.high %v634, %v634
        %v643 = vcombine.high %v641, %v641
        %v644 = vcombine.high %v368, %v368
        %v646 = vunpack.c.l.s4 1983009808
        %v647 = vunpack.c.0.s8 %v646
        %v648 = vlaneseq
        %v649 = vshrl.u32 %v648, 7
        %v650 = vsub.s32 %v647, %v649
        %v651 = vrot.slane %v368, %v650
        %v653 = vunpack.c.l.s4 1983009808
        %v654 = vunpack.c.0.s8 %v653
        %v655 = vlaneseq
        %v656 = vshrl.u32 %v655, 7
        %v657 = vsub.s32 %v654, %v656
        %v658 = vrot.slane %v644, %v657
        %v659 = vcombine.high %v651, %v651
        %v660 = vcombine.high %v658, %v658
        %669 = vmatprep.subr.mxu0 %v370
        %670 = vmatpush1.msra.mxu0 %v369
        %671 = vmatprep.subr.mxu0 %v372
        %672 = vmatpush1.msra.mxu0 %v371
        %673 = vmatprep.subr.mxu0 %v374
        %674 = vmatpush1.msra.mxu0 %v373
        %675 = vmatprep.subr.mxu0 %v376
        %676 = vmatpush1.msra.mxu0 %v375
        %677 = vmatprep.subr.mxu0 %v378
        %678 = vmatpush1.msra.mxu0 %v377
        %679 = vmatprep.subr.mxu0 %v380
        %680 = vmatpush1.msra.mxu0 %v379
        %681 = vmatprep.subr.mxu0 %v382
        %682 = vmatpush1.msra.mxu0 %v381
        %683 = vmatprep.subr.mxu0 %v384
        %684 = vmatpush1.msra.mxu0 %v383
        %685 = vmatprep.subr.mxu0 %v386
        %686 = vmatpush1.msra.mxu0 %v385
        %687 = vmatprep.subr.mxu0 %v388
        %688 = vmatpush1.msra.mxu0 %v387
        %689 = vmatprep.subr.mxu0 %v390
        %690 = vmatpush1.msra.mxu0 %v389
        %691 = vmatprep.subr.mxu0 %v392
        %692 = vmatpush1.msra.mxu0 %v391
        %693 = vmatprep.subr.mxu0 %v394
        %694 = vmatpush1.msra.mxu0 %v393
        %695 = vmatprep.subr.mxu0 %v396
        %696 = vmatpush1.msra.mxu0 %v395
        %697 = vmatprep.subr.mxu0 %v398
        %698 = vmatpush1.msra.mxu0 %v397
        %699 = vmatprep.subr.mxu0 %v400
        %700 = vmatpush1.msra.mxu0 %v399
        %701 = vmatprep.subr.mxu0 %v402
        %702 = vmatpush1.msra.mxu0 %v401
        %703 = vmatprep.subr.mxu0 %v404
        %704 = vmatpush1.msra.mxu0 %v403
        %705 = vmatprep.subr.mxu0 %v406
        %706 = vmatpush1.msra.mxu0 %v405
        %707 = vmatprep.subr.mxu0 %v408
        %708 = vmatpush1.msra.mxu0 %v407
        %709 = vmatprep.subr.mxu0 %v410
        %710 = vmatpush1.msra.mxu0 %v409
        %711 = vmatprep.subr.mxu0 %v412
        %712 = vmatpush1.msra.mxu0 %v411
        %713 = vmatprep.subr.mxu0 %v414
        %714 = vmatpush1.msra.mxu0 %v413
        %715 = vmatprep.subr.mxu0 %v416
        %716 = vmatpush1.msra.mxu0 %v415
        %717 = vmatprep.subr.mxu0 %v418
        %718 = vmatpush1.msra.mxu0 %v417
        %719 = vmatprep.subr.mxu0 %v420
        %720 = vmatpush1.msra.mxu0 %v419
        %721 = vmatprep.subr.mxu0 %v422
        %722 = vmatpush1.msra.mxu0 %v421
        %723 = vmatprep.subr.mxu0 %v424
        %724 = vmatpush1.msra.mxu0 %v423
        %725 = vmatprep.subr.mxu0 %v426
        %726 = vmatpush1.msra.mxu0 %v425
        %727 = vmatprep.subr.mxu0 %v428
        %728 = vmatpush1.msra.mxu0 %v427
        %729 = vmatprep.subr.mxu0 %v430
        %730 = vmatpush1.msra.mxu0 %v429
        %731 = vmatprep.subr.mxu0 %v432
        %732 = vmatpush1.msra.mxu0 %v431
        %733 = vmatprep.mubr.f32.mxu0 %v642
        %734 = vmatmul.mubr.f32.gmra.mrb[0].mxu0 %v634
        %v735 = vpop.f32.mrb[0].mxu0
        %v736 = vadd.f32 0.0, %v735
        %v737 = vpop.f32.mrb[0].mxu0
        %v738 = vadd.f32 0.0, %v737
        %739 = vdwg.mxu0
        %740 = vmatprep.subr.mxu0 %v434
        %741 = vmatpush1.msra.mxu0 %v433
        %742 = vmatprep.subr.mxu0 %v436
        %743 = vmatpush1.msra.mxu0 %v435
        %744 = vmatprep.subr.mxu0 %v438
        %745 = vmatpush1.msra.mxu0 %v437
        %746 = vmatprep.subr.mxu0 %v440
        %747 = vmatpush1.msra.mxu0 %v439
        %748 = vmatprep.subr.mxu0 %v442
        %749 = vmatpush1.msra.mxu0 %v441
        %750 = vmatprep.subr.mxu0 %v444
        %751 = vmatpush1.msra.mxu0 %v443
        %752 = vmatprep.subr.mxu0 %v446
        %753 = vmatpush1.msra.mxu0 %v445
        %754 = vmatprep.subr.mxu0 %v448
        %755 = vmatpush1.msra.mxu0 %v447
        %756 = vmatprep.subr.mxu0 %v450
        %757 = vmatpush1.msra.mxu0 %v449
        %758 = vmatprep.subr.mxu0 %v452
        %759 = vmatpush1.msra.mxu0 %v451
        %760 = vmatprep.subr.mxu0 %v454
        %761 = vmatpush1.msra.mxu0 %v453
        %762 = vmatprep.subr.mxu0 %v456
        %763 = vmatpush1.msra.mxu0 %v455
        %764 = vmatprep.subr.mxu0 %v458
        %765 = vmatpush1.msra.mxu0 %v457
        %766 = vmatprep.subr.mxu0 %v460
        %767 = vmatpush1.msra.mxu0 %v459
        %768 = vmatprep.subr.mxu0 %v462
        %769 = vmatpush1.msra.mxu0 %v461
        %770 = vmatprep.subr.mxu0 %v464
        %771 = vmatpush1.msra.mxu0 %v463
        %772 = vmatprep.subr.mxu0 %v466
        %773 = vmatpush1.msra.mxu0 %v465
        %774 = vmatprep.subr.mxu0 %v468
        %775 = vmatpush1.msra.mxu0 %v467
        %776 = vmatprep.subr.mxu0 %v470
        %777 = vmatpush1.msra.mxu0 %v469
        %778 = vmatprep.subr.mxu0 %v472
        %779 = vmatpush1.msra.mxu0 %v471
        %780 = vmatprep.subr.mxu0 %v474
        %781 = vmatpush1.msra.mxu0 %v473
        %782 = vmatprep.subr.mxu0 %v476
        %783 = vmatpush1.msra.mxu0 %v475
        %784 = vmatprep.subr.mxu0 %v478
        %785 = vmatpush1.msra.mxu0 %v477
        %786 = vmatprep.subr.mxu0 %v480
        %787 = vmatpush1.msra.mxu0 %v479
        %788 = vmatprep.subr.mxu0 %v482
        %789 = vmatpush1.msra.mxu0 %v481
        %790 = vmatprep.subr.mxu0 %v484
        %791 = vmatpush1.msra.mxu0 %v483
        %792 = vmatprep.subr.mxu0 %v486
        %793 = vmatpush1.msra.mxu0 %v485
        %794 = vmatprep.subr.mxu0 %v488
        %795 = vmatpush1.msra.mxu0 %v487
        %796 = vmatprep.subr.mxu0 %v490
        %797 = vmatpush1.msra.mxu0 %v489
        %798 = vmatprep.subr.mxu0 %v492
        %799 = vmatpush1.msra.mxu0 %v491
        %800 = vmatprep.subr.mxu0 %v494
        %801 = vmatpush1.msra.mxu0 %v493
        %802 = vmatprep.subr.mxu0 %v496
        %803 = vmatpush1.msra.mxu0 %v495
        %804 = vmatprep.mubr.f32.mxu0 %v643
        %805 = vmatmul.mubr.f32.gmra.mrb[0].mxu0 %v641
        %v806 = vpop.f32.mrb[0].mxu0
        %v807 = vadd.f32 %v736, %v806
        %v808 = vpop.f32.mrb[0].mxu0
        %v809 = vadd.f32 %v738, %v808
        %810 = vdwg.mxu0
        %811 = vmatprep.subr.mxu0 %v498
        %812 = vmatpush1.msra.mxu0 %v497
        %813 = vmatprep.subr.mxu0 %v500
        %814 = vmatpush1.msra.mxu0 %v499
        %815 = vmatprep.subr.mxu0 %v502
        %816 = vmatpush1.msra.mxu0 %v501
        %817 = vmatprep.subr.mxu0 %v504
        %818 = vmatpush1.msra.mxu0 %v503
        %819 = vmatprep.subr.mxu0 %v506
        %820 = vmatpush1.msra.mxu0 %v505
        %821 = vmatprep.subr.mxu0 %v508
        %822 = vmatpush1.msra.mxu0 %v507
        %823 = vmatprep.subr.mxu0 %v510
        %824 = vmatpush1.msra.mxu0 %v509
        %825 = vmatprep.subr.mxu0 %v512
        %826 = vmatpush1.msra.mxu0 %v511
        %827 = vmatprep.subr.mxu0 %v514
        %828 = vmatpush1.msra.mxu0 %v513
        %829 = vmatprep.subr.mxu0 %v516
        %830 = vmatpush1.msra.mxu0 %v515
        %831 = vmatprep.subr.mxu0 %v518
        %832 = vmatpush1.msra.mxu0 %v517
        %833 = vmatprep.subr.mxu0 %v520
        %834 = vmatpush1.msra.mxu0 %v519
        %835 = vmatprep.subr.mxu0 %v522
        %836 = vmatpush1.msra.mxu0 %v521
        %837 = vmatprep.subr.mxu0 %v524
        %838 = vmatpush1.msra.mxu0 %v523
        %839 = vmatprep.subr.mxu0 %v526
        %840 = vmatpush1.msra.mxu0 %v525
        %841 = vmatprep.subr.mxu0 %v528
        %842 = vmatpush1.msra.mxu0 %v527
        %843 = vmatprep.subr.mxu0 %v530
        %844 = vmatpush1.msra.mxu0 %v529
        %845 = vmatprep.subr.mxu0 %v532
        %846 = vmatpush1.msra.mxu0 %v531
        %847 = vmatprep.subr.mxu0 %v534
        %848 = vmatpush1.msra.mxu0 %v533
        %849 = vmatprep.subr.mxu0 %v536
        %850 = vmatpush1.msra.mxu0 %v535
        %851 = vmatprep.subr.mxu0 %v538
        %852 = vmatpush1.msra.mxu0 %v537
        %853 = vmatprep.subr.mxu0 %v540
        %854 = vmatpush1.msra.mxu0 %v539
        %855 = vmatprep.subr.mxu0 %v542
        %856 = vmatpush1.msra.mxu0 %v541
        %857 = vmatprep.subr.mxu0 %v544
        %858 = vmatpush1.msra.mxu0 %v543
        %859 = vmatprep.subr.mxu0 %v546
        %860 = vmatpush1.msra.mxu0 %v545
        %861 = vmatprep.subr.mxu0 %v548
        %862 = vmatpush1.msra.mxu0 %v547
        %863 = vmatprep.subr.mxu0 %v550
        %864 = vmatpush1.msra.mxu0 %v549
        %865 = vmatprep.subr.mxu0 %v552
        %866 = vmatpush1.msra.mxu0 %v551
        %867 = vmatprep.subr.mxu0 %v554
        %868 = vmatpush1.msra.mxu0 %v553
        %869 = vmatprep.subr.mxu0 %v556
        %870 = vmatpush1.msra.mxu0 %v555
        %871 = vmatprep.subr.mxu0 %v558
        %872 = vmatpush1.msra.mxu0 %v557
        %873 = vmatprep.subr.mxu0 %v560
        %874 = vmatpush1.msra.mxu0 %v559
        %875 = vmatprep.mubr.f32.mxu0 %v659
        %876 = vmatmul.mubr.f32.gmra.mrb[0].mxu0 %v651
        %v877 = vpop.f32.mrb[0].mxu0
        %v878 = vadd.f32 %v807, %v877
        %v879 = vpop.f32.mrb[0].mxu0
        %v880 = vadd.f32 %v809, %v879
        %881 = vdwg.mxu0
        %882 = vmatprep.subr.mxu0 %v562
        %883 = vmatpush1.msra.mxu0 %v561
        %884 = vmatprep.subr.mxu0 %v564
        %885 = vmatpush1.msra.mxu0 %v563
        %886 = vmatprep.subr.mxu0 %v566
        %887 = vmatpush1.msra.mxu0 %v565
        %888 = vmatprep.subr.mxu0 %v568
        %889 = vmatpush1.msra.mxu0 %v567
        %890 = vmatprep.subr.mxu0 %v570
        %891 = vmatpush1.msra.mxu0 %v569
        %892 = vmatprep.subr.mxu0 %v572
        %893 = vmatpush1.msra.mxu0 %v571
        %894 = vmatprep.subr.mxu0 %v574
        %895 = vmatpush1.msra.mxu0 %v573
        %896 = vmatprep.subr.mxu0 %v576
        %897 = vmatpush1.msra.mxu0 %v575
        %898 = vmatprep.subr.mxu0 %v578
        %899 = vmatpush1.msra.mxu0 %v577
        %900 = vmatprep.subr.mxu0 %v580
        %901 = vmatpush1.msra.mxu0 %v579
        %902 = vmatprep.subr.mxu0 %v582
        %903 = vmatpush1.msra.mxu0 %v581
        %904 = vmatprep.subr.mxu0 %v584
        %905 = vmatpush1.msra.mxu0 %v583
        %906 = vmatprep.subr.mxu0 %v586
        %907 = vmatpush1.msra.mxu0 %v585
        %908 = vmatprep.subr.mxu0 %v588
        %909 = vmatpush1.msra.mxu0 %v587
        %910 = vmatprep.subr.mxu0 %v590
        %911 = vmatpush1.msra.mxu0 %v589
        %912 = vmatprep.subr.mxu0 %v592
        %913 = vmatpush1.msra.mxu0 %v591
        %914 = vmatprep.subr.mxu0 %v594
        %915 = vmatpush1.msra.mxu0 %v593
        %916 = vmatprep.subr.mxu0 %v596
        %917 = vmatpush1.msra.mxu0 %v595
        %918 = vmatprep.subr.mxu0 %v598
        %919 = vmatpush1.msra.mxu0 %v597
        %920 = vmatprep.subr.mxu0 %v600
        %921 = vmatpush1.msra.mxu0 %v599
        %922 = vmatprep.subr.mxu0 %v602
        %923 = vmatpush1.msra.mxu0 %v601
        %924 = vmatprep.subr.mxu0 %v604
        %925 = vmatpush1.msra.mxu0 %v603
        %926 = vmatprep.subr.mxu0 %v606
        %927 = vmatpush1.msra.mxu0 %v605
        %928 = vmatprep.subr.mxu0 %v608
        %929 = vmatpush1.msra.mxu0 %v607
        %930 = vmatprep.subr.mxu0 %v610
        %931 = vmatpush1.msra.mxu0 %v609
        %932 = vmatprep.subr.mxu0 %v612
        %933 = vmatpush1.msra.mxu0 %v611
        %934 = vmatprep.subr.mxu0 %v614
        %935 = vmatpush1.msra.mxu0 %v613
        %936 = vmatprep.subr.mxu0 %v616
        %937 = vmatpush1.msra.mxu0 %v615
        %938 = vmatprep.subr.mxu0 %v618
        %939 = vmatpush1.msra.mxu0 %v617
        %940 = vmatprep.subr.mxu0 %v620
        %941 = vmatpush1.msra.mxu0 %v619
        %942 = vmatprep.subr.mxu0 %v622
        %943 = vmatpush1.msra.mxu0 %v621
        %944 = vmatprep.subr.mxu0 %v624
        %945 = vmatpush1.msra.mxu0 %v623
        %946 = vmatprep.mubr.f32.mxu0 %v660
        %947 = vmatmul.mubr.f32.gmra.mrb[0].mxu0 %v658
        %v948 = vpop.f32.mrb[0].mxu0
        %v949 = vadd.f32 %v878, %v948
        %v950 = vpop.f32.mrb[0].mxu0
        %v951 = vadd.f32 %v880, %v950
        %952 = vdwg.mxu0
        %v955 = vcombine.low %v949, %v951
        %v957 = vunpack.c.l.s4 1983009808
        %v958 = vunpack.c.0.s8 %v957
        %v959 = vlaneseq
        %v960 = vshrl.u32 %v959, 7
        %v961 = vsub.s32 %v958, %v960
        %v962 = vrot.slane %v955, %v961
        %v964 = vadd.f32 %v366, %v962
        %965 = vst [vmem:[#allocation2] sm:$0xf] %v964
        // Predicated region
        $region57: #{chebnet_forward.3} parent=39 // pred_check
          %p966 = pneg %p361
        $region58: #{chebnet_forward.3} parent=39 // pred_check_branch
          %968 = sbr.rel (%p966) target = $region60
        $region59: #{chebnet_forward.3} parent=39 // pred_region
          %v969 = vld [vmem:[#allocation2] sm:$0xf]
          %v970 = vld [vmem:[%s297] sm:$0x3]
          %v972 = vlaneseq
          %v973 = vshrl.u32 %v972, 7
          %v974 = vsub.s32 0, %v973
          %v975 = vrot.slane %v970, %v974
          %v976 = vlaneseq
          %v977 = vshrl.u32 %v976, 7
          %v978 = vsub.s32 1, %v977
          %v979 = vrot.slane %v970, %v978
          %v980 = vcombine.low %v975, %v979
          %v982 = vunpack.c.l.s4 1983009808
          %v983 = vunpack.c.0.s8 %v982
          %v984 = vlaneseq
          %v985 = vshrl.u32 %v984, 7
          %v986 = vsub.s32 %v983, %v985
          %v987 = vrot.slane %v980, %v986
          %v989 = vadd.f32 %v969, %v987
          %v990 = vld [vmem:[%s306] sm:$0xff]
          %v991 = vld [vmem:[%s306 + $0x8] sm:$0xff]
          %v992 = vld [vmem:[%s306 + $0x10] sm:$0xff]
          %v993 = vld [vmem:[%s306 + $0x18] sm:$0xff]
          %v994 = vld [vmem:[%s306 + $0x20] sm:$0xff]
          %v995 = vld [vmem:[%s306 + $0x28] sm:$0xff]
          %v996 = vld [vmem:[%s306 + $0x30] sm:$0xff]
          %v997 = vld [vmem:[%s306 + $0x38] sm:$0xff]
          %v998 = vld [vmem:[%s306 + $0x40] sm:$0xff]
          %v999 = vld [vmem:[%s306 + $0x48] sm:$0xff]
          %v1000 = vld [vmem:[%s306 + $0x50] sm:$0xff]
          %v1001 = vld [vmem:[%s306 + $0x58] sm:$0xff]
          %v1002 = vld [vmem:[%s306 + $0x60] sm:$0xff]
          %v1003 = vld [vmem:[%s306 + $0x68] sm:$0xff]
          %v1004 = vld [vmem:[%s306 + $0x70] sm:$0xff]
          %v1005 = vld [vmem:[%s306 + $0x78] sm:$0xff]
          %v1006 = vld [vmem:[%s306 + $0x80] sm:$0xff]
          %v1007 = vld [vmem:[%s306 + $0x88] sm:$0xff]
          %v1008 = vld [vmem:[%s306 + $0x90] sm:$0xff]
          %v1009 = vld [vmem:[%s306 + $0x98] sm:$0xff]
          %v1010 = vld [vmem:[%s306 + $0xa0] sm:$0xff]
          %v1011 = vld [vmem:[%s306 + $0xa8] sm:$0xff]
          %v1012 = vld [vmem:[%s306 + $0xb0] sm:$0xff]
          %v1013 = vld [vmem:[%s306 + $0xb8] sm:$0xff]
          %v1014 = vld [vmem:[%s306 + $0xc0] sm:$0xff]
          %v1015 = vld [vmem:[%s306 + $0xc8] sm:$0xff]
          %v1016 = vld [vmem:[%s306 + $0xd0] sm:$0xff]
          %v1017 = vld [vmem:[%s306 + $0xd8] sm:$0xff]
          %v1018 = vld [vmem:[%s306 + $0xe0] sm:$0xff]
          %v1019 = vld [vmem:[%s306 + $0xe8] sm:$0xff]
          %v1020 = vld [vmem:[%s306 + $0xf0] sm:$0xff]
          %v1021 = vld [vmem:[%s306 + $0xf8] sm:$0xff]
          %v1024 = vunpack.c.l.s4 1983009808
          %v1025 = vunpack.c.0.s8 %v1024
          %v1026 = vlaneseq
          %v1027 = vshrl.u32 %v1026, 7
          %v1028 = vsub.s32 %v1025, %v1027
          %v1029 = vrot.slane %v989, %v1028
          %v1030 = vcombine.high %v1029, %v1029
          %1033 = vmatprep.subr.mxu0 0.0
          %1034 = vmatpush1.msra.mxu0 %v990
          %1035 = vmatprep.subr.mxu0 0.0
          %1036 = vmatpush1.msra.mxu0 %v991
          %1037 = vmatprep.subr.mxu0 0.0
          %1038 = vmatpush1.msra.mxu0 %v992
          %1039 = vmatprep.subr.mxu0 0.0
          %1040 = vmatpush1.msra.mxu0 %v993
          %1041 = vmatprep.subr.mxu0 0.0
          %1042 = vmatpush1.msra.mxu0 %v994
          %1043 = vmatprep.subr.mxu0 0.0
          %1044 = vmatpush1.msra.mxu0 %v995
          %1045 = vmatprep.subr.mxu0 0.0
          %1046 = vmatpush1.msra.mxu0 %v996
          %1047 = vmatprep.subr.mxu0 0.0
          %1048 = vmatpush1.msra.mxu0 %v997
          %1049 = vmatprep.subr.mxu0 0.0
          %1050 = vmatpush1.msra.mxu0 %v998
          %1051 = vmatprep.subr.mxu0 0.0
          %1052 = vmatpush1.msra.mxu0 %v999
          %1053 = vmatprep.subr.mxu0 0.0
          %1054 = vmatpush1.msra.mxu0 %v1000
          %1055 = vmatprep.subr.mxu0 0.0
          %1056 = vmatpush1.msra.mxu0 %v1001
          %1057 = vmatprep.subr.mxu0 0.0
          %1058 = vmatpush1.msra.mxu0 %v1002
          %1059 = vmatprep.subr.mxu0 0.0
          %1060 = vmatpush1.msra.mxu0 %v1003
          %1061 = vmatprep.subr.mxu0 0.0
          %1062 = vmatpush1.msra.mxu0 %v1004
          %1063 = vmatprep.subr.mxu0 0.0
          %1064 = vmatpush1.msra.mxu0 %v1005
          %1065 = vmatprep.subr.mxu0 0.0
          %1066 = vmatpush1.msra.mxu0 %v1006
          %1067 = vmatprep.subr.mxu0 0.0
          %1068 = vmatpush1.msra.mxu0 %v1007
          %1069 = vmatprep.subr.mxu0 0.0
          %1070 = vmatpush1.msra.mxu0 %v1008
          %1071 = vmatprep.subr.mxu0 0.0
          %1072 = vmatpush1.msra.mxu0 %v1009
          %1073 = vmatprep.subr.mxu0 0.0
          %1074 = vmatpush1.msra.mxu0 %v1010
          %1075 = vmatprep.subr.mxu0 0.0
          %1076 = vmatpush1.msra.mxu0 %v1011
          %1077 = vmatprep.subr.mxu0 0.0
          %1078 = vmatpush1.msra.mxu0 %v1012
          %1079 = vmatprep.subr.mxu0 0.0
          %1080 = vmatpush1.msra.mxu0 %v1013
          %1081 = vmatprep.subr.mxu0 0.0
          %1082 = vmatpush1.msra.mxu0 %v1014
          %1083 = vmatprep.subr.mxu0 0.0
          %1084 = vmatpush1.msra.mxu0 %v1015
          %1085 = vmatprep.subr.mxu0 0.0
          %1086 = vmatpush1.msra.mxu0 %v1016
          %1087 = vmatprep.subr.mxu0 0.0
          %1088 = vmatpush1.msra.mxu0 %v1017
          %1089 = vmatprep.subr.mxu0 0.0
          %1090 = vmatpush1.msra.mxu0 %v1018
          %1091 = vmatprep.subr.mxu0 0.0
          %1092 = vmatpush1.msra.mxu0 %v1019
          %1093 = vmatprep.subr.mxu0 0.0
          %1094 = vmatpush1.msra.mxu0 %v1020
          %1095 = vmatprep.subr.mxu0 0.0
          %1096 = vmatpush1.msra.mxu0 %v1021
          %1097 = vmatprep.mubr.f32.mxu0 %v1030
          %1098 = vmatmul.mubr.f32.gmra.mrb[0].mxu0 %v1029
          %v1099 = vpop.f32.mrb[0].mxu0
          %v1100 = vadd.f32 0.0, %v1099
          %v1101 = vpop.f32.mrb[0].mxu0
          %1102 = vdwg.mxu0
          %v1103 = vld [vmem:[%s4] sm:$0xff]
          %v1104 = vld [vmem:[%s4 + $0x8] sm:$0xff]
          %v1105 = vld [vmem:[%s4 + $0x10] sm:$0xff]
          %v1106 = vld [vmem:[%s4 + $0x18] sm:$0xff]
          %v1107 = vld [vmem:[%s4 + $0x20] sm:$0xff]
          %v1108 = vld [vmem:[%s4 + $0x28] sm:$0xff]
          %v1109 = vld [vmem:[%s4 + $0x30] sm:$0xff]
          %v1110 = vld [vmem:[%s4 + $0x38] sm:$0xff]
          %v1111 = vld [vmem:[%s4 + $0x40] sm:$0xff]
          %v1112 = vld [vmem:[%s4 + $0x48] sm:$0xff]
          %v1113 = vld [vmem:[%s4 + $0x50] sm:$0xff]
          %v1114 = vld [vmem:[%s4 + $0x58] sm:$0xff]
          %v1115 = vld [vmem:[%s4 + $0x60] sm:$0xff]
          %v1116 = vld [vmem:[%s4 + $0x68] sm:$0xff]
          %v1117 = vld [vmem:[%s4 + $0x70] sm:$0xff]
          %v1118 = vld [vmem:[%s4 + $0x78] sm:$0xff]
          %1119 = vmatprep.subr.mxu0 0.0
          %1120 = vmatpush1.msra.mxu0 %v1103
          %1121 = vmatprep.subr.mxu0 0.0
          %1122 = vmatpush1.msra.mxu0 %v1104
          %1123 = vmatprep.subr.mxu0 0.0
          %1124 = vmatpush1.msra.mxu0 %v1105
          %1125 = vmatprep.subr.mxu0 0.0
          %1126 = vmatpush1.msra.mxu0 %v1106
          %1127 = vmatprep.subr.mxu0 0.0
          %1128 = vmatpush1.msra.mxu0 %v1107
          %1129 = vmatprep.subr.mxu0 0.0
          %1130 = vmatpush1.msra.mxu0 %v1108
          %1131 = vmatprep.subr.mxu0 0.0
          %1132 = vmatpush1.msra.mxu0 %v1109
          %1133 = vmatprep.subr.mxu0 0.0
          %1134 = vmatpush1.msra.mxu0 %v1110
          %1135 = vmatprep.subr.mxu0 0.0
          %1136 = vmatpush1.msra.mxu0 %v1111
          %1137 = vmatprep.subr.mxu0 0.0
          %1138 = vmatpush1.msra.mxu0 %v1112
          %1139 = vmatprep.subr.mxu0 0.0
          %1140 = vmatpush1.msra.mxu0 %v1113
          %1141 = vmatprep.subr.mxu0 0.0
          %1142 = vmatpush1.msra.mxu0 %v1114
          %1143 = vmatprep.subr.mxu0 0.0
          %1144 = vmatpush1.msra.mxu0 %v1115
          %1145 = vmatprep.subr.mxu0 0.0
          %1146 = vmatpush1.msra.mxu0 %v1116
          %1147 = vmatprep.subr.mxu0 0.0
          %1148 = vmatpush1.msra.mxu0 %v1117
          %1149 = vmatprep.subr.mxu0 0.0
          %1150 = vmatpush1.msra.mxu0 %v1118
          %1151 = vmatprep.subr.mxu0 0.0
          %1152 = vmatpush1.msra.mxu0 0.0
          %1153 = vmatprep.subr.mxu0 0.0
          %1154 = vmatpush1.msra.mxu0 0.0
          %1155 = vmatprep.subr.mxu0 0.0
          %1156 = vmatpush1.msra.mxu0 0.0
          %1157 = vmatprep.subr.mxu0 0.0
          %1158 = vmatpush1.msra.mxu0 0.0
          %1159 = vmatprep.subr.mxu0 0.0
          %1160 = vmatpush1.msra.mxu0 0.0
          %1161 = vmatprep.subr.mxu0 0.0
          %1162 = vmatpush1.msra.mxu0 0.0
          %1163 = vmatprep.subr.mxu0 0.0
          %1164 = vmatpush1.msra.mxu0 0.0
          %1165 = vmatprep.subr.mxu0 0.0
          %1166 = vmatpush1.msra.mxu0 0.0
          %1167 = vmatprep.subr.mxu0 0.0
          %1168 = vmatpush1.msra.mxu0 0.0
          %1169 = vmatprep.subr.mxu0 0.0
          %1170 = vmatpush1.msra.mxu0 0.0
          %1171 = vmatprep.subr.mxu0 0.0
          %1172 = vmatpush1.msra.mxu0 0.0
          %1173 = vmatprep.subr.mxu0 0.0
          %1174 = vmatpush1.msra.mxu0 0.0
          %1175 = vmatprep.subr.mxu0 0.0
          %1176 = vmatpush1.msra.mxu0 0.0
          %1177 = vmatprep.subr.mxu0 0.0
          %1178 = vmatpush1.msra.mxu0 0.0
          %1179 = vmatprep.subr.mxu0 0.0
          %1180 = vmatpush1.msra.mxu0 0.0
          %1181 = vmatprep.subr.mxu0 0.0
          %1182 = vmatpush1.msra.mxu0 0.0
          %1183 = vmatprep.mubr.f32.mxu0 0.0
          %1184 = vmatmul.mubr.f32.gmra.mrb[0].mxu0 %v1100
          %v1185 = vpop.f32.mrb[0].mxu0
          %v1186 = vadd.f32 0.0, %v1185
          %v1187 = vpop.f32.mrb[0].mxu0
          %1188 = vdwg.mxu0
          %vm1189 = vcmask 1024
          %1190 = vst.msk [vmem:[%s360] sm:$0x3] %vm1189, %v1186
        $region60: #{chebnet_forward.3} parent=39 // pred_fallthru
          _
        %p1191 = scmp.lt.s32.totalorder %s26, 1
        %s1192 = scalar_select %p1191, %s26, 1
        %s1193 = smul.addr %s1192, 2
        %s1194 = scalar_lea.vmem %s5, %s1193
        // Predicated region
        $region61: #{chebnet_forward.3} parent=39 // pred_check
          %p1195 = pneg %p179
        $region62: #{chebnet_forward.3} parent=39 // pred_check_branch
          %1197 = sbr.rel (%p1195) target = $region64
        $region63: #{chebnet_forward.3} parent=39 // pred_region
          _
        $region64: #{chebnet_forward.3} parent=39 // pred_fallthru
          _
      $region40: #{chebnet_forward.3} parent=5 // pred_fallthru
        _
      %p1198 = scmp.le.s32.totalorder 2, %s17
      // Predicated region
      $region65: #{chebnet_forward.3} parent=5 // pred_check
        %p1199 = pneg %p1198
      $region66: #{chebnet_forward.3} parent=5 // pred_check_branch
        %1201 = sbr.rel (%p1199) target = $region68
      $region67: #{chebnet_forward.3} parent=5 // pred_region
        %s1202 = ssub.s32 %s17, 2
        // Predicated region
        $region69: #{chebnet_forward.3} parent=67 // pred_check
          %p1203 = pneg %p185
        $region70: #{chebnet_forward.3} parent=67 // pred_check_branch
          %1205 = sbr.rel (%p1203) target = $region72
        $region71: #{chebnet_forward.3} parent=67 // pred_region
          %p1206 = scmp.lt.s32.totalorder %s28, 1
          %s1207 = scalar_select %p1206, %s28, 1
          %s1208 = smul.addr %s1207, 2
          %s1209 = scalar_lea.vmem %s5, %s1208
        $region72: #{chebnet_forward.3} parent=67 // pred_fallthru
          _
      $region68: #{chebnet_forward.3} parent=5 // pred_fallthru
        _
    $region6: #{chebnet_forward.3} parent=1 // loop_footer
      %s21 = sadd.s32 1, %s17
    $region7: #{chebnet_forward.3} parent=1 // loop_footer_branch
      %16 = sbr.rel target = $region3
    $region8: #{chebnet_forward.3} parent=1 // loop_exit
      _
    %1210 = vsyncpa [#allocation4], 1
    %s1211 = scalar_lea.sflag [#allocation4], 1
    %1212 = vsyncpa %s1211, 1
    %1213 = vsyncpa [#allocation6], 1
    %s1214 = scalar_lea.sflag [#allocation6], 1
    %1215 = vsyncpa %s1214, 1

// kernel: chebnet_forward.2
$region0: #{chebnet_forward.2}
  #allocation0 [shape = 'u32[]', space=smem, size = 0x4, offset = 0x4, fixed_abs, tag = 'smem constant byte address 0x4 - core index']
  #allocation1 [shape = 'u32[144,128]{1,0:T(1,128)}', space=vmem, size = 0x12000, scoped, tag = 'internal scratch']
  #allocation2 [shape = 'f32[128,16]{1,0:T(8,128)}', space=vmem, size = 0x10000, scoped, tag = 'scratch operand']
  #allocation3 [shape = 'f32[128,128]{1,0:T(8,128)}', space=vmem, size = 0x10000, scoped, tag = 'scratch operand']
  %s0 = inlined_call_operand.hbm [shape: f32[2,128,128], index: 0, kind: input, shape index: {}]
  %s1 = inlined_call_operand.vmem [shape: f32[2,128,4], index: 1, kind: input, shape index: {}]
  %s2 = inlined_call_operand.hbm [shape: f32[16,32], index: 2, kind: input, shape index: {}]
  %s3 = inlined_call_operand.hbm [shape: f32[1,32], index: 3, kind: input, shape index: {}]
  %s4 = inlined_call_operand.vmem [shape: f32[128,8], index: 4, kind: input, shape index: {}]
  %s5 = inlined_call_operand.hbm [shape: f32[1,8], index: 5, kind: input, shape index: {}]
  %s6 = inlined_call_operand.vmem [shape: f32[2,128,8], index: 6, kind: output, shape index: {}]
  %s7 = sld [smem:[#allocation0]]
  $region73: #{chebnet_forward.2} parent=0
    _
  %s9 = ssub.s32 1, %s7
  %s10 = scalar_select 0, %s9, %s7
  $region1: #{chebnet_forward.2} parent=0
    #allocation4 [shape = 'u8[131072]{0}', space=vmem, size = 0x20000, scoped, tag = 'input window, operand 0']
    #allocation5 [shape = 's32[2]{0}', space=sflag, size = 0x8, scoped, tag = 'scoped memory for chebnet_forward.2']
    #allocation6 [shape = 'u8[8192]{0}', space=vmem, size = 0x2000, scoped, tag = 'input window, operand 2, single buffered']
    #allocation7 [shape = 's32[1]{0}', space=sflag, size = 0x4, scoped, tag = 'scoped memory for chebnet_forward.2']
    #allocation8 [shape = 'u8[512]{0}', space=vmem, size = 0x400, scoped, tag = 'input window, operand 3, single buffered']
    #allocation9 [shape = 'u8[512]{0}', space=vmem, size = 0x400, scoped, tag = 'input window, operand 5, single buffered']
    #allocation10 [shape = 's32[1]{0}', space=sflag, size = 0x4, scoped, tag = 'scoped memory for chebnet_forward.2']
    %11 = vsyncpa [#allocation5], 0
    %s12 = scalar_lea.sflag [#allocation5], 1
    %13 = vsyncpa %s12, 0
    %14 = vsyncpa [#allocation7], 0
    %15 = vsyncpa [#allocation10], 0
    loop: start=0, step=1, limit=4
    $region2: #{chebnet_forward.2} parent=1 // loop_pre_header
      _
    $region3: #{chebnet_forward.2} parent=1 // loop_header
      %s17 = sphi 0, %s21
      %p18 = scmp.ge.s32.totalorder %s17, 4
      %s27 = sphi 0, %s29
      %s30 = sphi 0, %s27
      %s31 = sphi 0, %s30
      %s47 = sphi 0, %s31
      %s53 = sphi 0, %s55
      %s56 = sphi 0, %s53
      %s57 = sphi 0, %s56
      %s73 = sphi 0, %s57
      %s77 = sphi 0, %s77
      %s79 = sphi 0, %s77
      %s80 = sphi 0, %s79
      %s94 = sphi 0, %s80
      %s98 = sphi 0, %s98
      %s100 = sphi 0, %s98
      %s101 = sphi 0, %s100
      %s115 = sphi 0, %s101
      %s119 = sphi 0, %s119
      %s121 = sphi 0, %s119
      %s122 = sphi 0, %s121
      %s136 = sphi 0, %s122
      %s140 = sphi 0, %s140
      %s142 = sphi 0, %s140
      %s143 = sphi 0, %s142
      %s157 = sphi 0, %s143
      %s163 = sphi 0, %s165
      %s166 = sphi 0, %s163
      %s167 = sphi 0, %s166
      %s183 = sphi 0, %s167
    $region4: #{chebnet_forward.2} parent=1 // loop_header_branch
      %20 = sbr.rel (%p18) target = $region8
    $region5: #{chebnet_forward.2} parent=1 // loop_body
      %s22 = ssub.s32 %s17, 1
      %s23 = ssub.s32 %s17, 2
      %s24 = sadd.s32 %s17, 1
      %s25 = ssub.s32 %s17, %s24
      %p26 = scmp.eq.s32.totalorder %s25, 0
      %s28 = sadd.s32 %s27, 1
      %s29 = scalar_select %p26, %s27, %s28
      %p32 = pneg %p26
      %p33 = scmp.eq.s32.totalorder %s17, 1
      %p34 = por %p32, %p33
      %p35 = scmp.ne.s32.totalorder %s27, %s30
      %p36 = scmp.eq.s32.totalorder %s17, 0
      %p37 = por %p35, %p36
      %p38 = scmp.ne.s32.totalorder %s27, %s30
      %p39 = scmp.eq.s32.totalorder %s22, 1
      %p40 = por %p38, %p39
      %p41 = scmp.ne.s32.totalorder %s30, %s31
      %p42 = scmp.eq.s32.totalorder %s22, 0
      %p43 = por %p41, %p42
      %p44 = scmp.ne.s32.totalorder %s30, %s31
      %p45 = scmp.eq.s32.totalorder %s23, 1
      %p46 = por %p44, %p45
      %p48 = scmp.ne.s32.totalorder %s31, %s47
      %p49 = scmp.eq.s32.totalorder %s23, 0
      %p50 = por %p48, %p49
      %s51 = ssub.s32 %s17, %s24
      %p52 = scmp.eq.s32.totalorder %s51, 0
      %s54 = sadd.s32 %s53, 1
      %s55 = scalar_select %p52, %s53, %s54
      %p58 = pneg %p52
      %p59 = scmp.eq.s32.totalorder %s17, 1
      %p60 = por %p58, %p59
      %p61 = scmp.ne.s32.totalorder %s53, %s56
      %p62 = scmp.eq.s32.totalorder %s17, 0
      %p63 = por %p61, %p62
      %p64 = scmp.ne.s32.totalorder %s53, %s56
      %p65 = scmp.eq.s32.totalorder %s22, 1
      %p66 = por %p64, %p65
      %p67 = scmp.ne.s32.totalorder %s56, %s57
      %p68 = scmp.eq.s32.totalorder %s22, 0
      %p69 = por %p67, %p68
      %p70 = scmp.ne.s32.totalorder %s56, %s57
      %p71 = scmp.eq.s32.totalorder %s23, 1
      %p72 = por %p70, %p71
      %p74 = scmp.ne.s32.totalorder %s57, %s73
      %p75 = scmp.eq.s32.totalorder %s23, 0
      %p76 = por %p74, %p75
      %s78 = sadd.s32 %s77, 1
      %p81 = scmp.eq.s32.totalorder %s17, 1
      %p82 = scmp.ne.s32.totalorder %s77, %s79
      %p83 = scmp.eq.s32.totalorder %s17, 0
      %p84 = por %p82, %p83
      %p85 = scmp.ne.s32.totalorder %s77, %s79
      %p86 = scmp.eq.s32.totalorder %s22, 1
      %p87 = por %p85, %p86
      %p88 = scmp.ne.s32.totalorder %s79, %s80
      %p89 = scmp.eq.s32.totalorder %s22, 0
      %p90 = por %p88, %p89
      %p91 = scmp.ne.s32.totalorder %s79, %s80
      %p92 = scmp.eq.s32.totalorder %s23, 1
      %p93 = por %p91, %p92
      %p95 = scmp.ne.s32.totalorder %s80, %s94
      %p96 = scmp.eq.s32.totalorder %s23, 0
      %p97 = por %p95, %p96
      %s99 = sadd.s32 %s98, 1
      %p102 = scmp.eq.s32.totalorder %s17, 1
      %p103 = scmp.ne.s32.totalorder %s98, %s100
      %p104 = scmp.eq.s32.totalorder %s17, 0
      %p105 = por %p103, %p104
      %p106 = scmp.ne.s32.totalorder %s98, %s100
      %p107 = scmp.eq.s32.totalorder %s22, 1
      %p108 = por %p106, %p107
      %p109 = scmp.ne.s32.totalorder %s100, %s101
      %p110 = scmp.eq.s32.totalorder %s22, 0
      %p111 = por %p109, %p110
      %p112 = scmp.ne.s32.totalorder %s100, %s101
      %p113 = scmp.eq.s32.totalorder %s23, 1
      %p114 = por %p112, %p113
      %p116 = scmp.ne.s32.totalorder %s101, %s115
      %p117 = scmp.eq.s32.totalorder %s23, 0
      %p118 = por %p116, %p117
      %s120 = sadd.s32 %s119, 1
      %p123 = scmp.eq.s32.totalorder %s17, 1
      %p124 = scmp.ne.s32.totalorder %s119, %s121
      %p125 = scmp.eq.s32.totalorder %s17, 0
      %p126 = por %p124, %p125
      %p127 = scmp.ne.s32.totalorder %s119, %s121
      %p128 = scmp.eq.s32.totalorder %s22, 1
      %p129 = por %p127, %p128
      %p130 = scmp.ne.s32.totalorder %s121, %s122
      %p131 = scmp.eq.s32.totalorder %s22, 0
      %p132 = por %p130, %p131
      %p133 = scmp.ne.s32.totalorder %s121, %s122
      %p134 = scmp.eq.s32.totalorder %s23, 1
      %p135 = por %p133, %p134
      %p137 = scmp.ne.s32.totalorder %s122, %s136
      %p138 = scmp.eq.s32.totalorder %s23, 0
      %p139 = por %p137, %p138
      %s141 = sadd.s32 %s140, 1
      %p144 = scmp.eq.s32.totalorder %s17, 1
      %p145 = scmp.ne.s32.totalorder %s140, %s142
      %p146 = scmp.eq.s32.totalorder %s17, 0
      %p147 = por %p145, %p146
      %p148 = scmp.ne.s32.totalorder %s140, %s142
      %p149 = scmp.eq.s32.totalorder %s22, 1
      %p150 = por %p148, %p149
      %p151 = scmp.ne.s32.totalorder %s142, %s143
      %p152 = scmp.eq.s32.totalorder %s22, 0
      %p153 = por %p151, %p152
      %p154 = scmp.ne.s32.totalorder %s142, %s143
      %p155 = scmp.eq.s32.totalorder %s23, 1
      %p156 = por %p154, %p155
      %p158 = scmp.ne.s32.totalorder %s143, %s157
      %p159 = scmp.eq.s32.totalorder %s23, 0
      %p160 = por %p158, %p159
      %s161 = ssub.s32 %s17, %s24
      %p162 = scmp.eq.s32.totalorder %s161, 0
      %s164 = sadd.s32 %s163, 1
      %s165 = scalar_select %p162, %s163, %s164
      %p168 = pneg %p162
      %p169 = scmp.eq.s32.totalorder %s17, 1
      %p170 = por %p168, %p169
      %p171 = scmp.ne.s32.totalorder %s163, %s166
      %p172 = scmp.eq.s32.totalorder %s17, 0
      %p173 = por %p171, %p172
      %p174 = scmp.ne.s32.totalorder %s163, %s166
      %p175 = scmp.eq.s32.totalorder %s22, 1
      %p176 = por %p174, %p175
      %p177 = scmp.ne.s32.totalorder %s166, %s167
      %p178 = scmp.eq.s32.totalorder %s22, 0
      %p179 = por %p177, %p178
      %p180 = scmp.ne.s32.totalorder %s166, %s167
      %p181 = scmp.eq.s32.totalorder %s23, 1
      %p182 = por %p180, %p181
      %p184 = scmp.ne.s32.totalorder %s167, %s183
      %p185 = scmp.eq.s32.totalorder %s23, 0
      %p186 = por %p184, %p185
      %p187 = scmp.le.s32.totalorder 1, %s17
      %p188 = scmp.lt.s32.totalorder %s17, 3
      %p189 = pnand %p187, %p188
      %p190 = pneg %p189
      // Predicated region
      $region9: #{chebnet_forward.2} parent=5 // pred_check
        _
      $region10: #{chebnet_forward.2} parent=5 // pred_check_branch
        %192 = sbr.rel (%p189) target = $region12
      $region11: #{chebnet_forward.2} parent=5 // pred_region
        %s193 = ssub.s32 %s17, 1
        // Predicated region
        $region13: #{chebnet_forward.2} parent=11 // pred_check
          %p194 = pneg %p90
        $region14: #{chebnet_forward.2} parent=11 // pred_check_branch
          %196 = sbr.rel (%p194) target = $region16
        $region15: #{chebnet_forward.2} parent=11 // pred_region
          %s198 = ssub.s32 256, 256
          %199 = vsyncadd [#allocation7], %s198
          %s200 = sshll.u32 [#allocation6], 4
          %s201 = int_to_ptr.vmem [resolvable:$true] %s200
          %206 = dma.hbm_to_vmem [thread:$0]  %s2, 256, %s201, [#allocation7], 128, 128, 8
        $region16: #{chebnet_forward.2} parent=11 // pred_fallthru
          _
        // Predicated region
        $region17: #{chebnet_forward.2} parent=11 // pred_check
          %p207 = pneg %p111
        $region18: #{chebnet_forward.2} parent=11 // pred_check_branch
          %209 = sbr.rel (%p207) target = $region20
        $region19: #{chebnet_forward.2} parent=11 // pred_region
          %s211 = ssub.s32 16, 16
          %212 = vsyncadd [#allocation7], %s211
          %s214 = sshll.u32 [#allocation8], 4
          %s215 = int_to_ptr.vmem [resolvable:$true] %s214
          %217 = dma.hbm_to_vmem [thread:$0]  %s3, 16, %s215, [#allocation7]
        $region20: #{chebnet_forward.2} parent=11 // pred_fallthru
          _
        // Predicated region
        $region21: #{chebnet_forward.2} parent=11 // pred_check
          %p218 = pneg %p132
        $region22: #{chebnet_forward.2} parent=11 // pred_check_branch
          %220 = sbr.rel (%p218) target = $region24
        $region23: #{chebnet_forward.2} parent=11 // pred_region
          _
        $region24: #{chebnet_forward.2} parent=11 // pred_fallthru
          _
        // Predicated region
        $region25: #{chebnet_forward.2} parent=11 // pred_check
          %p221 = pneg %p153
        $region26: #{chebnet_forward.2} parent=11 // pred_check_branch
          %223 = sbr.rel (%p221) target = $region28
        $region27: #{chebnet_forward.2} parent=11 // pred_region
          %s225 = ssub.s32 16, 16
          %226 = vsyncadd [#allocation10], %s225
          %s228 = sshll.u32 [#allocation9], 4
          %s229 = int_to_ptr.vmem [resolvable:$true] %s228
          %231 = dma.hbm_to_vmem [thread:$0]  %s5, 16, %s229, [#allocation10]
        $region28: #{chebnet_forward.2} parent=11 // pred_fallthru
          _
      $region12: #{chebnet_forward.2} parent=5 // pred_fallthru
        _
      %p232 = scmp.lt.s32.totalorder %s17, 2
      // Predicated region
      $region29: #{chebnet_forward.2} parent=5 // pred_check
        %p233 = pneg %p232
      $region30: #{chebnet_forward.2} parent=5 // pred_check_branch
        %235 = sbr.rel (%p233) target = $region32
      $region31: #{chebnet_forward.2} parent=5 // pred_region
        // Predicated region
        $region33: #{chebnet_forward.2} parent=31 // pred_check
          %p236 = pneg %p37
        $region34: #{chebnet_forward.2} parent=31 // pred_check_branch
          %238 = sbr.rel (%p236) target = $region36
        $region35: #{chebnet_forward.2} parent=31 // pred_region
          %s239 = sand.u32 %s27, 1
          %s240 = scalar_lea.sflag [#allocation5], %s239
          %s241 = sand.u32 %s27, 1
          %s242 = smul.addr %s241, 128
          %s243 = scalar_lea.vmem [#allocation4], %s242
          %s245 = ssub.s32 2048, 2048
          %246 = vsyncadd %s240, %s245
          %s247 = smul.addr %s17, 16
          %s248 = smul.addr %s247, 128
          %s249 = scalar_lea.hbm %s0, %s248
          %s250 = sshll.u32 %s243, 4
          %s251 = int_to_ptr.vmem [resolvable:$true] %s250
          %256 = dma.hbm_to_vmem [thread:$0]  %s249, 2048, %s251, %s240, 128, 128, 8
        $region36: #{chebnet_forward.2} parent=31 // pred_fallthru
          _
        // Predicated region
        $region37: #{chebnet_forward.2} parent=31 // pred_check
          %p257 = pneg %p63
        $region38: #{chebnet_forward.2} parent=31 // pred_check_branch
          %259 = sbr.rel (%p257) target = $region40
        $region39: #{chebnet_forward.2} parent=31 // pred_region
          %p260 = scmp.lt.s32.totalorder %s17, 1
          %s261 = scalar_select %p260, %s17, 1
          %s262 = smul.addr %s261, 16
          %s263 = smul.addr %s262, 8
          %s264 = scalar_lea.vmem %s1, %s263
        $region40: #{chebnet_forward.2} parent=31 // pred_fallthru
          _
      $region32: #{chebnet_forward.2} parent=5 // pred_fallthru
        _
      %p265 = scmp.le.s32.totalorder 1, %s17
      %p266 = scmp.lt.s32.totalorder %s17, 3
      %p267 = pnand %p265, %p266
      %p268 = pneg %p267
      // Predicated region
      $region41: #{chebnet_forward.2} parent=5 // pred_check
        _
      $region42: #{chebnet_forward.2} parent=5 // pred_check_branch
        %270 = sbr.rel (%p267) target = $region44
      $region43: #{chebnet_forward.2} parent=5 // pred_region
        %s271 = ssub.s32 %s17, 1
        %s272 = sand.u32 %s30, 1
        %s273 = scalar_lea.sflag [#allocation5], %s272
        %s274 = sand.u32 %s30, 1
        %s275 = smul.addr %s274, 128
        %s276 = scalar_lea.vmem [#allocation4], %s275
        // Predicated region
        $region45: #{chebnet_forward.2} parent=43 // pred_check
          %p277 = pneg %p43
        $region46: #{chebnet_forward.2} parent=43 // pred_check_branch
          %279 = sbr.rel (%p277) target = $region48
        $region47: #{chebnet_forward.2} parent=43 // pred_region
          %280 = dma.done %s273, 2048
        $region48: #{chebnet_forward.2} parent=43 // pred_fallthru
          _
        // Predicated region
        $region49: #{chebnet_forward.2} parent=43 // pred_check
          %p281 = pneg %p90
        $region50: #{chebnet_forward.2} parent=43 // pred_check_branch
          %283 = sbr.rel (%p281) target = $region52
        $region51: #{chebnet_forward.2} parent=43 // pred_region
          %284 = dma.done [#allocation7], 256
        $region52: #{chebnet_forward.2} parent=43 // pred_fallthru
          _
        // Predicated region
        $region53: #{chebnet_forward.2} parent=43 // pred_check
          %p285 = pneg %p111
        $region54: #{chebnet_forward.2} parent=43 // pred_check_branch
          %287 = sbr.rel (%p285) target = $region56
        $region55: #{chebnet_forward.2} parent=43 // pred_region
          %288 = dma.done [#allocation7], 16
        $region56: #{chebnet_forward.2} parent=43 // pred_fallthru
          _
        // Predicated region
        $region57: #{chebnet_forward.2} parent=43 // pred_check
          %p289 = pneg %p153
        $region58: #{chebnet_forward.2} parent=43 // pred_check_branch
          %291 = sbr.rel (%p289) target = $region60
        $region59: #{chebnet_forward.2} parent=43 // pred_region
          %292 = dma.done [#allocation10], 16
        $region60: #{chebnet_forward.2} parent=43 // pred_fallthru
          _
        %s293 = sand.u32 %s30, 1
        %s294 = scalar_lea.sflag [#allocation5], %s293
        %s295 = sand.u32 %s30, 1
        %s296 = smul.addr %s295, 128
        %s297 = scalar_lea.vmem [#allocation4], %s296
        %p298 = pneg %p43
        %p299 = pneg %p40
        %p300 = scmp.lt.s32.totalorder %s22, 1
        %s301 = scalar_select %p300, %s22, 1
        %s302 = smul.addr %s301, 16
        %s303 = smul.addr %s302, 8
        %s304 = scalar_lea.vmem %s1, %s303
        %p305 = pneg %p69
        %p306 = pneg %p66
        %p307 = pneg %p90
        %p308 = pneg %p87
        %p309 = pneg %p111
        %p310 = pneg %p108
        %p311 = pneg %p132
        %p312 = pneg %p129
        %p313 = pneg %p153
        %p314 = pneg %p150
        %p315 = pneg %p179
        %p316 = pneg %p176
        %p317 = scmp.lt.s32.totalorder %s22, 1
        %s318 = scalar_select %p317, %s22, 1
        %s319 = smul.addr %s318, 16
        %s320 = smul.addr %s319, 8
        %s321 = scalar_lea.vmem %s6, %s320
        %p322 = scmp.lt.s32.totalorder %s22, 1
        %s323 = scalar_select %p322, %s22, 1
        %s324 = smul.addr %s323, 16
        %s325 = smul.addr %s324, 8
        %s326 = scalar_lea.vmem %s1, %s325
        %p327 = scmp.lt.s32.totalorder %s22, 1
        %s328 = scalar_select %p327, %s22, 1
        %s329 = smul.addr %s328, 16
        %s330 = smul.addr %s329, 8
        %s331 = scalar_lea.vmem %s6, %s330
        %v332 = vld [vmem:[%s276] sm:$0xff]
        %v333 = vld [vmem:[%s276 + $0x8] sm:$0xff]
        %v334 = vld [vmem:[%s276 + $0x10] sm:$0xff]
        %v335 = vld [vmem:[%s276 + $0x18] sm:$0xff]
        %v336 = vld [vmem:[%s276 + $0x20] sm:$0xff]
        %v337 = vld [vmem:[%s276 + $0x28] sm:$0xff]
        %v338 = vld [vmem:[%s276 + $0x30] sm:$0xff]
        %v339 = vld [vmem:[%s276 + $0x38] sm:$0xff]
        %v340 = vld [vmem:[%s276 + $0x40] sm:$0xff]
        %v341 = vld [vmem:[%s276 + $0x48] sm:$0xff]
        %v342 = vld [vmem:[%s276 + $0x50] sm:$0xff]
        %v343 = vld [vmem:[%s276 + $0x58] sm:$0xff]
        %v344 = vld [vmem:[%s276 + $0x60] sm:$0xff]
        %v345 = vld [vmem:[%s276 + $0x68] sm:$0xff]
        %v346 = vld [vmem:[%s276 + $0x70] sm:$0xff]
        %v347 = vld [vmem:[%s276 + $0x78] sm:$0xff]
        %348 = vadd.xlane.f32.xlu0 %v332
        %v349 = vpop.xlane.xlu0 %348
        %350 = vadd.xlane.f32.xlu0 %v333
        %v351 = vpop.xlane.xlu0 %350
        %352 = vadd.xlane.f32.xlu0 %v334
        %v353 = vpop.xlane.xlu0 %352
        %354 = vadd.xlane.f32.xlu0 %v335
        %v355 = vpop.xlane.xlu0 %354
        %356 = vadd.xlane.f32.xlu0 %v336
        %v357 = vpop.xlane.xlu0 %356
        %358 = vadd.xlane.f32.xlu0 %v337
        %v359 = vpop.xlane.xlu0 %358
        %360 = vadd.xlane.f32.xlu0 %v338
        %v361 = vpop.xlane.xlu0 %360
        %362 = vadd.xlane.f32.xlu0 %v339
        %v363 = vpop.xlane.xlu0 %362
        %364 = vadd.xlane.f32.xlu0 %v340
        %v365 = vpop.xlane.xlu0 %364
        %366 = vadd.xlane.f32.xlu0 %v341
        %v367 = vpop.xlane.xlu0 %366
        %368 = vadd.xlane.f32.xlu0 %v342
        %v369 = vpop.xlane.xlu0 %368
        %370 = vadd.xlane.f32.xlu0 %v343
        %v371 = vpop.xlane.xlu0 %370
        %372 = vadd.xlane.f32.xlu0 %v344
        %v373 = vpop.xlane.xlu0 %372
        %374 = vadd.xlane.f32.xlu0 %v345
        %v375 = vpop.xlane.xlu0 %374
        %376 = vadd.xlane.f32.xlu0 %v346
        %v377 = vpop.xlane.xlu0 %376
        %378 = vadd.xlane.f32.xlu0 %v347
        %v379 = vpop.xlane.xlu0 %378
        %v380 = vrsqrt.pop %v349
        %v381 = vrsqrt.pop %v351
        %v382 = vrsqrt.pop %v353
        %v383 = vrsqrt.pop %v355
        %v384 = vrsqrt.pop %v357
        %v385 = vrsqrt.pop %v359
        %v386 = vrsqrt.pop %v361
        %v387 = vrsqrt.pop %v363
        %v388 = vrsqrt.pop %v365
        %v389 = vrsqrt.pop %v367
        %v390 = vrsqrt.pop %v369
        %v391 = vrsqrt.pop %v371
        %v392 = vrsqrt.pop %v373
        %v393 = vrsqrt.pop %v375
        %v394 = vrsqrt.pop %v377
        %v395 = vrsqrt.pop %v379
        %vm396 = vcmp.ne.f32.partialorder %v380, %v380
        %vm397 = vcmp.ne.f32.partialorder %v381, %v381
        %vm398 = vcmp.ne.f32.partialorder %v382, %v382
        %vm399 = vcmp.ne.f32.partialorder %v383, %v383
        %vm400 = vcmp.ne.f32.partialorder %v384, %v384
        %vm401 = vcmp.ne.f32.partialorder %v385, %v385
        %vm402 = vcmp.ne.f32.partialorder %v386, %v386
        %vm403 = vcmp.ne.f32.partialorder %v387, %v387
        %vm404 = vcmp.ne.f32.partialorder %v388, %v388
        %vm405 = vcmp.ne.f32.partialorder %v389, %v389
        %vm406 = vcmp.ne.f32.partialorder %v390, %v390
        %vm407 = vcmp.ne.f32.partialorder %v391, %v391
        %vm408 = vcmp.ne.f32.partialorder %v392, %v392
        %vm409 = vcmp.ne.f32.partialorder %v393, %v393
        %vm410 = vcmp.ne.f32.partialorder %v394, %v394
        %vm411 = vcmp.ne.f32.partialorder %v395, %v395
        %v412 = vsel %vm396, 0.0, %v380
        %v413 = vsel %vm397, 0.0, %v381
        %v414 = vsel %vm398, 0.0, %v382
        %v415 = vsel %vm399, 0.0, %v383
        %v416 = vsel %vm400, 0.0, %v384
        %v417 = vsel %vm401, 0.0, %v385
        %v418 = vsel %vm402, 0.0, %v386
        %v419 = vsel %vm403, 0.0, %v387
        %v420 = vsel %vm404, 0.0, %v388
        %v421 = vsel %vm405, 0.0, %v389
        %v422 = vsel %vm406, 0.0, %v390
        %v423 = vsel %vm407, 0.0, %v391
        %v424 = vsel %vm408, 0.0, %v392
        %v425 = vsel %vm409, 0.0, %v393
        %v426 = vsel %vm410, 0.0, %v394
        %v427 = vsel %vm411, 0.0, %v395
        %v428 = vand.u32 2147483647, %v412
        %v429 = vand.u32 2147483647, %v413
        %v430 = vand.u32 2147483647, %v414
        %v431 = vand.u32 2147483647, %v415
        %v432 = vand.u32 2147483647, %v416
        %v433 = vand.u32 2147483647, %v417
        %v434 = vand.u32 2147483647, %v418
        %v435 = vand.u32 2147483647, %v419
        %v436 = vand.u32 2147483647, %v420
        %v437 = vand.u32 2147483647, %v421
        %v438 = vand.u32 2147483647, %v422
        %v439 = vand.u32 2147483647, %v423
        %v440 = vand.u32 2147483647, %v424
        %v441 = vand.u32 2147483647, %v425
        %v442 = vand.u32 2147483647, %v426
        %v443 = vand.u32 2147483647, %v427
        %vm444 = vcmp.eq.f32.partialorder %v428, inf
        %vm445 = vcmp.eq.f32.partialorder %v429, inf
        %vm446 = vcmp.eq.f32.partialorder %v430, inf
        %vm447 = vcmp.eq.f32.partialorder %v431, inf
        %vm448 = vcmp.eq.f32.partialorder %v432, inf
        %vm449 = vcmp.eq.f32.partialorder %v433, inf
        %vm450 = vcmp.eq.f32.partialorder %v434, inf
        %vm451 = vcmp.eq.f32.partialorder %v435, inf
        %vm452 = vcmp.eq.f32.partialorder %v436, inf
        %vm453 = vcmp.eq.f32.partialorder %v437, inf
        %vm454 = vcmp.eq.f32.partialorder %v438, inf
        %vm455 = vcmp.eq.f32.partialorder %v439, inf
        %vm456 = vcmp.eq.f32.partialorder %v440, inf
        %vm457 = vcmp.eq.f32.partialorder %v441, inf
        %vm458 = vcmp.eq.f32.partialorder %v442, inf
        %vm459 = vcmp.eq.f32.partialorder %v443, inf
        %v460 = vsel %vm444, 0.0, %v412
        %v461 = vsel %vm445, 0.0, %v413
        %v462 = vsel %vm446, 0.0, %v414
        %v463 = vsel %vm447, 0.0, %v415
        %v464 = vsel %vm448, 0.0, %v416
        %v465 = vsel %vm449, 0.0, %v417
        %v466 = vsel %vm450, 0.0, %v418
        %v467 = vsel %vm451, 0.0, %v419
        %v468 = vsel %vm452, 0.0, %v420
        %v469 = vsel %vm453, 0.0, %v421
        %v470 = vsel %vm454, 0.0, %v422
        %v471 = vsel %vm455, 0.0, %v423
        %v472 = vsel %vm456, 0.0, %v424
        %v473 = vsel %vm457, 0.0, %v425
        %v474 = vsel %vm458, 0.0, %v426
        %v475 = vsel %vm459, 0.0, %v427
        %v476 = vsel %vm444, 1, 0
        %v477 = vsel %vm445, 1, 0
        %v478 = vsel %vm446, 1, 0
        %v479 = vsel %vm447, 1, 0
        %v480 = vsel %vm448, 1, 0
        %v481 = vsel %vm449, 1, 0
        %v482 = vsel %vm450, 1, 0
        %v483 = vsel %vm451, 1, 0
        %v484 = vsel %vm452, 1, 0
        %v485 = vsel %vm453, 1, 0
        %v486 = vsel %vm454, 1, 0
        %v487 = vsel %vm455, 1, 0
        %v488 = vsel %vm456, 1, 0
        %v489 = vsel %vm457, 1, 0
        %v490 = vsel %vm458, 1, 0
        %v491 = vsel %vm459, 1, 0
        %v492 = vcvt.s32.f32 %v476
        %v493 = vcvt.s32.f32 %v477
        %v494 = vcvt.s32.f32 %v478
        %v495 = vcvt.s32.f32 %v479
        %v496 = vcvt.s32.f32 %v480
        %v497 = vcvt.s32.f32 %v481
        %v498 = vcvt.s32.f32 %v482
        %v499 = vcvt.s32.f32 %v483
        %v500 = vcvt.s32.f32 %v484
        %v501 = vcvt.s32.f32 %v485
        %v502 = vcvt.s32.f32 %v486
        %v503 = vcvt.s32.f32 %v487
        %v504 = vcvt.s32.f32 %v488
        %v505 = vcvt.s32.f32 %v489
        %v506 = vcvt.s32.f32 %v490
        %v507 = vcvt.s32.f32 %v491
        %v508 = vsub.f32 1.0, %v492
        %v509 = vsub.f32 1.0, %v493
        %v510 = vsub.f32 1.0, %v494
        %v511 = vsub.f32 1.0, %v495
        %v512 = vsub.f32 1.0, %v496
        %v513 = vsub.f32 1.0, %v497
        %v514 = vsub.f32 1.0, %v498
        %v515 = vsub.f32 1.0, %v499
        %v516 = vsub.f32 1.0, %v500
        %v517 = vsub.f32 1.0, %v501
        %v518 = vsub.f32 1.0, %v502
        %v519 = vsub.f32 1.0, %v503
        %v520 = vsub.f32 1.0, %v504
        %v521 = vsub.f32 1.0, %v505
        %v522 = vsub.f32 1.0, %v506
        %v523 = vsub.f32 1.0, %v507
        %v524 = vld [vmem:[%s326] sm:$0xff]
        %v525 = vld [vmem:[%s326 + $0x8] sm:$0xff]
        %v526 = vld [vmem:[%s326 + $0x10] sm:$0xff]
        %v527 = vld [vmem:[%s326 + $0x18] sm:$0xff]
        %v528 = vld [vmem:[%s326 + $0x20] sm:$0xff]
        %v529 = vld [vmem:[%s326 + $0x28] sm:$0xff]
        %v530 = vld [vmem:[%s326 + $0x30] sm:$0xff]
        %v531 = vld [vmem:[%s326 + $0x38] sm:$0xff]
        %v532 = vld [vmem:[%s326 + $0x40] sm:$0xff]
        %v533 = vld [vmem:[%s326 + $0x48] sm:$0xff]
        %v534 = vld [vmem:[%s326 + $0x50] sm:$0xff]
        %v535 = vld [vmem:[%s326 + $0x58] sm:$0xff]
        %v536 = vld [vmem:[%s326 + $0x60] sm:$0xff]
        %v537 = vld [vmem:[%s326 + $0x68] sm:$0xff]
        %v538 = vld [vmem:[%s326 + $0x70] sm:$0xff]
        %v539 = vld [vmem:[%s326 + $0x78] sm:$0xff]
        %v540 = vld [vmem:[#allocation6] sm:$0xff]
        %v541 = vld [vmem:[#allocation6 + $0x8] sm:$0xff]
        %v542 = vld [vmem:[#allocation8] sm:$0x1]
        %vm543 = vcmask 31744
        %544 = vst.msk [vmem:[#allocation2] sm:$0xff] %vm543, %v524
        %545 = vst.msk [vmem:[#allocation2 + $0x8] sm:$0xff] %vm543, %v525
        %546 = vst.msk [vmem:[#allocation2 + $0x10] sm:$0xff] %vm543, %v526
        %547 = vst.msk [vmem:[#allocation2 + $0x18] sm:$0xff] %vm543, %v527
        %548 = vst.msk [vmem:[#allocation2 + $0x20] sm:$0xff] %vm543, %v528
        %549 = vst.msk [vmem:[#allocation2 + $0x28] sm:$0xff] %vm543, %v529
        %550 = vst.msk [vmem:[#allocation2 + $0x30] sm:$0xff] %vm543, %v530
        %551 = vst.msk [vmem:[#allocation2 + $0x38] sm:$0xff] %vm543, %v531
        %552 = vst.msk [vmem:[#allocation2 + $0x40] sm:$0xff] %vm543, %v532
        %553 = vst.msk [vmem:[#allocation2 + $0x48] sm:$0xff] %vm543, %v533
        %554 = vst.msk [vmem:[#allocation2 + $0x50] sm:$0xff] %vm543, %v534
        %555 = vst.msk [vmem:[#allocation2 + $0x58] sm:$0xff] %vm543, %v535
        %556 = vst.msk [vmem:[#allocation2 + $0x60] sm:$0xff] %vm543, %v536
        %557 = vst.msk [vmem:[#allocation2 + $0x68] sm:$0xff] %vm543, %v537
        %558 = vst.msk [vmem:[#allocation2 + $0x70] sm:$0xff] %vm543, %v538
        %559 = vst.msk [vmem:[#allocation2 + $0x78] sm:$0xff] %vm543, %v539
        %v560 = vmul.f32 %v460, %v524
        %v561 = vmul.f32 %v461, %v525
        %v562 = vmul.f32 %v462, %v526
        %v563 = vmul.f32 %v463, %v527
        %v564 = vmul.f32 %v464, %v528
        %v565 = vmul.f32 %v465, %v529
        %v566 = vmul.f32 %v466, %v530
        %v567 = vmul.f32 %v467, %v531
        %v568 = vmul.f32 %v468, %v532
        %v569 = vmul.f32 %v469, %v533
        %v570 = vmul.f32 %v470, %v534
        %v571 = vmul.f32 %v471, %v535
        %v572 = vmul.f32 %v472, %v536
        %v573 = vmul.f32 %v473, %v537
        %v574 = vmul.f32 %v474, %v538
        %v575 = vmul.f32 %v475, %v539
        %576 = vmatprep.subr.mxu0 0.0
        %577 = vmatpush1.msra.mxu0 %v560
        %578 = vmatprep.subr.mxu0 0.0
        %579 = vmatpush1.msra.mxu0 %v561
        %580 = vmatprep.subr.mxu0 0.0
        %581 = vmatpush1.msra.mxu0 %v562
        %582 = vmatprep.subr.mxu0 0.0
        %583 = vmatpush1.msra.mxu0 %v563
        %584 = vmatprep.subr.mxu0 0.0
        %585 = vmatpush1.msra.mxu0 %v564
        %586 = vmatprep.subr.mxu0 0.0
        %587 = vmatpush1.msra.mxu0 %v565
        %588 = vmatprep.subr.mxu0 0.0
        %589 = vmatpush1.msra.mxu0 %v566
        %590 = vmatprep.subr.mxu0 0.0
        %591 = vmatpush1.msra.mxu0 %v567
        %592 = vmatprep.subr.mxu0 0.0
        %593 = vmatpush1.msra.mxu0 %v568
        %594 = vmatprep.subr.mxu0 0.0
        %595 = vmatpush1.msra.mxu0 %v569
        %596 = vmatprep.subr.mxu0 0.0
        %597 = vmatpush1.msra.mxu0 %v570
        %598 = vmatprep.subr.mxu0 0.0
        %599 = vmatpush1.msra.mxu0 %v571
        %600 = vmatprep.subr.mxu0 0.0
        %601 = vmatpush1.msra.mxu0 %v572
        %602 = vmatprep.subr.mxu0 0.0
        %603 = vmatpush1.msra.mxu0 %v573
        %604 = vmatprep.subr.mxu0 0.0
        %605 = vmatpush1.msra.mxu0 %v574
        %606 = vmatprep.subr.mxu0 0.0
        %607 = vmatpush1.msra.mxu0 %v575
        %608 = vmatprep.subr.mxu0 0.0
        %609 = vmatpush1.msra.mxu0 0.0
        %610 = vmatprep.subr.mxu0 0.0
        %611 = vmatpush1.msra.mxu0 0.0
        %612 = vmatprep.subr.mxu0 0.0
        %613 = vmatpush1.msra.mxu0 0.0
        %614 = vmatprep.subr.mxu0 0.0
        %615 = vmatpush1.msra.mxu0 0.0
        %616 = vmatprep.subr.mxu0 0.0
        %617 = vmatpush1.msra.mxu0 0.0
        %618 = vmatprep.subr.mxu0 0.0
        %619 = vmatpush1.msra.mxu0 0.0
        %620 = vmatprep.subr.mxu0 0.0
        %621 = vmatpush1.msra.mxu0 0.0
        %622 = vmatprep.subr.mxu0 0.0
        %623 = vmatpush1.msra.mxu0 0.0
        %624 = vmatprep.subr.mxu0 0.0
        %625 = vmatpush1.msra.mxu0 0.0
        %626 = vmatprep.subr.mxu0 0.0
        %627 = vmatpush1.msra.mxu0 0.0
        %628 = vmatprep.subr.mxu0 0.0
        %629 = vmatpush1.msra.mxu0 0.0
        %630 = vmatprep.subr.mxu0 0.0
        %631 = vmatpush1.msra.mxu0 0.0
        %632 = vmatprep.subr.mxu0 0.0
        %633 = vmatpush1.msra.mxu0 0.0
        %634 = vmatprep.subr.mxu0 0.0
        %635 = vmatpush1.msra.mxu0 0.0
        %636 = vmatprep.subr.mxu0 0.0
        %637 = vmatpush1.msra.mxu0 0.0
        %638 = vmatprep.subr.mxu0 0.0
        %639 = vmatpush1.msra.mxu0 0.0
        %640 = vmatprep.mubr.f32.mxu0 0.0
        %641 = vmatmul.mubr.f32.gmra.mrb[0].mxu0 %v332
        %v642 = vpop.f32.mrb[0].mxu0
        %v643 = vadd.f32 0.0, %v642
        %v644 = vpop.f32.mrb[0].mxu0
        %645 = vmatprep.mubr.f32.mxu0 0.0
        %646 = vmatmul.mubr.f32.gmra.mrb[0].mxu0 %v333
        %v647 = vpop.f32.mrb[0].mxu0
        %v648 = vadd.f32 0.0, %v647
        %v649 = vpop.f32.mrb[0].mxu0
        %650 = vmatprep.mubr.f32.mxu0 0.0
        %651 = vmatmul.mubr.f32.gmra.mrb[0].mxu0 %v334
        %v652 = vpop.f32.mrb[0].mxu0
        %v653 = vadd.f32 0.0, %v652
        %v654 = vpop.f32.mrb[0].mxu0
        %655 = vmatprep.mubr.f32.mxu0 0.0
        %656 = vmatmul.mubr.f32.gmra.mrb[0].mxu0 %v335
        %v657 = vpop.f32.mrb[0].mxu0
        %v658 = vadd.f32 0.0, %v657
        %v659 = vpop.f32.mrb[0].mxu0
        %660 = vmatprep.mubr.f32.mxu0 0.0
        %661 = vmatmul.mubr.f32.gmra.mrb[0].mxu0 %v336
        %v662 = vpop.f32.mrb[0].mxu0
        %v663 = vadd.f32 0.0, %v662
        %v664 = vpop.f32.mrb[0].mxu0
        %665 = vmatprep.mubr.f32.mxu0 0.0
        %666 = vmatmul.mubr.f32.gmra.mrb[0].mxu0 %v337
        %v667 = vpop.f32.mrb[0].mxu0
        %v668 = vadd.f32 0.0, %v667
        %v669 = vpop.f32.mrb[0].mxu0
        %670 = vmatprep.mubr.f32.mxu0 0.0
        %671 = vmatmul.mubr.f32.gmra.mrb[0].mxu0 %v338
        %v672 = vpop.f32.mrb[0].mxu0
        %v673 = vadd.f32 0.0, %v672
        %v674 = vpop.f32.mrb[0].mxu0
        %675 = vmatprep.mubr.f32.mxu0 0.0
        %676 = vmatmul.mubr.f32.gmra.mrb[0].mxu0 %v339
        %v677 = vpop.f32.mrb[0].mxu0
        %v678 = vadd.f32 0.0, %v677
        %v679 = vpop.f32.mrb[0].mxu0
        %680 = vmatprep.mubr.f32.mxu0 0.0
        %681 = vmatmul.mubr.f32.gmra.mrb[0].mxu0 %v340
        %v682 = vpop.f32.mrb[0].mxu0
        %v683 = vadd.f32 0.0, %v682
        %v684 = vpop.f32.mrb[0].mxu0
        %685 = vmatprep.mubr.f32.mxu0 0.0
        %686 = vmatmul.mubr.f32.gmra.mrb[0].mxu0 %v341
        %v687 = vpop.f32.mrb[0].mxu0
        %v688 = vadd.f32 0.0, %v687
        %v689 = vpop.f32.mrb[0].mxu0
        %690 = vmatprep.mubr.f32.mxu0 0.0
        %691 = vmatmul.mubr.f32.gmra.mrb[0].mxu0 %v342
        %v692 = vpop.f32.mrb[0].mxu0
        %v693 = vadd.f32 0.0, %v692
        %v694 = vpop.f32.mrb[0].mxu0
        %695 = vmatprep.mubr.f32.mxu0 0.0
        %696 = vmatmul.mubr.f32.gmra.mrb[0].mxu0 %v343
        %v697 = vpop.f32.mrb[0].mxu0
        %v698 = vadd.f32 0.0, %v697
        %v699 = vpop.f32.mrb[0].mxu0
        %700 = vmatprep.mubr.f32.mxu0 0.0
        %701 = vmatmul.mubr.f32.gmra.mrb[0].mxu0 %v344
        %v702 = vpop.f32.mrb[0].mxu0
        %v703 = vadd.f32 0.0, %v702
        %v704 = vpop.f32.mrb[0].mxu0
        %705 = vmatprep.mubr.f32.mxu0 0.0
        %706 = vmatmul.mubr.f32.gmra.mrb[0].mxu0 %v345
        %v707 = vpop.f32.mrb[0].mxu0
        %v708 = vadd.f32 0.0, %v707
        %v709 = vpop.f32.mrb[0].mxu0
        %710 = vmatprep.mubr.f32.mxu0 0.0
        %711 = vmatmul.mubr.f32.gmra.mrb[0].mxu0 %v346
        %v712 = vpop.f32.mrb[0].mxu0
        %v713 = vadd.f32 0.0, %v712
        %v714 = vpop.f32.mrb[0].mxu0
        %715 = vmatprep.mubr.f32.mxu0 0.0
        %716 = vmatmul.mubr.f32.gmra.mrb[0].mxu0 %v347
        %v717 = vpop.f32.mrb[0].mxu0
        %v718 = vadd.f32 0.0, %v717
        %v719 = vpop.f32.mrb[0].mxu0
        %720 = vdwg.mxu0
        %v721 = vmul.f32 %v508, %v524
        %v722 = vmul.f32 %v509, %v525
        %v723 = vmul.f32 %v510, %v526
        %v724 = vmul.f32 %v511, %v527
        %v725 = vmul.f32 %v512, %v528
        %v726 = vmul.f32 %v513, %v529
        %v727 = vmul.f32 %v514, %v530
        %v728 = vmul.f32 %v515, %v531
        %v729 = vmul.f32 %v516, %v532
        %v730 = vmul.f32 %v517, %v533
        %v731 = vmul.f32 %v518, %v534
        %v732 = vmul.f32 %v519, %v535
        %v733 = vmul.f32 %v520, %v536
        %v734 = vmul.f32 %v521, %v537
        %v735 = vmul.f32 %v522, %v538
        %v736 = vmul.f32 %v523, %v539
        %v737 = vmul.f32 %v460, %v643
        %v738 = vmul.f32 %v461, %v648
        %v739 = vmul.f32 %v462, %v653
        %v740 = vmul.f32 %v463, %v658
        %v741 = vmul.f32 %v464, %v663
        %v742 = vmul.f32 %v465, %v668
        %v743 = vmul.f32 %v466, %v673
        %v744 = vmul.f32 %v467, %v678
        %v745 = vmul.f32 %v468, %v683
        %v746 = vmul.f32 %v469, %v688
        %v747 = vmul.f32 %v470, %v693
        %v748 = vmul.f32 %v471, %v698
        %v749 = vmul.f32 %v472, %v703
        %v750 = vmul.f32 %v473, %v708
        %v751 = vmul.f32 %v474, %v713
        %v752 = vmul.f32 %v475, %v718
        %v753 = vsub.f32 %v721, %v737
        %v754 = vsub.f32 %v722, %v738
        %v755 = vsub.f32 %v723, %v739
        %v756 = vsub.f32 %v724, %v740
        %v757 = vsub.f32 %v725, %v741
        %v758 = vsub.f32 %v726, %v742
        %v759 = vsub.f32 %v727, %v743
        %v760 = vsub.f32 %v728, %v744
        %v761 = vsub.f32 %v729, %v745
        %v762 = vsub.f32 %v730, %v746
        %v763 = vsub.f32 %v731, %v747
        %v764 = vsub.f32 %v732, %v748
        %v765 = vsub.f32 %v733, %v749
        %v766 = vsub.f32 %v734, %v750
        %v767 = vsub.f32 %v735, %v751
        %v768 = vsub.f32 %v736, %v752
        %785 = vrot.lane.b32.xlu0 %v753, 4
        %v786 = vpop.permute.xlu0 %785
        %787 = vrot.lane.b32.xlu0 %v754, 4
        %v788 = vpop.permute.xlu0 %787
        %789 = vrot.lane.b32.xlu0 %v755, 4
        %v790 = vpop.permute.xlu0 %789
        %791 = vrot.lane.b32.xlu0 %v756, 4
        %v792 = vpop.permute.xlu0 %791
        %793 = vrot.lane.b32.xlu0 %v757, 4
        %v794 = vpop.permute.xlu0 %793
        %795 = vrot.lane.b32.xlu0 %v758, 4
        %v796 = vpop.permute.xlu0 %795
        %797 = vrot.lane.b32.xlu0 %v759, 4
        %v798 = vpop.permute.xlu0 %797
        %799 = vrot.lane.b32.xlu0 %v760, 4
        %v800 = vpop.permute.xlu0 %799
        %801 = vrot.lane.b32.xlu0 %v761, 4
        %v802 = vpop.permute.xlu0 %801
        %803 = vrot.lane.b32.xlu0 %v762, 4
        %v804 = vpop.permute.xlu0 %803
        %805 = vrot.lane.b32.xlu0 %v763, 4
        %v806 = vpop.permute.xlu0 %805
        %807 = vrot.lane.b32.xlu0 %v764, 4
        %v808 = vpop.permute.xlu0 %807
        %809 = vrot.lane.b32.xlu0 %v765, 4
        %v810 = vpop.permute.xlu0 %809
        %811 = vrot.lane.b32.xlu0 %v766, 4
        %v812 = vpop.permute.xlu0 %811
        %813 = vrot.lane.b32.xlu0 %v767, 4
        %v814 = vpop.permute.xlu0 %813
        %815 = vrot.lane.b32.xlu0 %v768, 4
        %v816 = vpop.permute.xlu0 %815
        %vm833 = vcmask 64544
        %834 = vst.msk [vmem:[#allocation2] sm:$0xff] %vm833, %v786
        %835 = vst.msk [vmem:[#allocation2 + $0x8] sm:$0xff] %vm833, %v788
        %836 = vst.msk [vmem:[#allocation2 + $0x10] sm:$0xff] %vm833, %v790
        %837 = vst.msk [vmem:[#allocation2 + $0x18] sm:$0xff] %vm833, %v792
        %838 = vst.msk [vmem:[#allocation2 + $0x20] sm:$0xff] %vm833, %v794
        %839 = vst.msk [vmem:[#allocation2 + $0x28] sm:$0xff] %vm833, %v796
        %840 = vst.msk [vmem:[#allocation2 + $0x30] sm:$0xff] %vm833, %v798
        %841 = vst.msk [vmem:[#allocation2 + $0x38] sm:$0xff] %vm833, %v800
        %842 = vst.msk [vmem:[#allocation2 + $0x40] sm:$0xff] %vm833, %v802
        %843 = vst.msk [vmem:[#allocation2 + $0x48] sm:$0xff] %vm833, %v804
        %844 = vst.msk [vmem:[#allocation2 + $0x50] sm:$0xff] %vm833, %v806
        %845 = vst.msk [vmem:[#allocation2 + $0x58] sm:$0xff] %vm833, %v808
        %846 = vst.msk [vmem:[#allocation2 + $0x60] sm:$0xff] %vm833, %v810
        %847 = vst.msk [vmem:[#allocation2 + $0x68] sm:$0xff] %vm833, %v812
        %848 = vst.msk [vmem:[#allocation2 + $0x70] sm:$0xff] %vm833, %v814
        %849 = vst.msk [vmem:[#allocation2 + $0x78] sm:$0xff] %vm833, %v816
        %v850 = vmul.f32 %v460, %v753
        %v851 = vmul.f32 %v461, %v754
        %v852 = vmul.f32 %v462, %v755
        %v853 = vmul.f32 %v463, %v756
        %v854 = vmul.f32 %v464, %v757
        %v855 = vmul.f32 %v465, %v758
        %v856 = vmul.f32 %v466, %v759
        %v857 = vmul.f32 %v467, %v760
        %v858 = vmul.f32 %v468, %v761
        %v859 = vmul.f32 %v469, %v762
        %v860 = vmul.f32 %v470, %v763
        %v861 = vmul.f32 %v471, %v764
        %v862 = vmul.f32 %v472, %v765
        %v863 = vmul.f32 %v473, %v766
        %v864 = vmul.f32 %v474, %v767
        %v865 = vmul.f32 %v475, %v768
        %866 = vmatprep.subr.mxu0 0.0
        %867 = vmatpush1.msra.mxu0 %v850
        %868 = vmatprep.subr.mxu0 0.0
        %869 = vmatpush1.msra.mxu0 %v851
        %870 = vmatprep.subr.mxu0 0.0
        %871 = vmatpush1.msra.mxu0 %v852
        %872 = vmatprep.subr.mxu0 0.0
        %873 = vmatpush1.msra.mxu0 %v853
        %874 = vmatprep.subr.mxu0 0.0
        %875 = vmatpush1.msra.mxu0 %v854
        %876 = vmatprep.subr.mxu0 0.0
        %877 = vmatpush1.msra.mxu0 %v855
        %878 = vmatprep.subr.mxu0 0.0
        %879 = vmatpush1.msra.mxu0 %v856
        %880 = vmatprep.subr.mxu0 0.0
        %881 = vmatpush1.msra.mxu0 %v857
        %882 = vmatprep.subr.mxu0 0.0
        %883 = vmatpush1.msra.mxu0 %v858
        %884 = vmatprep.subr.mxu0 0.0
        %885 = vmatpush1.msra.mxu0 %v859
        %886 = vmatprep.subr.mxu0 0.0
        %887 = vmatpush1.msra.mxu0 %v860
        %888 = vmatprep.subr.mxu0 0.0
        %889 = vmatpush1.msra.mxu0 %v861
        %890 = vmatprep.subr.mxu0 0.0
        %891 = vmatpush1.msra.mxu0 %v862
        %892 = vmatprep.subr.mxu0 0.0
        %893 = vmatpush1.msra.mxu0 %v863
        %894 = vmatprep.subr.mxu0 0.0
        %895 = vmatpush1.msra.mxu0 %v864
        %896 = vmatprep.subr.mxu0 0.0
        %897 = vmatpush1.msra.mxu0 %v865
        %898 = vmatprep.subr.mxu0 0.0
        %899 = vmatpush1.msra.mxu0 0.0
        %900 = vmatprep.subr.mxu0 0.0
        %901 = vmatpush1.msra.mxu0 0.0
        %902 = vmatprep.subr.mxu0 0.0
        %903 = vmatpush1.msra.mxu0 0.0
        %904 = vmatprep.subr.mxu0 0.0
        %905 = vmatpush1.msra.mxu0 0.0
        %906 = vmatprep.subr.mxu0 0.0
        %907 = vmatpush1.msra.mxu0 0.0
        %908 = vmatprep.subr.mxu0 0.0
        %909 = vmatpush1.msra.mxu0 0.0
        %910 = vmatprep.subr.mxu0 0.0
        %911 = vmatpush1.msra.mxu0 0.0
        %912 = vmatprep.subr.mxu0 0.0
        %913 = vmatpush1.msra.mxu0 0.0
        %914 = vmatprep.subr.mxu0 0.0
        %915 = vmatpush1.msra.mxu0 0.0
        %916 = vmatprep.subr.mxu0 0.0
        %917 = vmatpush1.msra.mxu0 0.0
        %918 = vmatprep.subr.mxu0 0.0
        %919 = vmatpush1.msra.mxu0 0.0
        %920 = vmatprep.subr.mxu0 0.0
        %921 = vmatpush1.msra.mxu0 0.0
        %922 = vmatprep.subr.mxu0 0.0
        %923 = vmatpush1.msra.mxu0 0.0
        %924 = vmatprep.subr.mxu0 0.0
        %925 = vmatpush1.msra.mxu0 0.0
        %926 = vmatprep.subr.mxu0 0.0
        %927 = vmatpush1.msra.mxu0 0.0
        %928 = vmatprep.subr.mxu0 0.0
        %929 = vmatpush1.msra.mxu0 0.0
        %930 = vmatprep.mubr.f32.mxu0 0.0
        %931 = vmatmul.mubr.f32.gmra.mrb[0].mxu0 %v332
        %v932 = vpop.f32.mrb[0].mxu0
        %v933 = vadd.f32 0.0, %v932
        %v934 = vpop.f32.mrb[0].mxu0
        %935 = vmatprep.mubr.f32.mxu0 0.0
        %936 = vmatmul.mubr.f32.gmra.mrb[0].mxu0 %v333
        %v937 = vpop.f32.mrb[0].mxu0
        %v938 = vadd.f32 0.0, %v937
        %v939 = vpop.f32.mrb[0].mxu0
        %940 = vmatprep.mubr.f32.mxu0 0.0
        %941 = vmatmul.mubr.f32.gmra.mrb[0].mxu0 %v334
        %v942 = vpop.f32.mrb[0].mxu0
        %v943 = vadd.f32 0.0, %v942
        %v944 = vpop.f32.mrb[0].mxu0
        %945 = vmatprep.mubr.f32.mxu0 0.0
        %946 = vmatmul.mubr.f32.gmra.mrb[0].mxu0 %v335
        %v947 = vpop.f32.mrb[0].mxu0
        %v948 = vadd.f32 0.0, %v947
        %v949 = vpop.f32.mrb[0].mxu0
        %950 = vmatprep.mubr.f32.mxu0 0.0
        %951 = vmatmul.mubr.f32.gmra.mrb[0].mxu0 %v336
        %v952 = vpop.f32.mrb[0].mxu0
        %v953 = vadd.f32 0.0, %v952
        %v954 = vpop.f32.mrb[0].mxu0
        %955 = vmatprep.mubr.f32.mxu0 0.0
        %956 = vmatmul.mubr.f32.gmra.mrb[0].mxu0 %v337
        %v957 = vpop.f32.mrb[0].mxu0
        %v958 = vadd.f32 0.0, %v957
        %v959 = vpop.f32.mrb[0].mxu0
        %960 = vmatprep.mubr.f32.mxu0 0.0
        %961 = vmatmul.mubr.f32.gmra.mrb[0].mxu0 %v338
        %v962 = vpop.f32.mrb[0].mxu0
        %v963 = vadd.f32 0.0, %v962
        %v964 = vpop.f32.mrb[0].mxu0
        %965 = vmatprep.mubr.f32.mxu0 0.0
        %966 = vmatmul.mubr.f32.gmra.mrb[0].mxu0 %v339
        %v967 = vpop.f32.mrb[0].mxu0
        %v968 = vadd.f32 0.0, %v967
        %v969 = vpop.f32.mrb[0].mxu0
        %970 = vmatprep.mubr.f32.mxu0 0.0
        %971 = vmatmul.mubr.f32.gmra.mrb[0].mxu0 %v340
        %v972 = vpop.f32.mrb[0].mxu0
        %v973 = vadd.f32 0.0, %v972
        %v974 = vpop.f32.mrb[0].mxu0
        %975 = vmatprep.mubr.f32.mxu0 0.0
        %976 = vmatmul.mubr.f32.gmra.mrb[0].mxu0 %v341
        %v977 = vpop.f32.mrb[0].mxu0
        %v978 = vadd.f32 0.0, %v977
        %v979 = vpop.f32.mrb[0].mxu0
        %980 = vmatprep.mubr.f32.mxu0 0.0
        %981 = vmatmul.mubr.f32.gmra.mrb[0].mxu0 %v342
        %v982 = vpop.f32.mrb[0].mxu0
        %v983 = vadd.f32 0.0, %v982
        %v984 = vpop.f32.mrb[0].mxu0
        %985 = vmatprep.mubr.f32.mxu0 0.0
        %986 = vmatmul.mubr.f32.gmra.mrb[0].mxu0 %v343
        %v987 = vpop.f32.mrb[0].mxu0
        %v988 = vadd.f32 0.0, %v987
        %v989 = vpop.f32.mrb[0].mxu0
        %990 = vmatprep.mubr.f32.mxu0 0.0
        %991 = vmatmul.mubr.f32.gmra.mrb[0].mxu0 %v344
        %v992 = vpop.f32.mrb[0].mxu0
        %v993 = vadd.f32 0.0, %v992
        %v994 = vpop.f32.mrb[0].mxu0
        %995 = vmatprep.mubr.f32.mxu0 0.0
        %996 = vmatmul.mubr.f32.gmra.mrb[0].mxu0 %v345
        %v997 = vpop.f32.mrb[0].mxu0
        %v998 = vadd.f32 0.0, %v997
        %v999 = vpop.f32.mrb[0].mxu0
        %1000 = vmatprep.mubr.f32.mxu0 0.0
        %1001 = vmatmul.mubr.f32.gmra.mrb[0].mxu0 %v346
        %v1002 = vpop.f32.mrb[0].mxu0
        %v1003 = vadd.f32 0.0, %v1002
        %v1004 = vpop.f32.mrb[0].mxu0
        %1005 = vmatprep.mubr.f32.mxu0 0.0
        %1006 = vmatmul.mubr.f32.gmra.mrb[0].mxu0 %v347
        %v1007 = vpop.f32.mrb[0].mxu0
        %v1008 = vadd.f32 0.0, %v1007
        %v1009 = vpop.f32.mrb[0].mxu0
        %1010 = vdwg.mxu0
        %v1011 = vmul.f32 %v508, %v753
        %v1012 = vmul.f32 %v509, %v754
        %v1013 = vmul.f32 %v510, %v755
        %v1014 = vmul.f32 %v511, %v756
        %v1015 = vmul.f32 %v512, %v757
        %v1016 = vmul.f32 %v513, %v758
        %v1017 = vmul.f32 %v514, %v759
        %v1018 = vmul.f32 %v515, %v760
        %v1019 = vmul.f32 %v516, %v761
        %v1020 = vmul.f32 %v517, %v762
        %v1021 = vmul.f32 %v518, %v763
        %v1022 = vmul.f32 %v519, %v764
        %v1023 = vmul.f32 %v520, %v765
        %v1024 = vmul.f32 %v521, %v766
        %v1025 = vmul.f32 %v522, %v767
        %v1026 = vmul.f32 %v523, %v768
        %v1027 = vmul.f32 %v460, %v933
        %v1028 = vmul.f32 %v461, %v938
        %v1029 = vmul.f32 %v462, %v943
        %v1030 = vmul.f32 %v463, %v948
        %v1031 = vmul.f32 %v464, %v953
        %v1032 = vmul.f32 %v465, %v958
        %v1033 = vmul.f32 %v466, %v963
        %v1034 = vmul.f32 %v467, %v968
        %v1035 = vmul.f32 %v468, %v973
        %v1036 = vmul.f32 %v469, %v978
        %v1037 = vmul.f32 %v470, %v983
        %v1038 = vmul.f32 %v471, %v988
        %v1039 = vmul.f32 %v472, %v993
        %v1040 = vmul.f32 %v473, %v998
        %v1041 = vmul.f32 %v474, %v1003
        %v1042 = vmul.f32 %v475, %v1008
        %v1043 = vsub.f32 %v1011, %v1027
        %v1044 = vsub.f32 %v1012, %v1028
        %v1045 = vsub.f32 %v1013, %v1029
        %v1046 = vsub.f32 %v1014, %v1030
        %v1047 = vsub.f32 %v1015, %v1031
        %v1048 = vsub.f32 %v1016, %v1032
        %v1049 = vsub.f32 %v1017, %v1033
        %v1050 = vsub.f32 %v1018, %v1034
        %v1051 = vsub.f32 %v1019, %v1035
        %v1052 = vsub.f32 %v1020, %v1036
        %v1053 = vsub.f32 %v1021, %v1037
        %v1054 = vsub.f32 %v1022, %v1038
        %v1055 = vsub.f32 %v1023, %v1039
        %v1056 = vsub.f32 %v1024, %v1040
        %v1057 = vsub.f32 %v1025, %v1041
        %v1058 = vsub.f32 %v1026, %v1042
        %v1059 = vmul.f32 %v1043, 2.0
        %v1060 = vmul.f32 %v1044, 2.0
        %v1061 = vmul.f32 %v1045, 2.0
        %v1062 = vmul.f32 %v1046, 2.0
        %v1063 = vmul.f32 %v1047, 2.0
        %v1064 = vmul.f32 %v1048, 2.0
        %v1065 = vmul.f32 %v1049, 2.0
        %v1066 = vmul.f32 %v1050, 2.0
        %v1067 = vmul.f32 %v1051, 2.0
        %v1068 = vmul.f32 %v1052, 2.0
        %v1069 = vmul.f32 %v1053, 2.0
        %v1070 = vmul.f32 %v1054, 2.0
        %v1071 = vmul.f32 %v1055, 2.0
        %v1072 = vmul.f32 %v1056, 2.0
        %v1073 = vmul.f32 %v1057, 2.0
        %v1074 = vmul.f32 %v1058, 2.0
        %v1075 = vsub.f32 %v1059, %v524
        %v1076 = vsub.f32 %v1060, %v525
        %v1077 = vsub.f32 %v1061, %v526
        %v1078 = vsub.f32 %v1062, %v527
        %v1079 = vsub.f32 %v1063, %v528
        %v1080 = vsub.f32 %v1064, %v529
        %v1081 = vsub.f32 %v1065, %v530
        %v1082 = vsub.f32 %v1066, %v531
        %v1083 = vsub.f32 %v1067, %v532
        %v1084 = vsub.f32 %v1068, %v533
        %v1085 = vsub.f32 %v1069, %v534
        %v1086 = vsub.f32 %v1070, %v535
        %v1087 = vsub.f32 %v1071, %v536
        %v1088 = vsub.f32 %v1072, %v537
        %v1089 = vsub.f32 %v1073, %v538
        %v1090 = vsub.f32 %v1074, %v539
        %1107 = vrot.lane.b32.xlu0 %v1075, 8
        %v1108 = vpop.permute.xlu0 %1107
        %1109 = vrot.lane.b32.xlu0 %v1076, 8
        %v1110 = vpop.permute.xlu0 %1109
        %1111 = vrot.lane.b32.xlu0 %v1077, 8
        %v1112 = vpop.permute.xlu0 %1111
        %1113 = vrot.lane.b32.xlu0 %v1078, 8
        %v1114 = vpop.permute.xlu0 %1113
        %1115 = vrot.lane.b32.xlu0 %v1079, 8
        %v1116 = vpop.permute.xlu0 %1115
        %1117 = vrot.lane.b32.xlu0 %v1080, 8
        %v1118 = vpop.permute.xlu0 %1117
        %1119 = vrot.lane.b32.xlu0 %v1081, 8
        %v1120 = vpop.permute.xlu0 %1119
        %1121 = vrot.lane.b32.xlu0 %v1082, 8
        %v1122 = vpop.permute.xlu0 %1121
        %1123 = vrot.lane.b32.xlu0 %v1083, 8
        %v1124 = vpop.permute.xlu0 %1123
        %1125 = vrot.lane.b32.xlu0 %v1084, 8
        %v1126 = vpop.permute.xlu0 %1125
        %1127 = vrot.lane.b32.xlu0 %v1085, 8
        %v1128 = vpop.permute.xlu0 %1127
        %1129 = vrot.lane.b32.xlu0 %v1086, 8
        %v1130 = vpop.permute.xlu0 %1129
        %1131 = vrot.lane.b32.xlu0 %v1087, 8
        %v1132 = vpop.permute.xlu0 %1131
        %1133 = vrot.lane.b32.xlu0 %v1088, 8
        %v1134 = vpop.permute.xlu0 %1133
        %1135 = vrot.lane.b32.xlu0 %v1089, 8
        %v1136 = vpop.permute.xlu0 %1135
        %1137 = vrot.lane.b32.xlu0 %v1090, 8
        %v1138 = vpop.permute.xlu0 %1137
        %vm1155 = vcmask 97344
        %1156 = vst.msk [vmem:[#allocation2] sm:$0xff] %vm1155, %v1108
        %1157 = vst.msk [vmem:[#allocation2 + $0x8] sm:$0xff] %vm1155, %v1110
        %1158 = vst.msk [vmem:[#allocation2 + $0x10] sm:$0xff] %vm1155, %v1112
        %1159 = vst.msk [vmem:[#allocation2 + $0x18] sm:$0xff] %vm1155, %v1114
        %1160 = vst.msk [vmem:[#allocation2 + $0x20] sm:$0xff] %vm1155, %v1116
        %1161 = vst.msk [vmem:[#allocation2 + $0x28] sm:$0xff] %vm1155, %v1118
        %1162 = vst.msk [vmem:[#allocation2 + $0x30] sm:$0xff] %vm1155, %v1120
        %1163 = vst.msk [vmem:[#allocation2 + $0x38] sm:$0xff] %vm1155, %v1122
        %1164 = vst.msk [vmem:[#allocation2 + $0x40] sm:$0xff] %vm1155, %v1124
        %1165 = vst.msk [vmem:[#allocation2 + $0x48] sm:$0xff] %vm1155, %v1126
        %1166 = vst.msk [vmem:[#allocation2 + $0x50] sm:$0xff] %vm1155, %v1128
        %1167 = vst.msk [vmem:[#allocation2 + $0x58] sm:$0xff] %vm1155, %v1130
        %1168 = vst.msk [vmem:[#allocation2 + $0x60] sm:$0xff] %vm1155, %v1132
        %1169 = vst.msk [vmem:[#allocation2 + $0x68] sm:$0xff] %vm1155, %v1134
        %1170 = vst.msk [vmem:[#allocation2 + $0x70] sm:$0xff] %vm1155, %v1136
        %1171 = vst.msk [vmem:[#allocation2 + $0x78] sm:$0xff] %vm1155, %v1138
        %v1172 = vmul.f32 %v460, %v1075
        %v1173 = vmul.f32 %v461, %v1076
        %v1174 = vmul.f32 %v462, %v1077
        %v1175 = vmul.f32 %v463, %v1078
        %v1176 = vmul.f32 %v464, %v1079
        %v1177 = vmul.f32 %v465, %v1080
        %v1178 = vmul.f32 %v466, %v1081
        %v1179 = vmul.f32 %v467, %v1082
        %v1180 = vmul.f32 %v468, %v1083
        %v1181 = vmul.f32 %v469, %v1084
        %v1182 = vmul.f32 %v470, %v1085
        %v1183 = vmul.f32 %v471, %v1086
        %v1184 = vmul.f32 %v472, %v1087
        %v1185 = vmul.f32 %v473, %v1088
        %v1186 = vmul.f32 %v474, %v1089
        %v1187 = vmul.f32 %v475, %v1090
        %1188 = vmatprep.subr.mxu0 0.0
        %1189 = vmatpush1.msra.mxu0 %v1172
        %1190 = vmatprep.subr.mxu0 0.0
        %1191 = vmatpush1.msra.mxu0 %v1173
        %1192 = vmatprep.subr.mxu0 0.0
        %1193 = vmatpush1.msra.mxu0 %v1174
        %1194 = vmatprep.subr.mxu0 0.0
        %1195 = vmatpush1.msra.mxu0 %v1175
        %1196 = vmatprep.subr.mxu0 0.0
        %1197 = vmatpush1.msra.mxu0 %v1176
        %1198 = vmatprep.subr.mxu0 0.0
        %1199 = vmatpush1.msra.mxu0 %v1177
        %1200 = vmatprep.subr.mxu0 0.0
        %1201 = vmatpush1.msra.mxu0 %v1178
        %1202 = vmatprep.subr.mxu0 0.0
        %1203 = vmatpush1.msra.mxu0 %v1179
        %1204 = vmatprep.subr.mxu0 0.0
        %1205 = vmatpush1.msra.mxu0 %v1180
        %1206 = vmatprep.subr.mxu0 0.0
        %1207 = vmatpush1.msra.mxu0 %v1181
        %1208 = vmatprep.subr.mxu0 0.0
        %1209 = vmatpush1.msra.mxu0 %v1182
        %1210 = vmatprep.subr.mxu0 0.0
        %1211 = vmatpush1.msra.mxu0 %v1183
        %1212 = vmatprep.subr.mxu0 0.0
        %1213 = vmatpush1.msra.mxu0 %v1184
        %1214 = vmatprep.subr.mxu0 0.0
        %1215 = vmatpush1.msra.mxu0 %v1185
        %1216 = vmatprep.subr.mxu0 0.0
        %1217 = vmatpush1.msra.mxu0 %v1186
        %1218 = vmatprep.subr.mxu0 0.0
        %1219 = vmatpush1.msra.mxu0 %v1187
        %1220 = vmatprep.subr.mxu0 0.0
        %1221 = vmatpush1.msra.mxu0 0.0
        %1222 = vmatprep.subr.mxu0 0.0
        %1223 = vmatpush1.msra.mxu0 0.0
        %1224 = vmatprep.subr.mxu0 0.0
        %1225 = vmatpush1.msra.mxu0 0.0
        %1226 = vmatprep.subr.mxu0 0.0
        %1227 = vmatpush1.msra.mxu0 0.0
        %1228 = vmatprep.subr.mxu0 0.0
        %1229 = vmatpush1.msra.mxu0 0.0
        %1230 = vmatprep.subr.mxu0 0.0
        %1231 = vmatpush1.msra.mxu0 0.0
        %1232 = vmatprep.subr.mxu0 0.0
        %1233 = vmatpush1.msra.mxu0 0.0
        %1234 = vmatprep.subr.mxu0 0.0
        %1235 = vmatpush1.msra.mxu0 0.0
        %1236 = vmatprep.subr.mxu0 0.0
        %1237 = vmatpush1.msra.mxu0 0.0
        %1238 = vmatprep.subr.mxu0 0.0
        %1239 = vmatpush1.msra.mxu0 0.0
        %1240 = vmatprep.subr.mxu0 0.0
        %1241 = vmatpush1.msra.mxu0 0.0
        %1242 = vmatprep.subr.mxu0 0.0
        %1243 = vmatpush1.msra.mxu0 0.0
        %1244 = vmatprep.subr.mxu0 0.0
        %1245 = vmatpush1.msra.mxu0 0.0
        %1246 = vmatprep.subr.mxu0 0.0
        %1247 = vmatpush1.msra.mxu0 0.0
        %1248 = vmatprep.subr.mxu0 0.0
        %1249 = vmatpush1.msra.mxu0 0.0
        %1250 = vmatprep.subr.mxu0 0.0
        %1251 = vmatpush1.msra.mxu0 0.0
        %1252 = vmatprep.mubr.f32.mxu0 0.0
        %1253 = vmatmul.mubr.f32.gmra.mrb[0].mxu0 %v332
        %v1254 = vpop.f32.mrb[0].mxu0
        %v1255 = vadd.f32 0.0, %v1254
        %v1256 = vpop.f32.mrb[0].mxu0
        %1257 = vmatprep.mubr.f32.mxu0 0.0
        %1258 = vmatmul.mubr.f32.gmra.mrb[0].mxu0 %v333
        %v1259 = vpop.f32.mrb[0].mxu0
        %v1260 = vadd.f32 0.0, %v1259
        %v1261 = vpop.f32.mrb[0].mxu0
        %1262 = vmatprep.mubr.f32.mxu0 0.0
        %1263 = vmatmul.mubr.f32.gmra.mrb[0].mxu0 %v334
        %v1264 = vpop.f32.mrb[0].mxu0
        %v1265 = vadd.f32 0.0, %v1264
        %v1266 = vpop.f32.mrb[0].mxu0
        %1267 = vmatprep.mubr.f32.mxu0 0.0
        %1268 = vmatmul.mubr.f32.gmra.mrb[0].mxu0 %v335
        %v1269 = vpop.f32.mrb[0].mxu0
        %v1270 = vadd.f32 0.0, %v1269
        %v1271 = vpop.f32.mrb[0].mxu0
        %1272 = vmatprep.mubr.f32.mxu0 0.0
        %1273 = vmatmul.mubr.f32.gmra.mrb[0].mxu0 %v336
        %v1274 = vpop.f32.mrb[0].mxu0
        %v1275 = vadd.f32 0.0, %v1274
        %v1276 = vpop.f32.mrb[0].mxu0
        %1277 = vmatprep.mubr.f32.mxu0 0.0
        %1278 = vmatmul.mubr.f32.gmra.mrb[0].mxu0 %v337
        %v1279 = vpop.f32.mrb[0].mxu0
        %v1280 = vadd.f32 0.0, %v1279
        %v1281 = vpop.f32.mrb[0].mxu0
        %1282 = vmatprep.mubr.f32.mxu0 0.0
        %1283 = vmatmul.mubr.f32.gmra.mrb[0].mxu0 %v338
        %v1284 = vpop.f32.mrb[0].mxu0
        %v1285 = vadd.f32 0.0, %v1284
        %v1286 = vpop.f32.mrb[0].mxu0
        %1287 = vmatprep.mubr.f32.mxu0 0.0
        %1288 = vmatmul.mubr.f32.gmra.mrb[0].mxu0 %v339
        %v1289 = vpop.f32.mrb[0].mxu0
        %v1290 = vadd.f32 0.0, %v1289
        %v1291 = vpop.f32.mrb[0].mxu0
        %1292 = vmatprep.mubr.f32.mxu0 0.0
        %1293 = vmatmul.mubr.f32.gmra.mrb[0].mxu0 %v340
        %v1294 = vpop.f32.mrb[0].mxu0
        %v1295 = vadd.f32 0.0, %v1294
        %v1296 = vpop.f32.mrb[0].mxu0
        %1297 = vmatprep.mubr.f32.mxu0 0.0
        %1298 = vmatmul.mubr.f32.gmra.mrb[0].mxu0 %v341
        %v1299 = vpop.f32.mrb[0].mxu0
        %v1300 = vadd.f32 0.0, %v1299
        %v1301 = vpop.f32.mrb[0].mxu0
        %1302 = vmatprep.mubr.f32.mxu0 0.0
        %1303 = vmatmul.mubr.f32.gmra.mrb[0].mxu0 %v342
        %v1304 = vpop.f32.mrb[0].mxu0
        %v1305 = vadd.f32 0.0, %v1304
        %v1306 = vpop.f32.mrb[0].mxu0
        %1307 = vmatprep.mubr.f32.mxu0 0.0
        %1308 = vmatmul.mubr.f32.gmra.mrb[0].mxu0 %v343
        %v1309 = vpop.f32.mrb[0].mxu0
        %v1310 = vadd.f32 0.0, %v1309
        %v1311 = vpop.f32.mrb[0].mxu0
        %1312 = vmatprep.mubr.f32.mxu0 0.0
        %1313 = vmatmul.mubr.f32.gmra.mrb[0].mxu0 %v344
        %v1314 = vpop.f32.mrb[0].mxu0
        %v1315 = vadd.f32 0.0, %v1314
        %v1316 = vpop.f32.mrb[0].mxu0
        %1317 = vmatprep.mubr.f32.mxu0 0.0
        %1318 = vmatmul.mubr.f32.gmra.mrb[0].mxu0 %v345
        %v1319 = vpop.f32.mrb[0].mxu0
        %v1320 = vadd.f32 0.0, %v1319
        %v1321 = vpop.f32.mrb[0].mxu0
        %1322 = vmatprep.mubr.f32.mxu0 0.0
        %1323 = vmatmul.mubr.f32.gmra.mrb[0].mxu0 %v346
        %v1324 = vpop.f32.mrb[0].mxu0
        %v1325 = vadd.f32 0.0, %v1324
        %v1326 = vpop.f32.mrb[0].mxu0
        %1327 = vmatprep.mubr.f32.mxu0 0.0
        %1328 = vmatmul.mubr.f32.gmra.mrb[0].mxu0 %v347
        %v1329 = vpop.f32.mrb[0].mxu0
        %v1330 = vadd.f32 0.0, %v1329
        %v1331 = vpop.f32.mrb[0].mxu0
        %1332 = vdwg.mxu0
        %v1333 = vmul.f32 %v508, %v1075
        %v1334 = vmul.f32 %v509, %v1076
        %v1335 = vmul.f32 %v510, %v1077
        %v1336 = vmul.f32 %v511, %v1078
        %v1337 = vmul.f32 %v512, %v1079
        %v1338 = vmul.f32 %v513, %v1080
        %v1339 = vmul.f32 %v514, %v1081
        %v1340 = vmul.f32 %v515, %v1082
        %v1341 = vmul.f32 %v516, %v1083
        %v1342 = vmul.f32 %v517, %v1084
        %v1343 = vmul.f32 %v518, %v1085
        %v1344 = vmul.f32 %v519, %v1086
        %v1345 = vmul.f32 %v520, %v1087
        %v1346 = vmul.f32 %v521, %v1088
        %v1347 = vmul.f32 %v522, %v1089
        %v1348 = vmul.f32 %v523, %v1090
        %v1349 = vmul.f32 %v460, %v1255
        %v1350 = vmul.f32 %v461, %v1260
        %v1351 = vmul.f32 %v462, %v1265
        %v1352 = vmul.f32 %v463, %v1270
        %v1353 = vmul.f32 %v464, %v1275
        %v1354 = vmul.f32 %v465, %v1280
        %v1355 = vmul.f32 %v466, %v1285
        %v1356 = vmul.f32 %v467, %v1290
        %v1357 = vmul.f32 %v468, %v1295
        %v1358 = vmul.f32 %v469, %v1300
        %v1359 = vmul.f32 %v470, %v1305
        %v1360 = vmul.f32 %v471, %v1310
        %v1361 = vmul.f32 %v472, %v1315
        %v1362 = vmul.f32 %v473, %v1320
        %v1363 = vmul.f32 %v474, %v1325
        %v1364 = vmul.f32 %v475, %v1330
        %v1365 = vsub.f32 %v1333, %v1349
        %v1366 = vsub.f32 %v1334, %v1350
        %v1367 = vsub.f32 %v1335, %v1351
        %v1368 = vsub.f32 %v1336, %v1352
        %v1369 = vsub.f32 %v1337, %v1353
        %v1370 = vsub.f32 %v1338, %v1354
        %v1371 = vsub.f32 %v1339, %v1355
        %v1372 = vsub.f32 %v1340, %v1356
        %v1373 = vsub.f32 %v1341, %v1357
        %v1374 = vsub.f32 %v1342, %v1358
        %v1375 = vsub.f32 %v1343, %v1359
        %v1376 = vsub.f32 %v1344, %v1360
        %v1377 = vsub.f32 %v1345, %v1361
        %v1378 = vsub.f32 %v1346, %v1362
        %v1379 = vsub.f32 %v1347, %v1363
        %v1380 = vsub.f32 %v1348, %v1364
        %v1381 = vmul.f32 %v1365, 2.0
        %v1382 = vmul.f32 %v1366, 2.0
        %v1383 = vmul.f32 %v1367, 2.0
        %v1384 = vmul.f32 %v1368, 2.0
        %v1385 = vmul.f32 %v1369, 2.0
        %v1386 = vmul.f32 %v1370, 2.0
        %v1387 = vmul.f32 %v1371, 2.0
        %v1388 = vmul.f32 %v1372, 2.0
        %v1389 = vmul.f32 %v1373, 2.0
        %v1390 = vmul.f32 %v1374, 2.0
        %v1391 = vmul.f32 %v1375, 2.0
        %v1392 = vmul.f32 %v1376, 2.0
        %v1393 = vmul.f32 %v1377, 2.0
        %v1394 = vmul.f32 %v1378, 2.0
        %v1395 = vmul.f32 %v1379, 2.0
        %v1396 = vmul.f32 %v1380, 2.0
        %v1397 = vsub.f32 %v1381, %v753
        %v1398 = vsub.f32 %v1382, %v754
        %v1399 = vsub.f32 %v1383, %v755
        %v1400 = vsub.f32 %v1384, %v756
        %v1401 = vsub.f32 %v1385, %v757
        %v1402 = vsub.f32 %v1386, %v758
        %v1403 = vsub.f32 %v1387, %v759
        %v1404 = vsub.f32 %v1388, %v760
        %v1405 = vsub.f32 %v1389, %v761
        %v1406 = vsub.f32 %v1390, %v762
        %v1407 = vsub.f32 %v1391, %v763
        %v1408 = vsub.f32 %v1392, %v764
        %v1409 = vsub.f32 %v1393, %v765
        %v1410 = vsub.f32 %v1394, %v766
        %v1411 = vsub.f32 %v1395, %v767
        %v1412 = vsub.f32 %v1396, %v768
        %1429 = vrot.lane.b32.xlu0 %v1397, 12
        %v1430 = vpop.permute.xlu0 %1429
        %1431 = vrot.lane.b32.xlu0 %v1398, 12
        %v1432 = vpop.permute.xlu0 %1431
        %1433 = vrot.lane.b32.xlu0 %v1399, 12
        %v1434 = vpop.permute.xlu0 %1433
        %1435 = vrot.lane.b32.xlu0 %v1400, 12
        %v1436 = vpop.permute.xlu0 %1435
        %1437 = vrot.lane.b32.xlu0 %v1401, 12
        %v1438 = vpop.permute.xlu0 %1437
        %1439 = vrot.lane.b32.xlu0 %v1402, 12
        %v1440 = vpop.permute.xlu0 %1439
        %1441 = vrot.lane.b32.xlu0 %v1403, 12
        %v1442 = vpop.permute.xlu0 %1441
        %1443 = vrot.lane.b32.xlu0 %v1404, 12
        %v1444 = vpop.permute.xlu0 %1443
        %1445 = vrot.lane.b32.xlu0 %v1405, 12
        %v1446 = vpop.permute.xlu0 %1445
        %1447 = vrot.lane.b32.xlu0 %v1406, 12
        %v1448 = vpop.permute.xlu0 %1447
        %1449 = vrot.lane.b32.xlu0 %v1407, 12
        %v1450 = vpop.permute.xlu0 %1449
        %1451 = vrot.lane.b32.xlu0 %v1408, 12
        %v1452 = vpop.permute.xlu0 %1451
        %1453 = vrot.lane.b32.xlu0 %v1409, 12
        %v1454 = vpop.permute.xlu0 %1453
        %1455 = vrot.lane.b32.xlu0 %v1410, 12
        %v1456 = vpop.permute.xlu0 %1455
        %1457 = vrot.lane.b32.xlu0 %v1411, 12
        %v1458 = vpop.permute.xlu0 %1457
        %1459 = vrot.lane.b32.xlu0 %v1412, 12
        %v1460 = vpop.permute.xlu0 %1459
        %vm1477 = vcmask 130144
        %1478 = vst.msk [vmem:[#allocation2] sm:$0xff] %vm1477, %v1430
        %1479 = vst.msk [vmem:[#allocation2 + $0x8] sm:$0xff] %vm1477, %v1432
        %1480 = vst.msk [vmem:[#allocation2 + $0x10] sm:$0xff] %vm1477, %v1434
        %1481 = vst.msk [vmem:[#allocation2 + $0x18] sm:$0xff] %vm1477, %v1436
        %1482 = vst.msk [vmem:[#allocation2 + $0x20] sm:$0xff] %vm1477, %v1438
        %1483 = vst.msk [vmem:[#allocation2 + $0x28] sm:$0xff] %vm1477, %v1440
        %1484 = vst.msk [vmem:[#allocation2 + $0x30] sm:$0xff] %vm1477, %v1442
        %1485 = vst.msk [vmem:[#allocation2 + $0x38] sm:$0xff] %vm1477, %v1444
        %1486 = vst.msk [vmem:[#allocation2 + $0x40] sm:$0xff] %vm1477, %v1446
        %1487 = vst.msk [vmem:[#allocation2 + $0x48] sm:$0xff] %vm1477, %v1448
        %1488 = vst.msk [vmem:[#allocation2 + $0x50] sm:$0xff] %vm1477, %v1450
        %1489 = vst.msk [vmem:[#allocation2 + $0x58] sm:$0xff] %vm1477, %v1452
        %1490 = vst.msk [vmem:[#allocation2 + $0x60] sm:$0xff] %vm1477, %v1454
        %1491 = vst.msk [vmem:[#allocation2 + $0x68] sm:$0xff] %vm1477, %v1456
        %1492 = vst.msk [vmem:[#allocation2 + $0x70] sm:$0xff] %vm1477, %v1458
        %1493 = vst.msk [vmem:[#allocation2 + $0x78] sm:$0xff] %vm1477, %v1460
        %v1494 = vld [vmem:[#allocation2] sm:$0xff]
        %v1495 = vld [vmem:[#allocation2 + $0x8] sm:$0xff]
        %v1496 = vld [vmem:[#allocation2 + $0x10] sm:$0xff]
        %v1497 = vld [vmem:[#allocation2 + $0x18] sm:$0xff]
        %v1498 = vld [vmem:[#allocation2 + $0x20] sm:$0xff]
        %v1499 = vld [vmem:[#allocation2 + $0x28] sm:$0xff]
        %v1500 = vld [vmem:[#allocation2 + $0x30] sm:$0xff]
        %v1501 = vld [vmem:[#allocation2 + $0x38] sm:$0xff]
        %v1502 = vld [vmem:[#allocation2 + $0x40] sm:$0xff]
        %v1503 = vld [vmem:[#allocation2 + $0x48] sm:$0xff]
        %v1504 = vld [vmem:[#allocation2 + $0x50] sm:$0xff]
        %v1505 = vld [vmem:[#allocation2 + $0x58] sm:$0xff]
        %v1506 = vld [vmem:[#allocation2 + $0x60] sm:$0xff]
        %v1507 = vld [vmem:[#allocation2 + $0x68] sm:$0xff]
        %v1508 = vld [vmem:[#allocation2 + $0x70] sm:$0xff]
        %v1509 = vld [vmem:[#allocation2 + $0x78] sm:$0xff]
        %v1511 = vlaneseq
        %v1512 = vshrl.u32 %v1511, 7
        %v1513 = vsub.s32 0, %v1512
        %v1514 = vrot.slane %v542, %v1513
        %vm1516 = vcmask 130048
        %v1518 = vsel %vm1516, %v1494, 0
        %v1521 = vsel %vm1516, %v1495, 0
        %v1524 = vsel %vm1516, %v1496, 0
        %v1527 = vsel %vm1516, %v1497, 0
        %v1530 = vsel %vm1516, %v1498, 0
        %v1533 = vsel %vm1516, %v1499, 0
        %v1536 = vsel %vm1516, %v1500, 0
        %v1539 = vsel %vm1516, %v1501, 0
        %v1542 = vsel %vm1516, %v1502, 0
        %v1545 = vsel %vm1516, %v1503, 0
        %v1548 = vsel %vm1516, %v1504, 0
        %v1551 = vsel %vm1516, %v1505, 0
        %v1554 = vsel %vm1516, %v1506, 0
        %v1557 = vsel %vm1516, %v1507, 0
        %v1560 = vsel %vm1516, %v1508, 0
        %v1563 = vsel %vm1516, %v1509, 0
        %1565 = vmatprep.subr.mxu0 0.0
        %1566 = vmatpush1.msra.mxu0 %v540
        %1567 = vmatprep.subr.mxu0 0.0
        %1568 = vmatpush1.msra.mxu0 %v541
        %1569 = vmatprep.subr.mxu0 0.0
        %1570 = vmatpush1.msra.mxu0 0.0
        %1571 = vmatprep.subr.mxu0 0.0
        %1572 = vmatpush1.msra.mxu0 0.0
        %1573 = vmatprep.subr.mxu0 0.0
        %1574 = vmatpush1.msra.mxu0 0.0
        %1575 = vmatprep.subr.mxu0 0.0
        %1576 = vmatpush1.msra.mxu0 0.0
        %1577 = vmatprep.subr.mxu0 0.0
        %1578 = vmatpush1.msra.mxu0 0.0
        %1579 = vmatprep.subr.mxu0 0.0
        %1580 = vmatpush1.msra.mxu0 0.0
        %1581 = vmatprep.subr.mxu0 0.0
        %1582 = vmatpush1.msra.mxu0 0.0
        %1583 = vmatprep.subr.mxu0 0.0
        %1584 = vmatpush1.msra.mxu0 0.0
        %1585 = vmatprep.subr.mxu0 0.0
        %1586 = vmatpush1.msra.mxu0 0.0
        %1587 = vmatprep.subr.mxu0 0.0
        %1588 = vmatpush1.msra.mxu0 0.0
        %1589 = vmatprep.subr.mxu0 0.0
        %1590 = vmatpush1.msra.mxu0 0.0
        %1591 = vmatprep.subr.mxu0 0.0
        %1592 = vmatpush1.msra.mxu0 0.0
        %1593 = vmatprep.subr.mxu0 0.0
        %1594 = vmatpush1.msra.mxu0 0.0
        %1595 = vmatprep.subr.mxu0 0.0
        %1596 = vmatpush1.msra.mxu0 0.0
        %1597 = vmatprep.subr.mxu0 0.0
        %1598 = vmatpush1.msra.mxu0 0.0
        %1599 = vmatprep.subr.mxu0 0.0
        %1600 = vmatpush1.msra.mxu0 0.0
        %1601 = vmatprep.subr.mxu0 0.0
        %1602 = vmatpush1.msra.mxu0 0.0
        %1603 = vmatprep.subr.mxu0 0.0
        %1604 = vmatpush1.msra.mxu0 0.0
        %1605 = vmatprep.subr.mxu0 0.0
        %1606 = vmatpush1.msra.mxu0 0.0
        %1607 = vmatprep.subr.mxu0 0.0
        %1608 = vmatpush1.msra.mxu0 0.0
        %1609 = vmatprep.subr.mxu0 0.0
        %1610 = vmatpush1.msra.mxu0 0.0
        %1611 = vmatprep.subr.mxu0 0.0
        %1612 = vmatpush1.msra.mxu0 0.0
        %1613 = vmatprep.subr.mxu0 0.0
        %1614 = vmatpush1.msra.mxu0 0.0
        %1615 = vmatprep.subr.mxu0 0.0
        %1616 = vmatpush1.msra.mxu0 0.0
        %1617 = vmatprep.subr.mxu0 0.0
        %1618 = vmatpush1.msra.mxu0 0.0
        %1619 = vmatprep.subr.mxu0 0.0
        %1620 = vmatpush1.msra.mxu0 0.0
        %1621 = vmatprep.subr.mxu0 0.0
        %1622 = vmatpush1.msra.mxu0 0.0
        %1623 = vmatprep.subr.mxu0 0.0
        %1624 = vmatpush1.msra.mxu0 0.0
        %1625 = vmatprep.subr.mxu0 0.0
        %1626 = vmatpush1.msra.mxu0 0.0
        %1627 = vmatprep.subr.mxu0 0.0
        %1628 = vmatpush1.msra.mxu0 0.0
        %1629 = vmatprep.mubr.f32.mxu0 0.0
        %1630 = vmatmul.mubr.f32.gmra.mrb[0].mxu0 %v1518
        %v1631 = vpop.f32.mrb[0].mxu0
        %v1632 = vadd.f32 %v1514, %v1631
        %v1633 = vpop.f32.mrb[0].mxu0
        %1634 = vmatprep.mubr.f32.mxu0 0.0
        %1635 = vmatmul.mubr.f32.gmra.mrb[0].mxu0 %v1521
        %v1636 = vpop.f32.mrb[0].mxu0
        %v1637 = vadd.f32 %v1514, %v1636
        %v1638 = vpop.f32.mrb[0].mxu0
        %1639 = vmatprep.mubr.f32.mxu0 0.0
        %1640 = vmatmul.mubr.f32.gmra.mrb[0].mxu0 %v1524
        %v1641 = vpop.f32.mrb[0].mxu0
        %v1642 = vadd.f32 %v1514, %v1641
        %v1643 = vpop.f32.mrb[0].mxu0
        %1644 = vmatprep.mubr.f32.mxu0 0.0
        %1645 = vmatmul.mubr.f32.gmra.mrb[0].mxu0 %v1527
        %v1646 = vpop.f32.mrb[0].mxu0
        %v1647 = vadd.f32 %v1514, %v1646
        %v1648 = vpop.f32.mrb[0].mxu0
        %1649 = vmatprep.mubr.f32.mxu0 0.0
        %1650 = vmatmul.mubr.f32.gmra.mrb[0].mxu0 %v1530
        %v1651 = vpop.f32.mrb[0].mxu0
        %v1652 = vadd.f32 %v1514, %v1651
        %v1653 = vpop.f32.mrb[0].mxu0
        %1654 = vmatprep.mubr.f32.mxu0 0.0
        %1655 = vmatmul.mubr.f32.gmra.mrb[0].mxu0 %v1533
        %v1656 = vpop.f32.mrb[0].mxu0
        %v1657 = vadd.f32 %v1514, %v1656
        %v1658 = vpop.f32.mrb[0].mxu0
        %1659 = vmatprep.mubr.f32.mxu0 0.0
        %1660 = vmatmul.mubr.f32.gmra.mrb[0].mxu0 %v1536
        %v1661 = vpop.f32.mrb[0].mxu0
        %v1662 = vadd.f32 %v1514, %v1661
        %v1663 = vpop.f32.mrb[0].mxu0
        %1664 = vmatprep.mubr.f32.mxu0 0.0
        %1665 = vmatmul.mubr.f32.gmra.mrb[0].mxu0 %v1539
        %v1666 = vpop.f32.mrb[0].mxu0
        %v1667 = vadd.f32 %v1514, %v1666
        %v1668 = vpop.f32.mrb[0].mxu0
        %1669 = vmatprep.mubr.f32.mxu0 0.0
        %1670 = vmatmul.mubr.f32.gmra.mrb[0].mxu0 %v1542
        %v1671 = vpop.f32.mrb[0].mxu0
        %v1672 = vadd.f32 %v1514, %v1671
        %v1673 = vpop.f32.mrb[0].mxu0
        %1674 = vmatprep.mubr.f32.mxu0 0.0
        %1675 = vmatmul.mubr.f32.gmra.mrb[0].mxu0 %v1545
        %v1676 = vpop.f32.mrb[0].mxu0
        %v1677 = vadd.f32 %v1514, %v1676
        %v1678 = vpop.f32.mrb[0].mxu0
        %1679 = vmatprep.mubr.f32.mxu0 0.0
        %1680 = vmatmul.mubr.f32.gmra.mrb[0].mxu0 %v1548
        %v1681 = vpop.f32.mrb[0].mxu0
        %v1682 = vadd.f32 %v1514, %v1681
        %v1683 = vpop.f32.mrb[0].mxu0
        %1684 = vmatprep.mubr.f32.mxu0 0.0
        %1685 = vmatmul.mubr.f32.gmra.mrb[0].mxu0 %v1551
        %v1686 = vpop.f32.mrb[0].mxu0
        %v1687 = vadd.f32 %v1514, %v1686
        %v1688 = vpop.f32.mrb[0].mxu0
        %1689 = vmatprep.mubr.f32.mxu0 0.0
        %1690 = vmatmul.mubr.f32.gmra.mrb[0].mxu0 %v1554
        %v1691 = vpop.f32.mrb[0].mxu0
        %v1692 = vadd.f32 %v1514, %v1691
        %v1693 = vpop.f32.mrb[0].mxu0
        %1694 = vmatprep.mubr.f32.mxu0 0.0
        %1695 = vmatmul.mubr.f32.gmra.mrb[0].mxu0 %v1557
        %v1696 = vpop.f32.mrb[0].mxu0
        %v1697 = vadd.f32 %v1514, %v1696
        %v1698 = vpop.f32.mrb[0].mxu0
        %1699 = vmatprep.mubr.f32.mxu0 0.0
        %1700 = vmatmul.mubr.f32.gmra.mrb[0].mxu0 %v1560
        %v1701 = vpop.f32.mrb[0].mxu0
        %v1702 = vadd.f32 %v1514, %v1701
        %v1703 = vpop.f32.mrb[0].mxu0
        %1704 = vmatprep.mubr.f32.mxu0 0.0
        %1705 = vmatmul.mubr.f32.gmra.mrb[0].mxu0 %v1563
        %v1706 = vpop.f32.mrb[0].mxu0
        %v1707 = vadd.f32 %v1514, %v1706
        %v1708 = vpop.f32.mrb[0].mxu0
        %1709 = vdwg.mxu0
        %v1710 = vmax.f32 %v1632, 0.0
        %v1711 = vmax.f32 %v1637, 0.0
        %v1712 = vmax.f32 %v1642, 0.0
        %v1713 = vmax.f32 %v1647, 0.0
        %v1714 = vmax.f32 %v1652, 0.0
        %v1715 = vmax.f32 %v1657, 0.0
        %v1716 = vmax.f32 %v1662, 0.0
        %v1717 = vmax.f32 %v1667, 0.0
        %v1718 = vmax.f32 %v1672, 0.0
        %v1719 = vmax.f32 %v1677, 0.0
        %v1720 = vmax.f32 %v1682, 0.0
        %v1721 = vmax.f32 %v1687, 0.0
        %v1722 = vmax.f32 %v1692, 0.0
        %v1723 = vmax.f32 %v1697, 0.0
        %v1724 = vmax.f32 %v1702, 0.0
        %v1725 = vmax.f32 %v1707, 0.0
        %v1726 = vld [vmem:[%s4] sm:$0xff]
        %v1727 = vld [vmem:[%s4 + $0x8] sm:$0xff]
        %v1728 = vld [vmem:[%s4 + $0x10] sm:$0xff]
        %v1729 = vld [vmem:[%s4 + $0x18] sm:$0xff]
        %v1730 = vld [vmem:[%s4 + $0x20] sm:$0xff]
        %v1731 = vld [vmem:[%s4 + $0x28] sm:$0xff]
        %v1732 = vld [vmem:[%s4 + $0x30] sm:$0xff]
        %v1733 = vld [vmem:[%s4 + $0x38] sm:$0xff]
        %v1734 = vld [vmem:[%s4 + $0x40] sm:$0xff]
        %v1735 = vld [vmem:[%s4 + $0x48] sm:$0xff]
        %v1736 = vld [vmem:[%s4 + $0x50] sm:$0xff]
        %v1737 = vld [vmem:[%s4 + $0x58] sm:$0xff]
        %v1738 = vld [vmem:[%s4 + $0x60] sm:$0xff]
        %v1739 = vld [vmem:[%s4 + $0x68] sm:$0xff]
        %v1740 = vld [vmem:[%s4 + $0x70] sm:$0xff]
        %v1741 = vld [vmem:[%s4 + $0x78] sm:$0xff]
        %v1742 = vld [vmem:[#allocation9] sm:$0x1]
        %vm1743 = vcmask 261120
        %1744 = vst.msk [vmem:[#allocation3] sm:$0xff] %vm1743, %v1710
        %1745 = vst.msk [vmem:[#allocation3 + $0x8] sm:$0xff] %vm1743, %v1711
        %1746 = vst.msk [vmem:[#allocation3 + $0x10] sm:$0xff] %vm1743, %v1712
        %1747 = vst.msk [vmem:[#allocation3 + $0x18] sm:$0xff] %vm1743, %v1713
        %1748 = vst.msk [vmem:[#allocation3 + $0x20] sm:$0xff] %vm1743, %v1714
        %1749 = vst.msk [vmem:[#allocation3 + $0x28] sm:$0xff] %vm1743, %v1715
        %1750 = vst.msk [vmem:[#allocation3 + $0x30] sm:$0xff] %vm1743, %v1716
        %1751 = vst.msk [vmem:[#allocation3 + $0x38] sm:$0xff] %vm1743, %v1717
        %1752 = vst.msk [vmem:[#allocation3 + $0x40] sm:$0xff] %vm1743, %v1718
        %1753 = vst.msk [vmem:[#allocation3 + $0x48] sm:$0xff] %vm1743, %v1719
        %1754 = vst.msk [vmem:[#allocation3 + $0x50] sm:$0xff] %vm1743, %v1720
        %1755 = vst.msk [vmem:[#allocation3 + $0x58] sm:$0xff] %vm1743, %v1721
        %1756 = vst.msk [vmem:[#allocation3 + $0x60] sm:$0xff] %vm1743, %v1722
        %1757 = vst.msk [vmem:[#allocation3 + $0x68] sm:$0xff] %vm1743, %v1723
        %1758 = vst.msk [vmem:[#allocation3 + $0x70] sm:$0xff] %vm1743, %v1724
        %1759 = vst.msk [vmem:[#allocation3 + $0x78] sm:$0xff] %vm1743, %v1725
        %v1760 = vmul.f32 %v460, %v1710
        %v1761 = vmul.f32 %v461, %v1711
        %v1762 = vmul.f32 %v462, %v1712
        %v1763 = vmul.f32 %v463, %v1713
        %v1764 = vmul.f32 %v464, %v1714
        %v1765 = vmul.f32 %v465, %v1715
        %v1766 = vmul.f32 %v466, %v1716
        %v1767 = vmul.f32 %v467, %v1717
        %v1768 = vmul.f32 %v468, %v1718
        %v1769 = vmul.f32 %v469, %v1719
        %v1770 = vmul.f32 %v470, %v1720
        %v1771 = vmul.f32 %v471, %v1721
        %v1772 = vmul.f32 %v472, %v1722
        %v1773 = vmul.f32 %v473, %v1723
        %v1774 = vmul.f32 %v474, %v1724
        %v1775 = vmul.f32 %v475, %v1725
        %1776 = vmatprep.subr.mxu0 0.0
        %1777 = vmatpush1.msra.mxu0 %v1760
        %1778 = vmatprep.subr.mxu0 0.0
        %1779 = vmatpush1.msra.mxu0 %v1761
        %1780 = vmatprep.subr.mxu0 0.0
        %1781 = vmatpush1.msra.mxu0 %v1762
        %1782 = vmatprep.subr.mxu0 0.0
        %1783 = vmatpush1.msra.mxu0 %v1763
        %1784 = vmatprep.subr.mxu0 0.0
        %1785 = vmatpush1.msra.mxu0 %v1764
        %1786 = vmatprep.subr.mxu0 0.0
        %1787 = vmatpush1.msra.mxu0 %v1765
        %1788 = vmatprep.subr.mxu0 0.0
        %1789 = vmatpush1.msra.mxu0 %v1766
        %1790 = vmatprep.subr.mxu0 0.0
        %1791 = vmatpush1.msra.mxu0 %v1767
        %1792 = vmatprep.subr.mxu0 0.0
        %1793 = vmatpush1.msra.mxu0 %v1768
        %1794 = vmatprep.subr.mxu0 0.0
        %1795 = vmatpush1.msra.mxu0 %v1769
        %1796 = vmatprep.subr.mxu0 0.0
        %1797 = vmatpush1.msra.mxu0 %v1770
        %1798 = vmatprep.subr.mxu0 0.0
        %1799 = vmatpush1.msra.mxu0 %v1771
        %1800 = vmatprep.subr.mxu0 0.0
        %1801 = vmatpush1.msra.mxu0 %v1772
        %1802 = vmatprep.subr.mxu0 0.0
        %1803 = vmatpush1.msra.mxu0 %v1773
        %1804 = vmatprep.subr.mxu0 0.0
        %1805 = vmatpush1.msra.mxu0 %v1774
        %1806 = vmatprep.subr.mxu0 0.0
        %1807 = vmatpush1.msra.mxu0 %v1775
        %1808 = vmatprep.subr.mxu0 0.0
        %1809 = vmatpush1.msra.mxu0 0.0
        %1810 = vmatprep.subr.mxu0 0.0
        %1811 = vmatpush1.msra.mxu0 0.0
        %1812 = vmatprep.subr.mxu0 0.0
        %1813 = vmatpush1.msra.mxu0 0.0
        %1814 = vmatprep.subr.mxu0 0.0
        %1815 = vmatpush1.msra.mxu0 0.0
        %1816 = vmatprep.subr.mxu0 0.0
        %1817 = vmatpush1.msra.mxu0 0.0
        %1818 = vmatprep.subr.mxu0 0.0
        %1819 = vmatpush1.msra.mxu0 0.0
        %1820 = vmatprep.subr.mxu0 0.0
        %1821 = vmatpush1.msra.mxu0 0.0
        %1822 = vmatprep.subr.mxu0 0.0
        %1823 = vmatpush1.msra.mxu0 0.0
        %1824 = vmatprep.subr.mxu0 0.0
        %1825 = vmatpush1.msra.mxu0 0.0
        %1826 = vmatprep.subr.mxu0 0.0
        %1827 = vmatpush1.msra.mxu0 0.0
        %1828 = vmatprep.subr.mxu0 0.0
        %1829 = vmatpush1.msra.mxu0 0.0
        %1830 = vmatprep.subr.mxu0 0.0
        %1831 = vmatpush1.msra.mxu0 0.0
        %1832 = vmatprep.subr.mxu0 0.0
        %1833 = vmatpush1.msra.mxu0 0.0
        %1834 = vmatprep.subr.mxu0 0.0
        %1835 = vmatpush1.msra.mxu0 0.0
        %1836 = vmatprep.subr.mxu0 0.0
        %1837 = vmatpush1.msra.mxu0 0.0
        %1838 = vmatprep.subr.mxu0 0.0
        %1839 = vmatpush1.msra.mxu0 0.0
        %1840 = vmatprep.mubr.f32.mxu0 0.0
        %1841 = vmatmul.mubr.f32.gmra.mrb[0].mxu0 %v332
        %v1842 = vpop.f32.mrb[0].mxu0
        %v1843 = vadd.f32 0.0, %v1842
        %v1844 = vpop.f32.mrb[0].mxu0
        %1845 = vmatprep.mubr.f32.mxu0 0.0
        %1846 = vmatmul.mubr.f32.gmra.mrb[0].mxu0 %v333
        %v1847 = vpop.f32.mrb[0].mxu0
        %v1848 = vadd.f32 0.0, %v1847
        %v1849 = vpop.f32.mrb[0].mxu0
        %1850 = vmatprep.mubr.f32.mxu0 0.0
        %1851 = vmatmul.mubr.f32.gmra.mrb[0].mxu0 %v334
        %v1852 = vpop.f32.mrb[0].mxu0
        %v1853 = vadd.f32 0.0, %v1852
        %v1854 = vpop.f32.mrb[0].mxu0
        %1855 = vmatprep.mubr.f32.mxu0 0.0
        %1856 = vmatmul.mubr.f32.gmra.mrb[0].mxu0 %v335
        %v1857 = vpop.f32.mrb[0].mxu0
        %v1858 = vadd.f32 0.0, %v1857
        %v1859 = vpop.f32.mrb[0].mxu0
        %1860 = vmatprep.mubr.f32.mxu0 0.0
        %1861 = vmatmul.mubr.f32.gmra.mrb[0].mxu0 %v336
        %v1862 = vpop.f32.mrb[0].mxu0
        %v1863 = vadd.f32 0.0, %v1862
        %v1864 = vpop.f32.mrb[0].mxu0
        %1865 = vmatprep.mubr.f32.mxu0 0.0
        %1866 = vmatmul.mubr.f32.gmra.mrb[0].mxu0 %v337
        %v1867 = vpop.f32.mrb[0].mxu0
        %v1868 = vadd.f32 0.0, %v1867
        %v1869 = vpop.f32.mrb[0].mxu0
        %1870 = vmatprep.mubr.f32.mxu0 0.0
        %1871 = vmatmul.mubr.f32.gmra.mrb[0].mxu0 %v338
        %v1872 = vpop.f32.mrb[0].mxu0
        %v1873 = vadd.f32 0.0, %v1872
        %v1874 = vpop.f32.mrb[0].mxu0
        %1875 = vmatprep.mubr.f32.mxu0 0.0
        %1876 = vmatmul.mubr.f32.gmra.mrb[0].mxu0 %v339
        %v1877 = vpop.f32.mrb[0].mxu0
        %v1878 = vadd.f32 0.0, %v1877
        %v1879 = vpop.f32.mrb[0].mxu0
        %1880 = vmatprep.mubr.f32.mxu0 0.0
        %1881 = vmatmul.mubr.f32.gmra.mrb[0].mxu0 %v340
        %v1882 = vpop.f32.mrb[0].mxu0
        %v1883 = vadd.f32 0.0, %v1882
        %v1884 = vpop.f32.mrb[0].mxu0
        %1885 = vmatprep.mubr.f32.mxu0 0.0
        %1886 = vmatmul.mubr.f32.gmra.mrb[0].mxu0 %v341
        %v1887 = vpop.f32.mrb[0].mxu0
        %v1888 = vadd.f32 0.0, %v1887
        %v1889 = vpop.f32.mrb[0].mxu0
        %1890 = vmatprep.mubr.f32.mxu0 0.0
        %1891 = vmatmul.mubr.f32.gmra.mrb[0].mxu0 %v342
        %v1892 = vpop.f32.mrb[0].mxu0
        %v1893 = vadd.f32 0.0, %v1892
        %v1894 = vpop.f32.mrb[0].mxu0
        %1895 = vmatprep.mubr.f32.mxu0 0.0
        %1896 = vmatmul.mubr.f32.gmra.mrb[0].mxu0 %v343
        %v1897 = vpop.f32.mrb[0].mxu0
        %v1898 = vadd.f32 0.0, %v1897
        %v1899 = vpop.f32.mrb[0].mxu0
        %1900 = vmatprep.mubr.f32.mxu0 0.0
        %1901 = vmatmul.mubr.f32.gmra.mrb[0].mxu0 %v344
        %v1902 = vpop.f32.mrb[0].mxu0
        %v1903 = vadd.f32 0.0, %v1902
        %v1904 = vpop.f32.mrb[0].mxu0
        %1905 = vmatprep.mubr.f32.mxu0 0.0
        %1906 = vmatmul.mubr.f32.gmra.mrb[0].mxu0 %v345
        %v1907 = vpop.f32.mrb[0].mxu0
        %v1908 = vadd.f32 0.0, %v1907
        %v1909 = vpop.f32.mrb[0].mxu0
        %1910 = vmatprep.mubr.f32.mxu0 0.0
        %1911 = vmatmul.mubr.f32.gmra.mrb[0].mxu0 %v346
        %v1912 = vpop.f32.mrb[0].mxu0
        %v1913 = vadd.f32 0.0, %v1912
        %v1914 = vpop.f32.mrb[0].mxu0
        %1915 = vmatprep.mubr.f32.mxu0 0.0
        %1916 = vmatmul.mubr.f32.gmra.mrb[0].mxu0 %v347
        %v1917 = vpop.f32.mrb[0].mxu0
        %v1918 = vadd.f32 0.0, %v1917
        %v1919 = vpop.f32.mrb[0].mxu0
        %1920 = vdwg.mxu0
        %v1921 = vmul.f32 %v508, %v1710
        %v1922 = vmul.f32 %v509, %v1711
        %v1923 = vmul.f32 %v510, %v1712
        %v1924 = vmul.f32 %v511, %v1713
        %v1925 = vmul.f32 %v512, %v1714
        %v1926 = vmul.f32 %v513, %v1715
        %v1927 = vmul.f32 %v514, %v1716
        %v1928 = vmul.f32 %v515, %v1717
        %v1929 = vmul.f32 %v516, %v1718
        %v1930 = vmul.f32 %v517, %v1719
        %v1931 = vmul.f32 %v518, %v1720
        %v1932 = vmul.f32 %v519, %v1721
        %v1933 = vmul.f32 %v520, %v1722
        %v1934 = vmul.f32 %v521, %v1723
        %v1935 = vmul.f32 %v522, %v1724
        %v1936 = vmul.f32 %v523, %v1725
        %v1937 = vmul.f32 %v460, %v1843
        %v1938 = vmul.f32 %v461, %v1848
        %v1939 = vmul.f32 %v462, %v1853
        %v1940 = vmul.f32 %v463, %v1858
        %v1941 = vmul.f32 %v464, %v1863
        %v1942 = vmul.f32 %v465, %v1868
        %v1943 = vmul.f32 %v466, %v1873
        %v1944 = vmul.f32 %v467, %v1878
        %v1945 = vmul.f32 %v468, %v1883
        %v1946 = vmul.f32 %v469, %v1888
        %v1947 = vmul.f32 %v470, %v1893
        %v1948 = vmul.f32 %v471, %v1898
        %v1949 = vmul.f32 %v472, %v1903
        %v1950 = vmul.f32 %v473, %v1908
        %v1951 = vmul.f32 %v474, %v1913
        %v1952 = vmul.f32 %v475, %v1918
        %v1953 = vsub.f32 %v1921, %v1937
        %v1954 = vsub.f32 %v1922, %v1938
        %v1955 = vsub.f32 %v1923, %v1939
        %v1956 = vsub.f32 %v1924, %v1940
        %v1957 = vsub.f32 %v1925, %v1941
        %v1958 = vsub.f32 %v1926, %v1942
        %v1959 = vsub.f32 %v1927, %v1943
        %v1960 = vsub.f32 %v1928, %v1944
        %v1961 = vsub.f32 %v1929, %v1945
        %v1962 = vsub.f32 %v1930, %v1946
        %v1963 = vsub.f32 %v1931, %v1947
        %v1964 = vsub.f32 %v1932, %v1948
        %v1965 = vsub.f32 %v1933, %v1949
        %v1966 = vsub.f32 %v1934, %v1950
        %v1967 = vsub.f32 %v1935, %v1951
        %v1968 = vsub.f32 %v1936, %v1952
        %1985 = vrot.lane.b32.xlu0 %v1953, 32
        %v1986 = vpop.permute.xlu0 %1985
        %1987 = vrot.lane.b32.xlu0 %v1954, 32
        %v1988 = vpop.permute.xlu0 %1987
        %1989 = vrot.lane.b32.xlu0 %v1955, 32
        %v1990 = vpop.permute.xlu0 %1989
        %1991 = vrot.lane.b32.xlu0 %v1956, 32
        %v1992 = vpop.permute.xlu0 %1991
        %1993 = vrot.lane.b32.xlu0 %v1957, 32
        %v1994 = vpop.permute.xlu0 %1993
        %1995 = vrot.lane.b32.xlu0 %v1958, 32
        %v1996 = vpop.permute.xlu0 %1995
        %1997 = vrot.lane.b32.xlu0 %v1959, 32
        %v1998 = vpop.permute.xlu0 %1997
        %1999 = vrot.lane.b32.xlu0 %v1960, 32
        %v2000 = vpop.permute.xlu0 %1999
        %2001 = vrot.lane.b32.xlu0 %v1961, 32
        %v2002 = vpop.permute.xlu0 %2001
        %2003 = vrot.lane.b32.xlu0 %v1962, 32
        %v2004 = vpop.permute.xlu0 %2003
        %2005 = vrot.lane.b32.xlu0 %v1963, 32
        %v2006 = vpop.permute.xlu0 %2005
        %2007 = vrot.lane.b32.xlu0 %v1964, 32
        %v2008 = vpop.permute.xlu0 %2007
        %2009 = vrot.lane.b32.xlu0 %v1965, 32
        %v2010 = vpop.permute.xlu0 %2009
        %2011 = vrot.lane.b32.xlu0 %v1966, 32
        %v2012 = vpop.permute.xlu0 %2011
        %2013 = vrot.lane.b32.xlu0 %v1967, 32
        %v2014 = vpop.permute.xlu0 %2013
        %2015 = vrot.lane.b32.xlu0 %v1968, 32
        %v2016 = vpop.permute.xlu0 %2015
        %vm2033 = vcmask 523520
        %2034 = vst.msk [vmem:[#allocation3] sm:$0xff] %vm2033, %v1986
        %2035 = vst.msk [vmem:[#allocation3 + $0x8] sm:$0xff] %vm2033, %v1988
        %2036 = vst.msk [vmem:[#allocation3 + $0x10] sm:$0xff] %vm2033, %v1990
        %2037 = vst.msk [vmem:[#allocation3 + $0x18] sm:$0xff] %vm2033, %v1992
        %2038 = vst.msk [vmem:[#allocation3 + $0x20] sm:$0xff] %vm2033, %v1994
        %2039 = vst.msk [vmem:[#allocation3 + $0x28] sm:$0xff] %vm2033, %v1996
        %2040 = vst.msk [vmem:[#allocation3 + $0x30] sm:$0xff] %vm2033, %v1998
        %2041 = vst.msk [vmem:[#allocation3 + $0x38] sm:$0xff] %vm2033, %v2000
        %2042 = vst.msk [vmem:[#allocation3 + $0x40] sm:$0xff] %vm2033, %v2002
        %2043 = vst.msk [vmem:[#allocation3 + $0x48] sm:$0xff] %vm2033, %v2004
        %2044 = vst.msk [vmem:[#allocation3 + $0x50] sm:$0xff] %vm2033, %v2006
        %2045 = vst.msk [vmem:[#allocation3 + $0x58] sm:$0xff] %vm2033, %v2008
        %2046 = vst.msk [vmem:[#allocation3 + $0x60] sm:$0xff] %vm2033, %v2010
        %2047 = vst.msk [vmem:[#allocation3 + $0x68] sm:$0xff] %vm2033, %v2012
        %2048 = vst.msk [vmem:[#allocation3 + $0x70] sm:$0xff] %vm2033, %v2014
        %2049 = vst.msk [vmem:[#allocation3 + $0x78] sm:$0xff] %vm2033, %v2016
        %v2050 = vmul.f32 %v460, %v1953
        %v2051 = vmul.f32 %v461, %v1954
        %v2052 = vmul.f32 %v462, %v1955
        %v2053 = vmul.f32 %v463, %v1956
        %v2054 = vmul.f32 %v464, %v1957
        %v2055 = vmul.f32 %v465, %v1958
        %v2056 = vmul.f32 %v466, %v1959
        %v2057 = vmul.f32 %v467, %v1960
        %v2058 = vmul.f32 %v468, %v1961
        %v2059 = vmul.f32 %v469, %v1962
        %v2060 = vmul.f32 %v470, %v1963
        %v2061 = vmul.f32 %v471, %v1964
        %v2062 = vmul.f32 %v472, %v1965
        %v2063 = vmul.f32 %v473, %v1966
        %v2064 = vmul.f32 %v474, %v1967
        %v2065 = vmul.f32 %v475, %v1968
        %2066 = vmatprep.subr.mxu0 0.0
        %2067 = vmatpush1.msra.mxu0 %v2050
        %2068 = vmatprep.subr.mxu0 0.0
        %2069 = vmatpush1.msra.mxu0 %v2051
        %2070 = vmatprep.subr.mxu0 0.0
        %2071 = vmatpush1.msra.mxu0 %v2052
        %2072 = vmatprep.subr.mxu0 0.0
        %2073 = vmatpush1.msra.mxu0 %v2053
        %2074 = vmatprep.subr.mxu0 0.0
        %2075 = vmatpush1.msra.mxu0 %v2054
        %2076 = vmatprep.subr.mxu0 0.0
        %2077 = vmatpush1.msra.mxu0 %v2055
        %2078 = vmatprep.subr.mxu0 0.0
        %2079 = vmatpush1.msra.mxu0 %v2056
        %2080 = vmatprep.subr.mxu0 0.0
        %2081 = vmatpush1.msra.mxu0 %v2057
        %2082 = vmatprep.subr.mxu0 0.0
        %2083 = vmatpush1.msra.mxu0 %v2058
        %2084 = vmatprep.subr.mxu0 0.0
        %2085 = vmatpush1.msra.mxu0 %v2059
        %2086 = vmatprep.subr.mxu0 0.0
        %2087 = vmatpush1.msra.mxu0 %v2060
        %2088 = vmatprep.subr.mxu0 0.0
        %2089 = vmatpush1.msra.mxu0 %v2061
        %2090 = vmatprep.subr.mxu0 0.0
        %2091 = vmatpush1.msra.mxu0 %v2062
        %2092 = vmatprep.subr.mxu0 0.0
        %2093 = vmatpush1.msra.mxu0 %v2063
        %2094 = vmatprep.subr.mxu0 0.0
        %2095 = vmatpush1.msra.mxu0 %v2064
        %2096 = vmatprep.subr.mxu0 0.0
        %2097 = vmatpush1.msra.mxu0 %v2065
        %2098 = vmatprep.subr.mxu0 0.0
        %2099 = vmatpush1.msra.mxu0 0.0
        %2100 = vmatprep.subr.mxu0 0.0
        %2101 = vmatpush1.msra.mxu0 0.0
        %2102 = vmatprep.subr.mxu0 0.0
        %2103 = vmatpush1.msra.mxu0 0.0
        %2104 = vmatprep.subr.mxu0 0.0
        %2105 = vmatpush1.msra.mxu0 0.0
        %2106 = vmatprep.subr.mxu0 0.0
        %2107 = vmatpush1.msra.mxu0 0.0
        %2108 = vmatprep.subr.mxu0 0.0
        %2109 = vmatpush1.msra.mxu0 0.0
        %2110 = vmatprep.subr.mxu0 0.0
        %2111 = vmatpush1.msra.mxu0 0.0
        %2112 = vmatprep.subr.mxu0 0.0
        %2113 = vmatpush1.msra.mxu0 0.0
        %2114 = vmatprep.subr.mxu0 0.0
        %2115 = vmatpush1.msra.mxu0 0.0
        %2116 = vmatprep.subr.mxu0 0.0
        %2117 = vmatpush1.msra.mxu0 0.0
        %2118 = vmatprep.subr.mxu0 0.0
        %2119 = vmatpush1.msra.mxu0 0.0
        %2120 = vmatprep.subr.mxu0 0.0
        %2121 = vmatpush1.msra.mxu0 0.0
        %2122 = vmatprep.subr.mxu0 0.0
        %2123 = vmatpush1.msra.mxu0 0.0
        %2124 = vmatprep.subr.mxu0 0.0
        %2125 = vmatpush1.msra.mxu0 0.0
        %2126 = vmatprep.subr.mxu0 0.0
        %2127 = vmatpush1.msra.mxu0 0.0
        %2128 = vmatprep.subr.mxu0 0.0
        %2129 = vmatpush1.msra.mxu0 0.0
        %2130 = vmatprep.mubr.f32.mxu0 0.0
        %2131 = vmatmul.mubr.f32.gmra.mrb[0].mxu0 %v332
        %v2132 = vpop.f32.mrb[0].mxu0
        %v2133 = vadd.f32 0.0, %v2132
        %v2134 = vpop.f32.mrb[0].mxu0
        %2135 = vmatprep.mubr.f32.mxu0 0.0
        %2136 = vmatmul.mubr.f32.gmra.mrb[0].mxu0 %v333
        %v2137 = vpop.f32.mrb[0].mxu0
        %v2138 = vadd.f32 0.0, %v2137
        %v2139 = vpop.f32.mrb[0].mxu0
        %2140 = vmatprep.mubr.f32.mxu0 0.0
        %2141 = vmatmul.mubr.f32.gmra.mrb[0].mxu0 %v334
        %v2142 = vpop.f32.mrb[0].mxu0
        %v2143 = vadd.f32 0.0, %v2142
        %v2144 = vpop.f32.mrb[0].mxu0
        %2145 = vmatprep.mubr.f32.mxu0 0.0
        %2146 = vmatmul.mubr.f32.gmra.mrb[0].mxu0 %v335
        %v2147 = vpop.f32.mrb[0].mxu0
        %v2148 = vadd.f32 0.0, %v2147
        %v2149 = vpop.f32.mrb[0].mxu0
        %2150 = vmatprep.mubr.f32.mxu0 0.0
        %2151 = vmatmul.mubr.f32.gmra.mrb[0].mxu0 %v336
        %v2152 = vpop.f32.mrb[0].mxu0
        %v2153 = vadd.f32 0.0, %v2152
        %v2154 = vpop.f32.mrb[0].mxu0
        %2155 = vmatprep.mubr.f32.mxu0 0.0
        %2156 = vmatmul.mubr.f32.gmra.mrb[0].mxu0 %v337
        %v2157 = vpop.f32.mrb[0].mxu0
        %v2158 = vadd.f32 0.0, %v2157
        %v2159 = vpop.f32.mrb[0].mxu0
        %2160 = vmatprep.mubr.f32.mxu0 0.0
        %2161 = vmatmul.mubr.f32.gmra.mrb[0].mxu0 %v338
        %v2162 = vpop.f32.mrb[0].mxu0
        %v2163 = vadd.f32 0.0, %v2162
        %v2164 = vpop.f32.mrb[0].mxu0
        %2165 = vmatprep.mubr.f32.mxu0 0.0
        %2166 = vmatmul.mubr.f32.gmra.mrb[0].mxu0 %v339
        %v2167 = vpop.f32.mrb[0].mxu0
        %v2168 = vadd.f32 0.0, %v2167
        %v2169 = vpop.f32.mrb[0].mxu0
        %2170 = vmatprep.mubr.f32.mxu0 0.0
        %2171 = vmatmul.mubr.f32.gmra.mrb[0].mxu0 %v340
        %v2172 = vpop.f32.mrb[0].mxu0
        %v2173 = vadd.f32 0.0, %v2172
        %v2174 = vpop.f32.mrb[0].mxu0
        %2175 = vmatprep.mubr.f32.mxu0 0.0
        %2176 = vmatmul.mubr.f32.gmra.mrb[0].mxu0 %v341
        %v2177 = vpop.f32.mrb[0].mxu0
        %v2178 = vadd.f32 0.0, %v2177
        %v2179 = vpop.f32.mrb[0].mxu0
        %2180 = vmatprep.mubr.f32.mxu0 0.0
        %2181 = vmatmul.mubr.f32.gmra.mrb[0].mxu0 %v342
        %v2182 = vpop.f32.mrb[0].mxu0
        %v2183 = vadd.f32 0.0, %v2182
        %v2184 = vpop.f32.mrb[0].mxu0
        %2185 = vmatprep.mubr.f32.mxu0 0.0
        %2186 = vmatmul.mubr.f32.gmra.mrb[0].mxu0 %v343
        %v2187 = vpop.f32.mrb[0].mxu0
        %v2188 = vadd.f32 0.0, %v2187
        %v2189 = vpop.f32.mrb[0].mxu0
        %2190 = vmatprep.mubr.f32.mxu0 0.0
        %2191 = vmatmul.mubr.f32.gmra.mrb[0].mxu0 %v344
        %v2192 = vpop.f32.mrb[0].mxu0
        %v2193 = vadd.f32 0.0, %v2192
        %v2194 = vpop.f32.mrb[0].mxu0
        %2195 = vmatprep.mubr.f32.mxu0 0.0
        %2196 = vmatmul.mubr.f32.gmra.mrb[0].mxu0 %v345
        %v2197 = vpop.f32.mrb[0].mxu0
        %v2198 = vadd.f32 0.0, %v2197
        %v2199 = vpop.f32.mrb[0].mxu0
        %2200 = vmatprep.mubr.f32.mxu0 0.0
        %2201 = vmatmul.mubr.f32.gmra.mrb[0].mxu0 %v346
        %v2202 = vpop.f32.mrb[0].mxu0
        %v2203 = vadd.f32 0.0, %v2202
        %v2204 = vpop.f32.mrb[0].mxu0
        %2205 = vmatprep.mubr.f32.mxu0 0.0
        %2206 = vmatmul.mubr.f32.gmra.mrb[0].mxu0 %v347
        %v2207 = vpop.f32.mrb[0].mxu0
        %v2208 = vadd.f32 0.0, %v2207
        %v2209 = vpop.f32.mrb[0].mxu0
        %2210 = vdwg.mxu0
        %v2211 = vmul.f32 %v508, %v1953
        %v2212 = vmul.f32 %v509, %v1954
        %v2213 = vmul.f32 %v510, %v1955
        %v2214 = vmul.f32 %v511, %v1956
        %v2215 = vmul.f32 %v512, %v1957
        %v2216 = vmul.f32 %v513, %v1958
        %v2217 = vmul.f32 %v514, %v1959
        %v2218 = vmul.f32 %v515, %v1960
        %v2219 = vmul.f32 %v516, %v1961
        %v2220 = vmul.f32 %v517, %v1962
        %v2221 = vmul.f32 %v518, %v1963
        %v2222 = vmul.f32 %v519, %v1964
        %v2223 = vmul.f32 %v520, %v1965
        %v2224 = vmul.f32 %v521, %v1966
        %v2225 = vmul.f32 %v522, %v1967
        %v2226 = vmul.f32 %v523, %v1968
        %v2227 = vmul.f32 %v460, %v2133
        %v2228 = vmul.f32 %v461, %v2138
        %v2229 = vmul.f32 %v462, %v2143
        %v2230 = vmul.f32 %v463, %v2148
        %v2231 = vmul.f32 %v464, %v2153
        %v2232 = vmul.f32 %v465, %v2158
        %v2233 = vmul.f32 %v466, %v2163
        %v2234 = vmul.f32 %v467, %v2168
        %v2235 = vmul.f32 %v468, %v2173
        %v2236 = vmul.f32 %v469, %v2178
        %v2237 = vmul.f32 %v470, %v2183
        %v2238 = vmul.f32 %v471, %v2188
        %v2239 = vmul.f32 %v472, %v2193
        %v2240 = vmul.f32 %v473, %v2198
        %v2241 = vmul.f32 %v474, %v2203
        %v2242 = vmul.f32 %v475, %v2208
        %v2243 = vsub.f32 %v2211, %v2227
        %v2244 = vsub.f32 %v2212, %v2228
        %v2245 = vsub.f32 %v2213, %v2229
        %v2246 = vsub.f32 %v2214, %v2230
        %v2247 = vsub.f32 %v2215, %v2231
        %v2248 = vsub.f32 %v2216, %v2232
        %v2249 = vsub.f32 %v2217, %v2233
        %v2250 = vsub.f32 %v2218, %v2234
        %v2251 = vsub.f32 %v2219, %v2235
        %v2252 = vsub.f32 %v2220, %v2236
        %v2253 = vsub.f32 %v2221, %v2237
        %v2254 = vsub.f32 %v2222, %v2238
        %v2255 = vsub.f32 %v2223, %v2239
        %v2256 = vsub.f32 %v2224, %v2240
        %v2257 = vsub.f32 %v2225, %v2241
        %v2258 = vsub.f32 %v2226, %v2242
        %v2259 = vmul.f32 %v2243, 2.0
        %v2260 = vmul.f32 %v2244, 2.0
        %v2261 = vmul.f32 %v2245, 2.0
        %v2262 = vmul.f32 %v2246, 2.0
        %v2263 = vmul.f32 %v2247, 2.0
        %v2264 = vmul.f32 %v2248, 2.0
        %v2265 = vmul.f32 %v2249, 2.0
        %v2266 = vmul.f32 %v2250, 2.0
        %v2267 = vmul.f32 %v2251, 2.0
        %v2268 = vmul.f32 %v2252, 2.0
        %v2269 = vmul.f32 %v2253, 2.0
        %v2270 = vmul.f32 %v2254, 2.0
        %v2271 = vmul.f32 %v2255, 2.0
        %v2272 = vmul.f32 %v2256, 2.0
        %v2273 = vmul.f32 %v2257, 2.0
        %v2274 = vmul.f32 %v2258, 2.0
        %v2275 = vsub.f32 %v2259, %v1710
        %v2276 = vsub.f32 %v2260, %v1711
        %v2277 = vsub.f32 %v2261, %v1712
        %v2278 = vsub.f32 %v2262, %v1713
        %v2279 = vsub.f32 %v2263, %v1714
        %v2280 = vsub.f32 %v2264, %v1715
        %v2281 = vsub.f32 %v2265, %v1716
        %v2282 = vsub.f32 %v2266, %v1717
        %v2283 = vsub.f32 %v2267, %v1718
        %v2284 = vsub.f32 %v2268, %v1719
        %v2285 = vsub.f32 %v2269, %v1720
        %v2286 = vsub.f32 %v2270, %v1721
        %v2287 = vsub.f32 %v2271, %v1722
        %v2288 = vsub.f32 %v2272, %v1723
        %v2289 = vsub.f32 %v2273, %v1724
        %v2290 = vsub.f32 %v2274, %v1725
        %2307 = vrot.lane.b32.xlu0 %v2275, 64
        %v2308 = vpop.permute.xlu0 %2307
        %2309 = vrot.lane.b32.xlu0 %v2276, 64
        %v2310 = vpop.permute.xlu0 %2309
        %2311 = vrot.lane.b32.xlu0 %v2277, 64
        %v2312 = vpop.permute.xlu0 %2311
        %2313 = vrot.lane.b32.xlu0 %v2278, 64
        %v2314 = vpop.permute.xlu0 %2313
        %2315 = vrot.lane.b32.xlu0 %v2279, 64
        %v2316 = vpop.permute.xlu0 %2315
        %2317 = vrot.lane.b32.xlu0 %v2280, 64
        %v2318 = vpop.permute.xlu0 %2317
        %2319 = vrot.lane.b32.xlu0 %v2281, 64
        %v2320 = vpop.permute.xlu0 %2319
        %2321 = vrot.lane.b32.xlu0 %v2282, 64
        %v2322 = vpop.permute.xlu0 %2321
        %2323 = vrot.lane.b32.xlu0 %v2283, 64
        %v2324 = vpop.permute.xlu0 %2323
        %2325 = vrot.lane.b32.xlu0 %v2284, 64
        %v2326 = vpop.permute.xlu0 %2325
        %2327 = vrot.lane.b32.xlu0 %v2285, 64
        %v2328 = vpop.permute.xlu0 %2327
        %2329 = vrot.lane.b32.xlu0 %v2286, 64
        %v2330 = vpop.permute.xlu0 %2329
        %2331 = vrot.lane.b32.xlu0 %v2287, 64
        %v2332 = vpop.permute.xlu0 %2331
        %2333 = vrot.lane.b32.xlu0 %v2288, 64
        %v2334 = vpop.permute.xlu0 %2333
        %2335 = vrot.lane.b32.xlu0 %v2289, 64
        %v2336 = vpop.permute.xlu0 %2335
        %2337 = vrot.lane.b32.xlu0 %v2290, 64
        %v2338 = vpop.permute.xlu0 %2337
        %vm2355 = vcmask 785920
        %2356 = vst.msk [vmem:[#allocation3] sm:$0xff] %vm2355, %v2308
        %2357 = vst.msk [vmem:[#allocation3 + $0x8] sm:$0xff] %vm2355, %v2310
        %2358 = vst.msk [vmem:[#allocation3 + $0x10] sm:$0xff] %vm2355, %v2312
        %2359 = vst.msk [vmem:[#allocation3 + $0x18] sm:$0xff] %vm2355, %v2314
        %2360 = vst.msk [vmem:[#allocation3 + $0x20] sm:$0xff] %vm2355, %v2316
        %2361 = vst.msk [vmem:[#allocation3 + $0x28] sm:$0xff] %vm2355, %v2318
        %2362 = vst.msk [vmem:[#allocation3 + $0x30] sm:$0xff] %vm2355, %v2320
        %2363 = vst.msk [vmem:[#allocation3 + $0x38] sm:$0xff] %vm2355, %v2322
        %2364 = vst.msk [vmem:[#allocation3 + $0x40] sm:$0xff] %vm2355, %v2324
        %2365 = vst.msk [vmem:[#allocation3 + $0x48] sm:$0xff] %vm2355, %v2326
        %2366 = vst.msk [vmem:[#allocation3 + $0x50] sm:$0xff] %vm2355, %v2328
        %2367 = vst.msk [vmem:[#allocation3 + $0x58] sm:$0xff] %vm2355, %v2330
        %2368 = vst.msk [vmem:[#allocation3 + $0x60] sm:$0xff] %vm2355, %v2332
        %2369 = vst.msk [vmem:[#allocation3 + $0x68] sm:$0xff] %vm2355, %v2334
        %2370 = vst.msk [vmem:[#allocation3 + $0x70] sm:$0xff] %vm2355, %v2336
        %2371 = vst.msk [vmem:[#allocation3 + $0x78] sm:$0xff] %vm2355, %v2338
        %v2372 = vmul.f32 %v460, %v2275
        %v2373 = vmul.f32 %v461, %v2276
        %v2374 = vmul.f32 %v462, %v2277
        %v2375 = vmul.f32 %v463, %v2278
        %v2376 = vmul.f32 %v464, %v2279
        %v2377 = vmul.f32 %v465, %v2280
        %v2378 = vmul.f32 %v466, %v2281
        %v2379 = vmul.f32 %v467, %v2282
        %v2380 = vmul.f32 %v468, %v2283
        %v2381 = vmul.f32 %v469, %v2284
        %v2382 = vmul.f32 %v470, %v2285
        %v2383 = vmul.f32 %v471, %v2286
        %v2384 = vmul.f32 %v472, %v2287
        %v2385 = vmul.f32 %v473, %v2288
        %v2386 = vmul.f32 %v474, %v2289
        %v2387 = vmul.f32 %v475, %v2290
        %2388 = vmatprep.subr.mxu0 0.0
        %2389 = vmatpush1.msra.mxu0 %v2372
        %2390 = vmatprep.subr.mxu0 0.0
        %2391 = vmatpush1.msra.mxu0 %v2373
        %2392 = vmatprep.subr.mxu0 0.0
        %2393 = vmatpush1.msra.mxu0 %v2374
        %2394 = vmatprep.subr.mxu0 0.0
        %2395 = vmatpush1.msra.mxu0 %v2375
        %2396 = vmatprep.subr.mxu0 0.0
        %2397 = vmatpush1.msra.mxu0 %v2376
        %2398 = vmatprep.subr.mxu0 0.0
        %2399 = vmatpush1.msra.mxu0 %v2377
        %2400 = vmatprep.subr.mxu0 0.0
        %2401 = vmatpush1.msra.mxu0 %v2378
        %2402 = vmatprep.subr.mxu0 0.0
        %2403 = vmatpush1.msra.mxu0 %v2379
        %2404 = vmatprep.subr.mxu0 0.0
        %2405 = vmatpush1.msra.mxu0 %v2380
        %2406 = vmatprep.subr.mxu0 0.0
        %2407 = vmatpush1.msra.mxu0 %v2381
        %2408 = vmatprep.subr.mxu0 0.0
        %2409 = vmatpush1.msra.mxu0 %v2382
        %2410 = vmatprep.subr.mxu0 0.0
        %2411 = vmatpush1.msra.mxu0 %v2383
        %2412 = vmatprep.subr.mxu0 0.0
        %2413 = vmatpush1.msra.mxu0 %v2384
        %2414 = vmatprep.subr.mxu0 0.0
        %2415 = vmatpush1.msra.mxu0 %v2385
        %2416 = vmatprep.subr.mxu0 0.0
        %2417 = vmatpush1.msra.mxu0 %v2386
        %2418 = vmatprep.subr.mxu0 0.0
        %2419 = vmatpush1.msra.mxu0 %v2387
        %2420 = vmatprep.subr.mxu0 0.0
        %2421 = vmatpush1.msra.mxu0 0.0
        %2422 = vmatprep.subr.mxu0 0.0
        %2423 = vmatpush1.msra.mxu0 0.0
        %2424 = vmatprep.subr.mxu0 0.0
        %2425 = vmatpush1.msra.mxu0 0.0
        %2426 = vmatprep.subr.mxu0 0.0
        %2427 = vmatpush1.msra.mxu0 0.0
        %2428 = vmatprep.subr.mxu0 0.0
        %2429 = vmatpush1.msra.mxu0 0.0
        %2430 = vmatprep.subr.mxu0 0.0
        %2431 = vmatpush1.msra.mxu0 0.0
        %2432 = vmatprep.subr.mxu0 0.0
        %2433 = vmatpush1.msra.mxu0 0.0
        %2434 = vmatprep.subr.mxu0 0.0
        %2435 = vmatpush1.msra.mxu0 0.0
        %2436 = vmatprep.subr.mxu0 0.0
        %2437 = vmatpush1.msra.mxu0 0.0
        %2438 = vmatprep.subr.mxu0 0.0
        %2439 = vmatpush1.msra.mxu0 0.0
        %2440 = vmatprep.subr.mxu0 0.0
        %2441 = vmatpush1.msra.mxu0 0.0
        %2442 = vmatprep.subr.mxu0 0.0
        %2443 = vmatpush1.msra.mxu0 0.0
        %2444 = vmatprep.subr.mxu0 0.0
        %2445 = vmatpush1.msra.mxu0 0.0
        %2446 = vmatprep.subr.mxu0 0.0
        %2447 = vmatpush1.msra.mxu0 0.0
        %2448 = vmatprep.subr.mxu0 0.0
        %2449 = vmatpush1.msra.mxu0 0.0
        %2450 = vmatprep.subr.mxu0 0.0
        %2451 = vmatpush1.msra.mxu0 0.0
        %2452 = vmatprep.mubr.f32.mxu0 0.0
        %2453 = vmatmul.mubr.f32.gmra.mrb[0].mxu0 %v332
        %v2454 = vpop.f32.mrb[0].mxu0
        %v2455 = vadd.f32 0.0, %v2454
        %v2456 = vpop.f32.mrb[0].mxu0
        %2457 = vmatprep.mubr.f32.mxu0 0.0
        %2458 = vmatmul.mubr.f32.gmra.mrb[0].mxu0 %v333
        %v2459 = vpop.f32.mrb[0].mxu0
        %v2460 = vadd.f32 0.0, %v2459
        %v2461 = vpop.f32.mrb[0].mxu0
        %2462 = vmatprep.mubr.f32.mxu0 0.0
        %2463 = vmatmul.mubr.f32.gmra.mrb[0].mxu0 %v334
        %v2464 = vpop.f32.mrb[0].mxu0
        %v2465 = vadd.f32 0.0, %v2464
        %v2466 = vpop.f32.mrb[0].mxu0
        %2467 = vmatprep.mubr.f32.mxu0 0.0
        %2468 = vmatmul.mubr.f32.gmra.mrb[0].mxu0 %v335
        %v2469 = vpop.f32.mrb[0].mxu0
        %v2470 = vadd.f32 0.0, %v2469
        %v2471 = vpop.f32.mrb[0].mxu0
        %2472 = vmatprep.mubr.f32.mxu0 0.0
        %2473 = vmatmul.mubr.f32.gmra.mrb[0].mxu0 %v336
        %v2474 = vpop.f32.mrb[0].mxu0
        %v2475 = vadd.f32 0.0, %v2474
        %v2476 = vpop.f32.mrb[0].mxu0
        %2477 = vmatprep.mubr.f32.mxu0 0.0
        %2478 = vmatmul.mubr.f32.gmra.mrb[0].mxu0 %v337
        %v2479 = vpop.f32.mrb[0].mxu0
        %v2480 = vadd.f32 0.0, %v2479
        %v2481 = vpop.f32.mrb[0].mxu0
        %2482 = vmatprep.mubr.f32.mxu0 0.0
        %2483 = vmatmul.mubr.f32.gmra.mrb[0].mxu0 %v338
        %v2484 = vpop.f32.mrb[0].mxu0
        %v2485 = vadd.f32 0.0, %v2484
        %v2486 = vpop.f32.mrb[0].mxu0
        %2487 = vmatprep.mubr.f32.mxu0 0.0
        %2488 = vmatmul.mubr.f32.gmra.mrb[0].mxu0 %v339
        %v2489 = vpop.f32.mrb[0].mxu0
        %v2490 = vadd.f32 0.0, %v2489
        %v2491 = vpop.f32.mrb[0].mxu0
        %2492 = vmatprep.mubr.f32.mxu0 0.0
        %2493 = vmatmul.mubr.f32.gmra.mrb[0].mxu0 %v340
        %v2494 = vpop.f32.mrb[0].mxu0
        %v2495 = vadd.f32 0.0, %v2494
        %v2496 = vpop.f32.mrb[0].mxu0
        %2497 = vmatprep.mubr.f32.mxu0 0.0
        %2498 = vmatmul.mubr.f32.gmra.mrb[0].mxu0 %v341
        %v2499 = vpop.f32.mrb[0].mxu0
        %v2500 = vadd.f32 0.0, %v2499
        %v2501 = vpop.f32.mrb[0].mxu0
        %2502 = vmatprep.mubr.f32.mxu0 0.0
        %2503 = vmatmul.mubr.f32.gmra.mrb[0].mxu0 %v342
        %v2504 = vpop.f32.mrb[0].mxu0
        %v2505 = vadd.f32 0.0, %v2504
        %v2506 = vpop.f32.mrb[0].mxu0
        %2507 = vmatprep.mubr.f32.mxu0 0.0
        %2508 = vmatmul.mubr.f32.gmra.mrb[0].mxu0 %v343
        %v2509 = vpop.f32.mrb[0].mxu0
        %v2510 = vadd.f32 0.0, %v2509
        %v2511 = vpop.f32.mrb[0].mxu0
        %2512 = vmatprep.mubr.f32.mxu0 0.0
        %2513 = vmatmul.mubr.f32.gmra.mrb[0].mxu0 %v344
        %v2514 = vpop.f32.mrb[0].mxu0
        %v2515 = vadd.f32 0.0, %v2514
        %v2516 = vpop.f32.mrb[0].mxu0
        %2517 = vmatprep.mubr.f32.mxu0 0.0
        %2518 = vmatmul.mubr.f32.gmra.mrb[0].mxu0 %v345
        %v2519 = vpop.f32.mrb[0].mxu0
        %v2520 = vadd.f32 0.0, %v2519
        %v2521 = vpop.f32.mrb[0].mxu0
        %2522 = vmatprep.mubr.f32.mxu0 0.0
        %2523 = vmatmul.mubr.f32.gmra.mrb[0].mxu0 %v346
        %v2524 = vpop.f32.mrb[0].mxu0
        %v2525 = vadd.f32 0.0, %v2524
        %v2526 = vpop.f32.mrb[0].mxu0
        %2527 = vmatprep.mubr.f32.mxu0 0.0
        %2528 = vmatmul.mubr.f32.gmra.mrb[0].mxu0 %v347
        %v2529 = vpop.f32.mrb[0].mxu0
        %v2530 = vadd.f32 0.0, %v2529
        %v2531 = vpop.f32.mrb[0].mxu0
        %2532 = vdwg.mxu0
        %v2533 = vmul.f32 %v508, %v2275
        %v2534 = vmul.f32 %v509, %v2276
        %v2535 = vmul.f32 %v510, %v2277
        %v2536 = vmul.f32 %v511, %v2278
        %v2537 = vmul.f32 %v512, %v2279
        %v2538 = vmul.f32 %v513, %v2280
        %v2539 = vmul.f32 %v514, %v2281
        %v2540 = vmul.f32 %v515, %v2282
        %v2541 = vmul.f32 %v516, %v2283
        %v2542 = vmul.f32 %v517, %v2284
        %v2543 = vmul.f32 %v518, %v2285
        %v2544 = vmul.f32 %v519, %v2286
        %v2545 = vmul.f32 %v520, %v2287
        %v2546 = vmul.f32 %v521, %v2288
        %v2547 = vmul.f32 %v522, %v2289
        %v2548 = vmul.f32 %v523, %v2290
        %v2549 = vmul.f32 %v460, %v2455
        %v2550 = vmul.f32 %v461, %v2460
        %v2551 = vmul.f32 %v462, %v2465
        %v2552 = vmul.f32 %v463, %v2470
        %v2553 = vmul.f32 %v464, %v2475
        %v2554 = vmul.f32 %v465, %v2480
        %v2555 = vmul.f32 %v466, %v2485
        %v2556 = vmul.f32 %v467, %v2490
        %v2557 = vmul.f32 %v468, %v2495
        %v2558 = vmul.f32 %v469, %v2500
        %v2559 = vmul.f32 %v470, %v2505
        %v2560 = vmul.f32 %v471, %v2510
        %v2561 = vmul.f32 %v472, %v2515
        %v2562 = vmul.f32 %v473, %v2520
        %v2563 = vmul.f32 %v474, %v2525
        %v2564 = vmul.f32 %v475, %v2530
        %v2565 = vsub.f32 %v2533, %v2549
        %v2566 = vsub.f32 %v2534, %v2550
        %v2567 = vsub.f32 %v2535, %v2551
        %v2568 = vsub.f32 %v2536, %v2552
        %v2569 = vsub.f32 %v2537, %v2553
        %v2570 = vsub.f32 %v2538, %v2554
        %v2571 = vsub.f32 %v2539, %v2555
        %v2572 = vsub.f32 %v2540, %v2556
        %v2573 = vsub.f32 %v2541, %v2557
        %v2574 = vsub.f32 %v2542, %v2558
        %v2575 = vsub.f32 %v2543, %v2559
        %v2576 = vsub.f32 %v2544, %v2560
        %v2577 = vsub.f32 %v2545, %v2561
        %v2578 = vsub.f32 %v2546, %v2562
        %v2579 = vsub.f32 %v2547, %v2563
        %v2580 = vsub.f32 %v2548, %v2564
        %v2581 = vmul.f32 %v2565, 2.0
        %v2582 = vmul.f32 %v2566, 2.0
        %v2583 = vmul.f32 %v2567, 2.0
        %v2584 = vmul.f32 %v2568, 2.0
        %v2585 = vmul.f32 %v2569, 2.0
        %v2586 = vmul.f32 %v2570, 2.0
        %v2587 = vmul.f32 %v2571, 2.0
        %v2588 = vmul.f32 %v2572, 2.0
        %v2589 = vmul.f32 %v2573, 2.0
        %v2590 = vmul.f32 %v2574, 2.0
        %v2591 = vmul.f32 %v2575, 2.0
        %v2592 = vmul.f32 %v2576, 2.0
        %v2593 = vmul.f32 %v2577, 2.0
        %v2594 = vmul.f32 %v2578, 2.0
        %v2595 = vmul.f32 %v2579, 2.0
        %v2596 = vmul.f32 %v2580, 2.0
        %v2597 = vsub.f32 %v2581, %v1953
        %v2598 = vsub.f32 %v2582, %v1954
        %v2599 = vsub.f32 %v2583, %v1955
        %v2600 = vsub.f32 %v2584, %v1956
        %v2601 = vsub.f32 %v2585, %v1957
        %v2602 = vsub.f32 %v2586, %v1958
        %v2603 = vsub.f32 %v2587, %v1959
        %v2604 = vsub.f32 %v2588, %v1960
        %v2605 = vsub.f32 %v2589, %v1961
        %v2606 = vsub.f32 %v2590, %v1962
        %v2607 = vsub.f32 %v2591, %v1963
        %v2608 = vsub.f32 %v2592, %v1964
        %v2609 = vsub.f32 %v2593, %v1965
        %v2610 = vsub.f32 %v2594, %v1966
        %v2611 = vsub.f32 %v2595, %v1967
        %v2612 = vsub.f32 %v2596, %v1968
        %2629 = vrot.lane.b32.xlu0 %v2597, 96
        %v2630 = vpop.permute.xlu0 %2629
        %2631 = vrot.lane.b32.xlu0 %v2598, 96
        %v2632 = vpop.permute.xlu0 %2631
        %2633 = vrot.lane.b32.xlu0 %v2599, 96
        %v2634 = vpop.permute.xlu0 %2633
        %2635 = vrot.lane.b32.xlu0 %v2600, 96
        %v2636 = vpop.permute.xlu0 %2635
        %2637 = vrot.lane.b32.xlu0 %v2601, 96
        %v2638 = vpop.permute.xlu0 %2637
        %2639 = vrot.lane.b32.xlu0 %v2602, 96
        %v2640 = vpop.permute.xlu0 %2639
        %2641 = vrot.lane.b32.xlu0 %v2603, 96
        %v2642 = vpop.permute.xlu0 %2641
        %2643 = vrot.lane.b32.xlu0 %v2604, 96
        %v2644 = vpop.permute.xlu0 %2643
        %2645 = vrot.lane.b32.xlu0 %v2605, 96
        %v2646 = vpop.permute.xlu0 %2645
        %2647 = vrot.lane.b32.xlu0 %v2606, 96
        %v2648 = vpop.permute.xlu0 %2647
        %2649 = vrot.lane.b32.xlu0 %v2607, 96
        %v2650 = vpop.permute.xlu0 %2649
        %2651 = vrot.lane.b32.xlu0 %v2608, 96
        %v2652 = vpop.permute.xlu0 %2651
        %2653 = vrot.lane.b32.xlu0 %v2609, 96
        %v2654 = vpop.permute.xlu0 %2653
        %2655 = vrot.lane.b32.xlu0 %v2610, 96
        %v2656 = vpop.permute.xlu0 %2655
        %2657 = vrot.lane.b32.xlu0 %v2611, 96
        %v2658 = vpop.permute.xlu0 %2657
        %2659 = vrot.lane.b32.xlu0 %v2612, 96
        %v2660 = vpop.permute.xlu0 %2659
        %vm2677 = vcmask 1048320
        %2678 = vst.msk [vmem:[#allocation3] sm:$0xff] %vm2677, %v2630
        %2679 = vst.msk [vmem:[#allocation3 + $0x8] sm:$0xff] %vm2677, %v2632
        %2680 = vst.msk [vmem:[#allocation3 + $0x10] sm:$0xff] %vm2677, %v2634
        %2681 = vst.msk [vmem:[#allocation3 + $0x18] sm:$0xff] %vm2677, %v2636
        %2682 = vst.msk [vmem:[#allocation3 + $0x20] sm:$0xff] %vm2677, %v2638
        %2683 = vst.msk [vmem:[#allocation3 + $0x28] sm:$0xff] %vm2677, %v2640
        %2684 = vst.msk [vmem:[#allocation3 + $0x30] sm:$0xff] %vm2677, %v2642
        %2685 = vst.msk [vmem:[#allocation3 + $0x38] sm:$0xff] %vm2677, %v2644
        %2686 = vst.msk [vmem:[#allocation3 + $0x40] sm:$0xff] %vm2677, %v2646
        %2687 = vst.msk [vmem:[#allocation3 + $0x48] sm:$0xff] %vm2677, %v2648
        %2688 = vst.msk [vmem:[#allocation3 + $0x50] sm:$0xff] %vm2677, %v2650
        %2689 = vst.msk [vmem:[#allocation3 + $0x58] sm:$0xff] %vm2677, %v2652
        %2690 = vst.msk [vmem:[#allocation3 + $0x60] sm:$0xff] %vm2677, %v2654
        %2691 = vst.msk [vmem:[#allocation3 + $0x68] sm:$0xff] %vm2677, %v2656
        %2692 = vst.msk [vmem:[#allocation3 + $0x70] sm:$0xff] %vm2677, %v2658
        %2693 = vst.msk [vmem:[#allocation3 + $0x78] sm:$0xff] %vm2677, %v2660
        %v2694 = vld [vmem:[#allocation3] sm:$0xff]
        %v2695 = vld [vmem:[#allocation3 + $0x8] sm:$0xff]
        %v2696 = vld [vmem:[#allocation3 + $0x10] sm:$0xff]
        %v2697 = vld [vmem:[#allocation3 + $0x18] sm:$0xff]
        %v2698 = vld [vmem:[#allocation3 + $0x20] sm:$0xff]
        %v2699 = vld [vmem:[#allocation3 + $0x28] sm:$0xff]
        %v2700 = vld [vmem:[#allocation3 + $0x30] sm:$0xff]
        %v2701 = vld [vmem:[#allocation3 + $0x38] sm:$0xff]
        %v2702 = vld [vmem:[#allocation3 + $0x40] sm:$0xff]
        %v2703 = vld [vmem:[#allocation3 + $0x48] sm:$0xff]
        %v2704 = vld [vmem:[#allocation3 + $0x50] sm:$0xff]
        %v2705 = vld [vmem:[#allocation3 + $0x58] sm:$0xff]
        %v2706 = vld [vmem:[#allocation3 + $0x60] sm:$0xff]
        %v2707 = vld [vmem:[#allocation3 + $0x68] sm:$0xff]
        %v2708 = vld [vmem:[#allocation3 + $0x70] sm:$0xff]
        %v2709 = vld [vmem:[#allocation3 + $0x78] sm:$0xff]
        %v2711 = vlaneseq
        %v2712 = vshrl.u32 %v2711, 7
        %v2713 = vsub.s32 0, %v2712
        %v2714 = vrot.slane %v1742, %v2713
        %2716 = vmatprep.subr.mxu0 0.0
        %2717 = vmatpush1.msra.mxu0 %v1726
        %2718 = vmatprep.subr.mxu0 0.0
        %2719 = vmatpush1.msra.mxu0 %v1727
        %2720 = vmatprep.subr.mxu0 0.0
        %2721 = vmatpush1.msra.mxu0 %v1728
        %2722 = vmatprep.subr.mxu0 0.0
        %2723 = vmatpush1.msra.mxu0 %v1729
        %2724 = vmatprep.subr.mxu0 0.0
        %2725 = vmatpush1.msra.mxu0 %v1730
        %2726 = vmatprep.subr.mxu0 0.0
        %2727 = vmatpush1.msra.mxu0 %v1731
        %2728 = vmatprep.subr.mxu0 0.0
        %2729 = vmatpush1.msra.mxu0 %v1732
        %2730 = vmatprep.subr.mxu0 0.0
        %2731 = vmatpush1.msra.mxu0 %v1733
        %2732 = vmatprep.subr.mxu0 0.0
        %2733 = vmatpush1.msra.mxu0 %v1734
        %2734 = vmatprep.subr.mxu0 0.0
        %2735 = vmatpush1.msra.mxu0 %v1735
        %2736 = vmatprep.subr.mxu0 0.0
        %2737 = vmatpush1.msra.mxu0 %v1736
        %2738 = vmatprep.subr.mxu0 0.0
        %2739 = vmatpush1.msra.mxu0 %v1737
        %2740 = vmatprep.subr.mxu0 0.0
        %2741 = vmatpush1.msra.mxu0 %v1738
        %2742 = vmatprep.subr.mxu0 0.0
        %2743 = vmatpush1.msra.mxu0 %v1739
        %2744 = vmatprep.subr.mxu0 0.0
        %2745 = vmatpush1.msra.mxu0 %v1740
        %2746 = vmatprep.subr.mxu0 0.0
        %2747 = vmatpush1.msra.mxu0 %v1741
        %2748 = vmatprep.subr.mxu0 0.0
        %2749 = vmatpush1.msra.mxu0 0.0
        %2750 = vmatprep.subr.mxu0 0.0
        %2751 = vmatpush1.msra.mxu0 0.0
        %2752 = vmatprep.subr.mxu0 0.0
        %2753 = vmatpush1.msra.mxu0 0.0
        %2754 = vmatprep.subr.mxu0 0.0
        %2755 = vmatpush1.msra.mxu0 0.0
        %2756 = vmatprep.subr.mxu0 0.0
        %2757 = vmatpush1.msra.mxu0 0.0
        %2758 = vmatprep.subr.mxu0 0.0
        %2759 = vmatpush1.msra.mxu0 0.0
        %2760 = vmatprep.subr.mxu0 0.0
        %2761 = vmatpush1.msra.mxu0 0.0
        %2762 = vmatprep.subr.mxu0 0.0
        %2763 = vmatpush1.msra.mxu0 0.0
        %2764 = vmatprep.subr.mxu0 0.0
        %2765 = vmatpush1.msra.mxu0 0.0
        %2766 = vmatprep.subr.mxu0 0.0
        %2767 = vmatpush1.msra.mxu0 0.0
        %2768 = vmatprep.subr.mxu0 0.0
        %2769 = vmatpush1.msra.mxu0 0.0
        %2770 = vmatprep.subr.mxu0 0.0
        %2771 = vmatpush1.msra.mxu0 0.0
        %2772 = vmatprep.subr.mxu0 0.0
        %2773 = vmatpush1.msra.mxu0 0.0
        %2774 = vmatprep.subr.mxu0 0.0
        %2775 = vmatpush1.msra.mxu0 0.0
        %2776 = vmatprep.subr.mxu0 0.0
        %2777 = vmatpush1.msra.mxu0 0.0
        %2778 = vmatprep.subr.mxu0 0.0
        %2779 = vmatpush1.msra.mxu0 0.0
        %2780 = vmatprep.mubr.f32.mxu0 0.0
        %2781 = vmatmul.mubr.f32.gmra.mrb[0].mxu0 %v2694
        %v2782 = vpop.f32.mrb[0].mxu0
        %v2783 = vadd.f32 %v2714, %v2782
        %v2784 = vpop.f32.mrb[0].mxu0
        %2785 = vmatprep.mubr.f32.mxu0 0.0
        %2786 = vmatmul.mubr.f32.gmra.mrb[0].mxu0 %v2695
        %v2787 = vpop.f32.mrb[0].mxu0
        %v2788 = vadd.f32 %v2714, %v2787
        %v2789 = vpop.f32.mrb[0].mxu0
        %2790 = vmatprep.mubr.f32.mxu0 0.0
        %2791 = vmatmul.mubr.f32.gmra.mrb[0].mxu0 %v2696
        %v2792 = vpop.f32.mrb[0].mxu0
        %v2793 = vadd.f32 %v2714, %v2792
        %v2794 = vpop.f32.mrb[0].mxu0
        %2795 = vmatprep.mubr.f32.mxu0 0.0
        %2796 = vmatmul.mubr.f32.gmra.mrb[0].mxu0 %v2697
        %v2797 = vpop.f32.mrb[0].mxu0
        %v2798 = vadd.f32 %v2714, %v2797
        %v2799 = vpop.f32.mrb[0].mxu0
        %2800 = vmatprep.mubr.f32.mxu0 0.0
        %2801 = vmatmul.mubr.f32.gmra.mrb[0].mxu0 %v2698
        %v2802 = vpop.f32.mrb[0].mxu0
        %v2803 = vadd.f32 %v2714, %v2802
        %v2804 = vpop.f32.mrb[0].mxu0
        %2805 = vmatprep.mubr.f32.mxu0 0.0
        %2806 = vmatmul.mubr.f32.gmra.mrb[0].mxu0 %v2699
        %v2807 = vpop.f32.mrb[0].mxu0
        %v2808 = vadd.f32 %v2714, %v2807
        %v2809 = vpop.f32.mrb[0].mxu0
        %2810 = vmatprep.mubr.f32.mxu0 0.0
        %2811 = vmatmul.mubr.f32.gmra.mrb[0].mxu0 %v2700
        %v2812 = vpop.f32.mrb[0].mxu0
        %v2813 = vadd.f32 %v2714, %v2812
        %v2814 = vpop.f32.mrb[0].mxu0
        %2815 = vmatprep.mubr.f32.mxu0 0.0
        %2816 = vmatmul.mubr.f32.gmra.mrb[0].mxu0 %v2701
        %v2817 = vpop.f32.mrb[0].mxu0
        %v2818 = vadd.f32 %v2714, %v2817
        %v2819 = vpop.f32.mrb[0].mxu0
        %2820 = vmatprep.mubr.f32.mxu0 0.0
        %2821 = vmatmul.mubr.f32.gmra.mrb[0].mxu0 %v2702
        %v2822 = vpop.f32.mrb[0].mxu0
        %v2823 = vadd.f32 %v2714, %v2822
        %v2824 = vpop.f32.mrb[0].mxu0
        %2825 = vmatprep.mubr.f32.mxu0 0.0
        %2826 = vmatmul.mubr.f32.gmra.mrb[0].mxu0 %v2703
        %v2827 = vpop.f32.mrb[0].mxu0
        %v2828 = vadd.f32 %v2714, %v2827
        %v2829 = vpop.f32.mrb[0].mxu0
        %2830 = vmatprep.mubr.f32.mxu0 0.0
        %2831 = vmatmul.mubr.f32.gmra.mrb[0].mxu0 %v2704
        %v2832 = vpop.f32.mrb[0].mxu0
        %v2833 = vadd.f32 %v2714, %v2832
        %v2834 = vpop.f32.mrb[0].mxu0
        %2835 = vmatprep.mubr.f32.mxu0 0.0
        %2836 = vmatmul.mubr.f32.gmra.mrb[0].mxu0 %v2705
        %v2837 = vpop.f32.mrb[0].mxu0
        %v2838 = vadd.f32 %v2714, %v2837
        %v2839 = vpop.f32.mrb[0].mxu0
        %2840 = vmatprep.mubr.f32.mxu0 0.0
        %2841 = vmatmul.mubr.f32.gmra.mrb[0].mxu0 %v2706
        %v2842 = vpop.f32.mrb[0].mxu0
        %v2843 = vadd.f32 %v2714, %v2842
        %v2844 = vpop.f32.mrb[0].mxu0
        %2845 = vmatprep.mubr.f32.mxu0 0.0
        %2846 = vmatmul.mubr.f32.gmra.mrb[0].mxu0 %v2707
        %v2847 = vpop.f32.mrb[0].mxu0
        %v2848 = vadd.f32 %v2714, %v2847
        %v2849 = vpop.f32.mrb[0].mxu0
        %2850 = vmatprep.mubr.f32.mxu0 0.0
        %2851 = vmatmul.mubr.f32.gmra.mrb[0].mxu0 %v2708
        %v2852 = vpop.f32.mrb[0].mxu0
        %v2853 = vadd.f32 %v2714, %v2852
        %v2854 = vpop.f32.mrb[0].mxu0
        %2855 = vmatprep.mubr.f32.mxu0 0.0
        %2856 = vmatmul.mubr.f32.gmra.mrb[0].mxu0 %v2709
        %v2857 = vpop.f32.mrb[0].mxu0
        %v2858 = vadd.f32 %v2714, %v2857
        %v2859 = vpop.f32.mrb[0].mxu0
        %2860 = vdwg.mxu0
        %v2861 = vmax.f32 %v2783, 0.0
        %v2862 = vmax.f32 %v2788, 0.0
        %v2863 = vmax.f32 %v2793, 0.0
        %v2864 = vmax.f32 %v2798, 0.0
        %v2865 = vmax.f32 %v2803, 0.0
        %v2866 = vmax.f32 %v2808, 0.0
        %v2867 = vmax.f32 %v2813, 0.0
        %v2868 = vmax.f32 %v2818, 0.0
        %v2869 = vmax.f32 %v2823, 0.0
        %v2870 = vmax.f32 %v2828, 0.0
        %v2871 = vmax.f32 %v2833, 0.0
        %v2872 = vmax.f32 %v2838, 0.0
        %v2873 = vmax.f32 %v2843, 0.0
        %v2874 = vmax.f32 %v2848, 0.0
        %v2875 = vmax.f32 %v2853, 0.0
        %v2876 = vmax.f32 %v2858, 0.0
        %vm2877 = vcmask 64512
        %2878 = vst.msk [vmem:[%s331] sm:$0xff] %vm2877, %v2861
        %2879 = vst.msk [vmem:[%s331 + $0x8] sm:$0xff] %vm2877, %v2862
        %2880 = vst.msk [vmem:[%s331 + $0x10] sm:$0xff] %vm2877, %v2863
        %2881 = vst.msk [vmem:[%s331 + $0x18] sm:$0xff] %vm2877, %v2864
        %2882 = vst.msk [vmem:[%s331 + $0x20] sm:$0xff] %vm2877, %v2865
        %2883 = vst.msk [vmem:[%s331 + $0x28] sm:$0xff] %vm2877, %v2866
        %2884 = vst.msk [vmem:[%s331 + $0x30] sm:$0xff] %vm2877, %v2867
        %2885 = vst.msk [vmem:[%s331 + $0x38] sm:$0xff] %vm2877, %v2868
        %2886 = vst.msk [vmem:[%s331 + $0x40] sm:$0xff] %vm2877, %v2869
        %2887 = vst.msk [vmem:[%s331 + $0x48] sm:$0xff] %vm2877, %v2870
        %2888 = vst.msk [vmem:[%s331 + $0x50] sm:$0xff] %vm2877, %v2871
        %2889 = vst.msk [vmem:[%s331 + $0x58] sm:$0xff] %vm2877, %v2872
        %2890 = vst.msk [vmem:[%s331 + $0x60] sm:$0xff] %vm2877, %v2873
        %2891 = vst.msk [vmem:[%s331 + $0x68] sm:$0xff] %vm2877, %v2874
        %2892 = vst.msk [vmem:[%s331 + $0x70] sm:$0xff] %vm2877, %v2875
        %2893 = vst.msk [vmem:[%s331 + $0x78] sm:$0xff] %vm2877, %v2876
        %p2894 = scmp.lt.s32.totalorder %s22, 1
        %s2895 = scalar_select %p2894, %s22, 1
        %s2896 = smul.addr %s2895, 16
        %s2897 = smul.addr %s2896, 8
        %s2898 = scalar_lea.vmem %s6, %s2897
        // Predicated region
        $region61: #{chebnet_forward.2} parent=43 // pred_check
          %p2899 = pneg %p176
        $region62: #{chebnet_forward.2} parent=43 // pred_check_branch
          %2901 = sbr.rel (%p2899) target = $region64
        $region63: #{chebnet_forward.2} parent=43 // pred_region
          _
        $region64: #{chebnet_forward.2} parent=43 // pred_fallthru
          _
      $region44: #{chebnet_forward.2} parent=5 // pred_fallthru
        _
      %p2902 = scmp.le.s32.totalorder 2, %s17
      // Predicated region
      $region65: #{chebnet_forward.2} parent=5 // pred_check
        %p2903 = pneg %p2902
      $region66: #{chebnet_forward.2} parent=5 // pred_check_branch
        %2905 = sbr.rel (%p2903) target = $region68
      $region67: #{chebnet_forward.2} parent=5 // pred_region
        %s2906 = ssub.s32 %s17, 2
        // Predicated region
        $region69: #{chebnet_forward.2} parent=67 // pred_check
          %p2907 = pneg %p182
        $region70: #{chebnet_forward.2} parent=67 // pred_check_branch
          %2909 = sbr.rel (%p2907) target = $region72
        $region71: #{chebnet_forward.2} parent=67 // pred_region
          %p2910 = scmp.lt.s32.totalorder %s23, 1
          %s2911 = scalar_select %p2910, %s23, 1
          %s2912 = smul.addr %s2911, 16
          %s2913 = smul.addr %s2912, 8
          %s2914 = scalar_lea.vmem %s6, %s2913
        $region72: #{chebnet_forward.2} parent=67 // pred_fallthru
          _
      $region68: #{chebnet_forward.2} parent=5 // pred_fallthru
        _
    $region6: #{chebnet_forward.2} parent=1 // loop_footer
      %s21 = sadd.s32 1, %s17
    $region7: #{chebnet_forward.2} parent=1 // loop_footer_branch
      %16 = sbr.rel target = $region3
    $region8: #{chebnet_forward.2} parent=1 // loop_exit
      _
    %2915 = vsyncpa [#allocation5], 1
    %s2916 = scalar_lea.sflag [#allocation5], 1
    %2917 = vsyncpa %s2916, 1
    %2918 = vsyncpa [#allocation7], 1
    %2919 = vsyncpa [#allocation10], 1

</llo_original>
